<compile_context>
chip_gen: v5e
topology: v5e:2x2
jax: 0.10.0
libtpu: 0.0.40
codegen_flags: <defaults>
</compile_context>

<pallas_src>
import functools

import jax
import jax.numpy as jnp
import numpy as np
from jax import lax
from jax.experimental import pallas as pl
from jax.experimental.pallas import tpu as pltpu


K = 3  # 3x3 convs, padding=1


# ------------------------------ fused kernel -------------------------------- #

def _fused_encoder_kernel(x_ref, w1t_ref, b1_ref, w2t_ref, b2_ref,
                          wf_ref, bf_ref, mint_ref, sel_ref,
                          o_ref, y1s_ref, *, H, W, Bs):
    # Per grid step (Bs batch elements):
    #   x_ref   : [Bs, Cin, L]   flattened zero-padded image + zero margins
    #   w1t_ref : [9, C1, Cin]   per-tap transposed conv1 weights
    #   b1_ref  : [C1, 1]
    #   w2t_ref : [9, C2, C1]
    #   b2_ref  : [C2, 1]
    #   wf_ref  : [C2, E]
    #   bf_ref  : [1, E]
    #   mint_ref: [1, P]  interior mask (1 on the HxW image, 0 on the pad ring)
    #   sel_ref : [1, P]  stride-2 center mask, pre-scaled by 1/(H/2*W/2)
    #   o_ref   : [Bs, E]
    #   y1s_ref : VMEM [C1, L]   conv1 output over the padded grid + margins
    Wp = W + 2
    P = (H + 2) * Wp            # padded spatial grid, flattened (lane axis)
    M = Wp + 1                  # shift margin: |(kh-1)*Wp + (kw-1)| <= Wp+1
    C1 = w1t_ref.shape[1]
    C2 = w2t_ref.shape[1]
    op_dtype = y1s_ref.dtype

    # Tap t=(kh,kw): reading padded position o+d_t, d_t = (kh-1)*Wp + (kw-1).
    offs = [M + (kh - 1) * Wp + (kw - 1) for kh in range(K) for kw in range(K)]

    mint = mint_ref[...]                                   # [1, P]
    sel = sel_ref[...]                                     # [1, P]
    b1 = b1_ref[...]                                       # [C1, 1]
    b2 = b2_ref[...]                                       # [C2, 1]
    wf = wf_ref[...]                                       # [C2, E]
    bf = bf_ref[...]                                       # [1, E]

    # Zero only the margin strips (interior is fully rewritten below); keeps
    # stale VMEM (possible NaN bit patterns) out of the masked positions.
    zmargin = jnp.zeros((C1, M), op_dtype)
    y1s_ref[:, pl.ds(0, M)] = zmargin
    y1s_ref[:, pl.ds(M + P, M)] = zmargin

    for bi in range(Bs):
        x2d = x_ref[bi]                                    # [Cin, L]

        # ---------------- conv1: 3x3 / stride 1 / pad 1 + ReLU -------------- #
        # Dense over the padded grid: 9 lane-shifted slices, 9 accumulated
        # weight-stationary dots (no patch matrix, no concat/reshape copies).
        acc1 = jnp.zeros((C1, P), jnp.float32)
        for t, off in enumerate(offs):
            acc1 = acc1 + jnp.dot(w1t_ref[t], x2d[:, off:off + P],
                                  preferred_element_type=jnp.float32)
        # Border of the padded grid is conv2's zero padding -> mask it to 0.
        y1 = mint * jnp.maximum(acc1 + b1, 0.0)            # [C1, P] f32
        y1s_ref[:, pl.ds(M, P)] = y1.astype(op_dtype)

        # ---------------- conv2: 3x3 / stride 2 / pad 1 + ReLU -------------- #
        # Dense stride-1 conv over the same padded grid; the stride-2 outputs
        # live at padded centers (2i+1, 2j+1) and are picked by `sel` below.
        y1m = y1s_ref[...]                                 # [C1, L]
        acc2 = jnp.zeros((C2, P), jnp.float32)
        for t, off in enumerate(offs):
            acc2 = acc2 + jnp.dot(w2t_ref[t], y1m[:, off:off + P],
                                  preferred_element_type=jnp.float32)
        y2 = jnp.maximum(acc2 + b2, 0.0)                   # [C2, P] f32

        # ------------- global average pool (lane reduce) + final FC --------- #
        pooled = jnp.sum(y2 * sel, axis=-1, keepdims=True)           # [C2, 1]
        emb = jnp.sum(pooled * wf, axis=0, keepdims=True) + bf       # [1, E]
        o_ref[pl.ds(bi, 1), :] = emb.astype(o_ref.dtype)  # lane-dense store


# --------------------------------- wrapper ---------------------------------- #

def _num_tensorcores() -> int:
    try:
        n = getattr(jax.devices()[0], "num_cores", 1)
        return max(1, int(n)) if n else 1
    except Exception:
        return 1


@functools.partial(jax.jit, static_argnames=("operand_dtype",))
def state_encoder_forward(x_nchw, params, operand_dtype=jnp.float32):
    """x_nchw: [B, C, H, W] float32 -> embedding [B, 256]."""
    x = x_nchw.astype(jnp.float32)
    B, Cin, H, W = x.shape
    assert H % 2 == 0 and W % 2 == 0, "stride-2 center-mask path assumes even H, W"
    C1 = params["w1"].shape[3]
    C2 = params["w2"].shape[3]
    E = params["wf"].shape[1]

    Hp, Wp = H + 2, W + 2
    P = Hp * Wp                 # padded spatial grid, flattened
    M = Wp + 1                  # shift margin
    L = P + 2 * M

    # Channel-major, spatially zero-padded, flattened input with zero margins.
    xf = jnp.pad(x, ((0, 0), (0, 0), (1, 1), (1, 1))).reshape(B, Cin, P)
    xf = jnp.pad(xf, ((0, 0), (0, 0), (M, M))).astype(operand_dtype)

    # Per-tap transposed conv weights [9, Cout, Cin]; biases as [C, 1] columns.
    w1t = jnp.transpose(params["w1"], (0, 1, 3, 2)).reshape(K * K, C1, Cin)
    w2t = jnp.transpose(params["w2"], (0, 1, 3, 2)).reshape(K * K, C2, C1)
    w1t = w1t.astype(operand_dtype)
    w2t = w2t.astype(operand_dtype)
    b1 = params["b1"].reshape(C1, 1).astype(jnp.float32)
    b2 = params["b2"].reshape(C2, 1).astype(jnp.float32)
    wf = params["wf"].astype(jnp.float32)
    bf = params["bf"].reshape(1, E).astype(jnp.float32)

    # Static masks over padded-grid positions (baked in as constants).
    rr, cc = np.meshgrid(np.arange(Hp), np.arange(Wp), indexing="ij")
    interior_np = ((rr >= 1) & (rr <= H) & (cc >= 1) & (cc <= W))
    mint = jnp.asarray(interior_np.reshape(1, P).astype(np.float32))
    sel_np = ((rr % 2 == 1) & (rr < H) & (cc % 2 == 1) & (cc < W))
    sel_np = sel_np.astype(np.float32) / float((H // 2) * (W // 2))
    sel = jnp.asarray(sel_np.reshape(1, P))

    # Batch folding: one grid step on single-TC chips (v5e/v6e); 2-way
    # "parallel" split across TensorCores when 2 TCs are present (v7x).
    cores = _num_tensorcores()
    G = 2 if (cores >= 2 and B >= 2 and B % 2 == 0) else 1
    Bs = B // G

    kernel = functools.partial(_fused_encoder_kernel, H=H, W=W, Bs=Bs)

    flops = 2 * B * P * (K * K * Cin * C1 + K * K * C1 * C2) + 2 * B * C2 * (P + E)
    bytes_accessed = (xf.size * xf.dtype.itemsize
                      + w1t.size * w1t.dtype.itemsize
                      + w2t.size * w2t.dtype.itemsize
                      + (b1.size + b2.size + wf.size + bf.size
                         + 2 * P + B * E) * 4)

    return pl.pallas_call(
        kernel,
        out_shape=jax.ShapeDtypeStruct((B, E), jnp.float32),
        grid_spec=pltpu.PrefetchScalarGridSpec(
            num_scalar_prefetch=0,
            grid=(G,),
            in_specs=[
                pl.BlockSpec((Bs, Cin, L), lambda g: (g, 0, 0)),
                pl.BlockSpec((K * K, C1, Cin), lambda g: (0, 0, 0)),
                pl.BlockSpec((C1, 1), lambda g: (0, 0)),
                pl.BlockSpec((K * K, C2, C1), lambda g: (0, 0, 0)),
                pl.BlockSpec((C2, 1), lambda g: (0, 0)),
                pl.BlockSpec((C2, E), lambda g: (0, 0)),
                pl.BlockSpec((1, E), lambda g: (0, 0)),
                pl.BlockSpec((1, P), lambda g: (0, 0)),
                pl.BlockSpec((1, P), lambda g: (0, 0)),
            ],
            out_specs=pl.BlockSpec((Bs, E), lambda g: (g, 0)),
            scratch_shapes=[pltpu.VMEM((C1, L), operand_dtype)],
        ),
        compiler_params=pltpu.CompilerParams(
            dimension_semantics=("parallel",),
        ),
        cost_estimate=pl.CostEstimate(
            flops=int(flops), transcendentals=0,
            bytes_accessed=int(bytes_accessed)),
    )(xf, w1t, b1, w2t, b2, wf, bf, mint, sel)


# ------------------------------ parameter init ------------------------------ #

def xavier_uniform(key, shape, fan_in, fan_out, dtype=jnp.float32):
    bound = float(np.sqrt(6.0 / (fan_in + fan_out)))
    return jax.random.uniform(key, shape, dtype, minval=-bound, maxval=bound)


def init_state_encoder_params(key, c_in=4, c1=8, c2=16, embed=256):
    k1, k2, k3 = jax.random.split(key, 3)
    return {
        # conv weights stored HWIO
        "w1": xavier_uniform(k1, (K, K, c_in, c1), c_in * K * K, c1 * K * K),
        "b1": jnp.zeros((c1,), jnp.float32),
        "w2": xavier_uniform(k2, (K, K, c1, c2), c1 * K * K, c2 * K * K),
        "b2": jnp.zeros((c2,), jnp.float32),
        # linear stored [in, out]
        "wf": xavier_uniform(k3, (c2, embed), c2, embed),
        "bf": jnp.zeros((embed,), jnp.float32),
    }


# -------------------------------- reference --------------------------------- #

def state_encoder_reference(x_nchw, params):
    x = jnp.transpose(x_nchw, (0, 2, 3, 1)).astype(jnp.float32)
    dn = ("NHWC", "HWIO", "NHWC")
    hp = lax.Precision.HIGHEST
    y = lax.conv_general_dilated(x, params["w1"], (1, 1), [(1, 1), (1, 1)],
                                 dimension_numbers=dn, precision=hp)
    y = jnp.maximum(y + params["b1"], 0.0)
    y = lax.conv_general_dilated(y, params["w2"], (2, 2), [(1, 1), (1, 1)],
                                 dimension_numbers=dn, precision=hp)
    y = jnp.maximum(y + params["b2"], 0.0)
    pooled = jnp.mean(y, axis=(1, 2))
    return jnp.dot(pooled, params["wf"], precision=hp) + params["bf"]


# ----------------------------------- main ------------------------------------ #

if __name__ == "__main__":
    key = jax.random.PRNGKey(0)
    kx, kp = jax.random.split(key)

    B, C, H, W = 2, 4, 16, 16
    x = jax.random.normal(kx, (B, C, H, W), jnp.float32)     # PyTorch NCHW input
    params = init_state_encoder_params(kp, c_in=C, c1=8, c2=16, embed=256)

    ref = jax.block_until_ready(state_encoder_reference(x, params))

    # f32-operand path (default): matches the f32 PyTorch semantics tightly.
    emb = jax.block_until_ready(state_encoder_forward(x, params))
    np.testing.assert_allclose(np.asarray(emb), np.asarray(ref),
                               rtol=1e-4, atol=1e-4)
    assert emb.shape == (B, 256) and emb.dtype == jnp.float32

    # bf16-operand / f32-accumulate path (MXU-native); looser tolerance since
    # bf16 operand rounding alone is ~4e-3 relative.
    emb_bf16 = jax.block_until_ready(
        state_encoder_forward(x, params, operand_dtype=jnp.bfloat16))
    np.testing.assert_allclose(np.asarray(emb_bf16), np.asarray(ref),
                               rtol=2e-2, atol=2e-2)

    print("KERNEL_OK")
</pallas_src>

<mosaic_0001>
module attributes {stable_mosaic.version = 11 : i64} {
  func.func @_fused_encoder_kernel(%arg0: i32, %arg1: memref<2x4x362xf32, #tpu.memory_space<vmem>>, %arg2: memref<9x8x4xf32, #tpu.memory_space<vmem>>, %arg3: memref<8x1xf32, #tpu.memory_space<vmem>>, %arg4: memref<9x16x8xf32, #tpu.memory_space<vmem>>, %arg5: memref<16x1xf32, #tpu.memory_space<vmem>>, %arg6: memref<16x256xf32, #tpu.memory_space<vmem>>, %arg7: memref<1x256xf32, #tpu.memory_space<vmem>>, %arg8: memref<1x324xf32, #tpu.memory_space<vmem>>, %arg9: memref<1x324xf32, #tpu.memory_space<vmem>>, %arg10: memref<2x256xf32, #tpu.memory_space<vmem>>, %arg11: memref<8x362xf32, #tpu.memory_space<vmem>>) attributes {dimension_semantics = [#tpu.dimension_semantics<parallel>], iteration_bounds = array<i64: 1>, scalar_prefetch = 0 : i64, scratch_operands = 1 : i64, tpu.core_type = #tpu.core_type<tc>, window_params = [{transform_indices = @transform_0, window_bounds = array<i64: 2, 4, 362>}, {pipeline_mode = #tpu.pipeline_mode<synchronous>, transform_indices = @transform_1, window_bounds = array<i64: 9, 8, 4>}, {pipeline_mode = #tpu.pipeline_mode<synchronous>, transform_indices = @transform_2, window_bounds = array<i64: 8, 1>}, {pipeline_mode = #tpu.pipeline_mode<synchronous>, transform_indices = @transform_3, window_bounds = array<i64: 9, 16, 8>}, {pipeline_mode = #tpu.pipeline_mode<synchronous>, transform_indices = @transform_4, window_bounds = array<i64: 16, 1>}, {pipeline_mode = #tpu.pipeline_mode<synchronous>, transform_indices = @transform_5, window_bounds = array<i64: 16, 256>}, {pipeline_mode = #tpu.pipeline_mode<synchronous>, transform_indices = @transform_6, window_bounds = array<i64: 1, 256>}, {pipeline_mode = #tpu.pipeline_mode<synchronous>, transform_indices = @transform_7, window_bounds = array<i64: 1, 324>}, {pipeline_mode = #tpu.pipeline_mode<synchronous>, transform_indices = @transform_8, window_bounds = array<i64: 1, 324>}, {transform_indices = @transform_9, window_bounds = array<i64: 2, 256>}]} {
    %c0 = arith.constant 0 : index
    %c0_0 = arith.constant 0 : index
    %0 = vector.load %arg8[%c0, %c0_0] : memref<1x324xf32, #tpu.memory_space<vmem>>, vector<1x324xf32>
    %c0_1 = arith.constant 0 : index
    %c0_2 = arith.constant 0 : index
    %1 = vector.load %arg9[%c0_1, %c0_2] : memref<1x324xf32, #tpu.memory_space<vmem>>, vector<1x324xf32>
    %c0_3 = arith.constant 0 : index
    %c0_4 = arith.constant 0 : index
    %2 = vector.load %arg3[%c0_3, %c0_4] : memref<8x1xf32, #tpu.memory_space<vmem>>, vector<8x1xf32>
    %c0_5 = arith.constant 0 : index
    %c0_6 = arith.constant 0 : index
    %3 = vector.load %arg5[%c0_5, %c0_6] : memref<16x1xf32, #tpu.memory_space<vmem>>, vector<16x1xf32>
    %c0_7 = arith.constant 0 : index
    %c0_8 = arith.constant 0 : index
    %4 = vector.load %arg6[%c0_7, %c0_8] : memref<16x256xf32, #tpu.memory_space<vmem>>, vector<16x256xf32>
    %c0_9 = arith.constant 0 : index
    %c0_10 = arith.constant 0 : index
    %5 = vector.load %arg7[%c0_9, %c0_10] : memref<1x256xf32, #tpu.memory_space<vmem>>, vector<1x256xf32>
    %cst = arith.constant 0.000000e+00 : f32
    %6 = vector.broadcast %cst : f32 to vector<8x19xf32>
    %c0_11 = arith.constant 0 : index
    %c0_12 = arith.constant 0 : index
    %7 = vector.load %arg11[%c0_11, %c0_12] : memref<8x362xf32, #tpu.memory_space<vmem>>, vector<8x19xf32>
    tpu.vector_store %arg11[%c0_11, %c0_12], %6 {strides = array<i32>} : memref<8x362xf32, #tpu.memory_space<vmem>>, vector<8x19xf32>,
    %c0_13 = arith.constant 0 : index
    %c343 = arith.constant 343 : index
    %8 = vector.load %arg11[%c0_13, %c343] : memref<8x362xf32, #tpu.memory_space<vmem>>, vector<8x19xf32>
    tpu.vector_store %arg11[%c0_13, %c343], %6 {strides = array<i32>} : memref<8x362xf32, #tpu.memory_space<vmem>>, vector<8x19xf32>,
    %c0_14 = arith.constant 0 : index
    %c0_15 = arith.constant 0 : index
    %c0_16 = arith.constant 0 : index
    %9 = vector.load %arg1[%c0_14, %c0_15, %c0_16] : memref<2x4x362xf32, #tpu.memory_space<vmem>>, vector<1x4x362xf32>
    %10 = vector.shape_cast %9 : vector<1x4x362xf32> to vector<4x362xf32>
    %cst_17 = arith.constant 0.000000e+00 : f32
    %11 = vector.broadcast %cst_17 : f32 to vector<8x324xf32>
    %c0_18 = arith.constant 0 : index
    %c0_19 = arith.constant 0 : index
    %c0_20 = arith.constant 0 : index
    %12 = vector.load %arg2[%c0_18, %c0_19, %c0_20] : memref<9x8x4xf32, #tpu.memory_space<vmem>>, vector<1x8x4xf32>
    %13 = vector.shape_cast %12 : vector<1x8x4xf32> to vector<8x4xf32>
    %14 = vector.extract_strided_slice %10 {offsets = [0, 0], sizes = [4, 324], strides = [1, 1]} : vector<4x362xf32> to vector<4x324xf32>
    %cst_21 = arith.constant dense<0.000000e+00> : vector<8x324xf32>
    %15 = tpu.matmul %13, %14, %cst_21 {dimension_numbers = #tpu.dot_dimension_numbers<[1], [0], [0], [1], [0, 0, 1, 1], [], []>} : vector<8x4xf32>, vector<4x324xf32>, vector<8x324xf32> -> vector<8x324xf32>
    %16 = arith.addf %11, %15 : vector<8x324xf32>
    %c1 = arith.constant 1 : index
    %c0_22 = arith.constant 0 : index
    %c0_23 = arith.constant 0 : index
    %17 = vector.load %arg2[%c1, %c0_22, %c0_23] : memref<9x8x4xf32, #tpu.memory_space<vmem>>, vector<1x8x4xf32>
    %18 = vector.shape_cast %17 : vector<1x8x4xf32> to vector<8x4xf32>
    %19 = vector.extract_strided_slice %10 {offsets = [0, 1], sizes = [4, 324], strides = [1, 1]} : vector<4x362xf32> to vector<4x324xf32>
    %cst_24 = arith.constant dense<0.000000e+00> : vector<8x324xf32>
    %20 = tpu.matmul %18, %19, %cst_24 {dimension_numbers = #tpu.dot_dimension_numbers<[1], [0], [0], [1], [0, 0, 1, 1], [], []>} : vector<8x4xf32>, vector<4x324xf32>, vector<8x324xf32> -> vector<8x324xf32>
    %21 = arith.addf %16, %20 : vector<8x324xf32>
    %c2 = arith.constant 2 : index
    %c0_25 = arith.constant 0 : index
    %c0_26 = arith.constant 0 : index
    %22 = vector.load %arg2[%c2, %c0_25, %c0_26] : memref<9x8x4xf32, #tpu.memory_space<vmem>>, vector<1x8x4xf32>
    %23 = vector.shape_cast %22 : vector<1x8x4xf32> to vector<8x4xf32>
    %24 = vector.extract_strided_slice %10 {offsets = [0, 2], sizes = [4, 324], strides = [1, 1]} : vector<4x362xf32> to vector<4x324xf32>
    %cst_27 = arith.constant dense<0.000000e+00> : vector<8x324xf32>
    %25 = tpu.matmul %23, %24, %cst_27 {dimension_numbers = #tpu.dot_dimension_numbers<[1], [0], [0], [1], [0, 0, 1, 1], [], []>} : vector<8x4xf32>, vector<4x324xf32>, vector<8x324xf32> -> vector<8x324xf32>
    %26 = arith.addf %21, %25 : vector<8x324xf32>
    %c3 = arith.constant 3 : index
    %c0_28 = arith.constant 0 : index
    %c0_29 = arith.constant 0 : index
    %27 = vector.load %arg2[%c3, %c0_28, %c0_29] : memref<9x8x4xf32, #tpu.memory_space<vmem>>, vector<1x8x4xf32>
    %28 = vector.shape_cast %27 : vector<1x8x4xf32> to vector<8x4xf32>
    %29 = vector.extract_strided_slice %10 {offsets = [0, 18], sizes = [4, 324], strides = [1, 1]} : vector<4x362xf32> to vector<4x324xf32>
    %cst_30 = arith.constant dense<0.000000e+00> : vector<8x324xf32>
    %30 = tpu.matmul %28, %29, %cst_30 {dimension_numbers = #tpu.dot_dimension_numbers<[1], [0], [0], [1], [0, 0, 1, 1], [], []>} : vector<8x4xf32>, vector<4x324xf32>, vector<8x324xf32> -> vector<8x324xf32>
    %31 = arith.addf %26, %30 : vector<8x324xf32>
    %c4 = arith.constant 4 : index
    %c0_31 = arith.constant 0 : index
    %c0_32 = arith.constant 0 : index
    %32 = vector.load %arg2[%c4, %c0_31, %c0_32] : memref<9x8x4xf32, #tpu.memory_space<vmem>>, vector<1x8x4xf32>
    %33 = vector.shape_cast %32 : vector<1x8x4xf32> to vector<8x4xf32>
    %34 = vector.extract_strided_slice %10 {offsets = [0, 19], sizes = [4, 324], strides = [1, 1]} : vector<4x362xf32> to vector<4x324xf32>
    %cst_33 = arith.constant dense<0.000000e+00> : vector<8x324xf32>
    %35 = tpu.matmul %33, %34, %cst_33 {dimension_numbers = #tpu.dot_dimension_numbers<[1], [0], [0], [1], [0, 0, 1, 1], [], []>} : vector<8x4xf32>, vector<4x324xf32>, vector<8x324xf32> -> vector<8x324xf32>
    %36 = arith.addf %31, %35 : vector<8x324xf32>
    %c5 = arith.constant 5 : index
    %c0_34 = arith.constant 0 : index
    %c0_35 = arith.constant 0 : index
    %37 = vector.load %arg2[%c5, %c0_34, %c0_35] : memref<9x8x4xf32, #tpu.memory_space<vmem>>, vector<1x8x4xf32>
    %38 = vector.shape_cast %37 : vector<1x8x4xf32> to vector<8x4xf32>
    %39 = vector.extract_strided_slice %10 {offsets = [0, 20], sizes = [4, 324], strides = [1, 1]} : vector<4x362xf32> to vector<4x324xf32>
    %cst_36 = arith.constant dense<0.000000e+00> : vector<8x324xf32>
    %40 = tpu.matmul %38, %39, %cst_36 {dimension_numbers = #tpu.dot_dimension_numbers<[1], [0], [0], [1], [0, 0, 1, 1], [], []>} : vector<8x4xf32>, vector<4x324xf32>, vector<8x324xf32> -> vector<8x324xf32>
    %41 = arith.addf %36, %40 : vector<8x324xf32>
    %c6 = arith.constant 6 : index
    %c0_37 = arith.constant 0 : index
    %c0_38 = arith.constant 0 : index
    %42 = vector.load %arg2[%c6, %c0_37, %c0_38] : memref<9x8x4xf32, #tpu.memory_space<vmem>>, vector<1x8x4xf32>
    %43 = vector.shape_cast %42 : vector<1x8x4xf32> to vector<8x4xf32>
    %44 = vector.extract_strided_slice %10 {offsets = [0, 36], sizes = [4, 324], strides = [1, 1]} : vector<4x362xf32> to vector<4x324xf32>
    %cst_39 = arith.constant dense<0.000000e+00> : vector<8x324xf32>
    %45 = tpu.matmul %43, %44, %cst_39 {dimension_numbers = #tpu.dot_dimension_numbers<[1], [0], [0], [1], [0, 0, 1, 1], [], []>} : vector<8x4xf32>, vector<4x324xf32>, vector<8x324xf32> -> vector<8x324xf32>
    %46 = arith.addf %41, %45 : vector<8x324xf32>
    %c7 = arith.constant 7 : index
    %c0_40 = arith.constant 0 : index
    %c0_41 = arith.constant 0 : index
    %47 = vector.load %arg2[%c7, %c0_40, %c0_41] : memref<9x8x4xf32, #tpu.memory_space<vmem>>, vector<1x8x4xf32>
    %48 = vector.shape_cast %47 : vector<1x8x4xf32> to vector<8x4xf32>
    %49 = vector.extract_strided_slice %10 {offsets = [0, 37], sizes = [4, 324], strides = [1, 1]} : vector<4x362xf32> to vector<4x324xf32>
    %cst_42 = arith.constant dense<0.000000e+00> : vector<8x324xf32>
    %50 = tpu.matmul %48, %49, %cst_42 {dimension_numbers = #tpu.dot_dimension_numbers<[1], [0], [0], [1], [0, 0, 1, 1], [], []>} : vector<8x4xf32>, vector<4x324xf32>, vector<8x324xf32> -> vector<8x324xf32>
    %51 = arith.addf %46, %50 : vector<8x324xf32>
    %c8 = arith.constant 8 : index
    %c0_43 = arith.constant 0 : index
    %c0_44 = arith.constant 0 : index
    %52 = vector.load %arg2[%c8, %c0_43, %c0_44] : memref<9x8x4xf32, #tpu.memory_space<vmem>>, vector<1x8x4xf32>
    %53 = vector.shape_cast %52 : vector<1x8x4xf32> to vector<8x4xf32>
    %54 = vector.extract_strided_slice %10 {offsets = [0, 38], sizes = [4, 324], strides = [1, 1]} : vector<4x362xf32> to vector<4x324xf32>
    %cst_45 = arith.constant dense<0.000000e+00> : vector<8x324xf32>
    %55 = tpu.matmul %53, %54, %cst_45 {dimension_numbers = #tpu.dot_dimension_numbers<[1], [0], [0], [1], [0, 0, 1, 1], [], []>} : vector<8x4xf32>, vector<4x324xf32>, vector<8x324xf32> -> vector<8x324xf32>
    %56 = arith.addf %51, %55 : vector<8x324xf32>
    %57 = vector.broadcast %2 : vector<8x1xf32> to vector<8x324xf32>
    %58 = arith.addf %56, %57 : vector<8x324xf32>
    %cst_46 = arith.constant 0.000000e+00 : f32
    %59 = vector.broadcast %cst_46 : f32 to vector<8x324xf32>
    %60 = arith.maximumf %58, %59 : vector<8x324xf32>
    %61 = vector.broadcast %0 : vector<1x324xf32> to vector<8x324xf32>
    %62 = arith.mulf %61, %60 : vector<8x324xf32>
    %c0_47 = arith.constant 0 : index
    %c19 = arith.constant 19 : index
    %63 = vector.load %arg11[%c0_47, %c19] : memref<8x362xf32, #tpu.memory_space<vmem>>, vector<8x324xf32>
    tpu.vector_store %arg11[%c0_47, %c19], %62 {strides = array<i32>} : memref<8x362xf32, #tpu.memory_space<vmem>>, vector<8x324xf32>,
    %c0_48 = arith.constant 0 : index
    %c0_49 = arith.constant 0 : index
    %64 = vector.load %arg11[%c0_48, %c0_49] : memref<8x362xf32, #tpu.memory_space<vmem>>, vector<8x362xf32>
    %cst_50 = arith.constant 0.000000e+00 : f32
    %65 = vector.broadcast %cst_50 : f32 to vector<16x324xf32>
    %c0_51 = arith.constant 0 : index
    %c0_52 = arith.constant 0 : index
    %c0_53 = arith.constant 0 : index
    %66 = vector.load %arg4[%c0_51, %c0_52, %c0_53] : memref<9x16x8xf32, #tpu.memory_space<vmem>>, vector<1x16x8xf32>
    %67 = vector.shape_cast %66 : vector<1x16x8xf32> to vector<16x8xf32>
    %68 = vector.extract_strided_slice %64 {offsets = [0, 0], sizes = [8, 324], strides = [1, 1]} : vector<8x362xf32> to vector<8x324xf32>
    %cst_54 = arith.constant dense<0.000000e+00> : vector<16x324xf32>
    %69 = tpu.matmul %67, %68, %cst_54 {dimension_numbers = #tpu.dot_dimension_numbers<[1], [0], [0], [1], [0, 0, 1, 1], [], []>} : vector<16x8xf32>, vector<8x324xf32>, vector<16x324xf32> -> vector<16x324xf32>
    %70 = arith.addf %65, %69 : vector<16x324xf32>
    %c1_55 = arith.constant 1 : index
    %c0_56 = arith.constant 0 : index
    %c0_57 = arith.constant 0 : index
    %71 = vector.load %arg4[%c1_55, %c0_56, %c0_57] : memref<9x16x8xf32, #tpu.memory_space<vmem>>, vector<1x16x8xf32>
    %72 = vector.shape_cast %71 : vector<1x16x8xf32> to vector<16x8xf32>
    %73 = vector.extract_strided_slice %64 {offsets = [0, 1], sizes = [8, 324], strides = [1, 1]} : vector<8x362xf32> to vector<8x324xf32>
    %cst_58 = arith.constant dense<0.000000e+00> : vector<16x324xf32>
    %74 = tpu.matmul %72, %73, %cst_58 {dimension_numbers = #tpu.dot_dimension_numbers<[1], [0], [0], [1], [0, 0, 1, 1], [], []>} : vector<16x8xf32>, vector<8x324xf32>, vector<16x324xf32> -> vector<16x324xf32>
    %75 = arith.addf %70, %74 : vector<16x324xf32>
    %c2_59 = arith.constant 2 : index
    %c0_60 = arith.constant 0 : index
    %c0_61 = arith.constant 0 : index
    %76 = vector.load %arg4[%c2_59, %c0_60, %c0_61] : memref<9x16x8xf32, #tpu.memory_space<vmem>>, vector<1x16x8xf32>
    %77 = vector.shape_cast %76 : vector<1x16x8xf32> to vector<16x8xf32>
    %78 = vector.extract_strided_slice %64 {offsets = [0, 2], sizes = [8, 324], strides = [1, 1]} : vector<8x362xf32> to vector<8x324xf32>
    %cst_62 = arith.constant dense<0.000000e+00> : vector<16x324xf32>
    %79 = tpu.matmul %77, %78, %cst_62 {dimension_numbers = #tpu.dot_dimension_numbers<[1], [0], [0], [1], [0, 0, 1, 1], [], []>} : vector<16x8xf32>, vector<8x324xf32>, vector<16x324xf32> -> vector<16x324xf32>
    %80 = arith.addf %75, %79 : vector<16x324xf32>
    %c3_63 = arith.constant 3 : index
    %c0_64 = arith.constant 0 : index
    %c0_65 = arith.constant 0 : index
    %81 = vector.load %arg4[%c3_63, %c0_64, %c0_65] : memref<9x16x8xf32, #tpu.memory_space<vmem>>, vector<1x16x8xf32>
    %82 = vector.shape_cast %81 : vector<1x16x8xf32> to vector<16x8xf32>
    %83 = vector.extract_strided_slice %64 {offsets = [0, 18], sizes = [8, 324], strides = [1, 1]} : vector<8x362xf32> to vector<8x324xf32>
    %cst_66 = arith.constant dense<0.000000e+00> : vector<16x324xf32>
    %84 = tpu.matmul %82, %83, %cst_66 {dimension_numbers = #tpu.dot_dimension_numbers<[1], [0], [0], [1], [0, 0, 1, 1], [], []>} : vector<16x8xf32>, vector<8x324xf32>, vector<16x324xf32> -> vector<16x324xf32>
    %85 = arith.addf %80, %84 : vector<16x324xf32>
    %c4_67 = arith.constant 4 : index
    %c0_68 = arith.constant 0 : index
    %c0_69 = arith.constant 0 : index
    %86 = vector.load %arg4[%c4_67, %c0_68, %c0_69] : memref<9x16x8xf32, #tpu.memory_space<vmem>>, vector<1x16x8xf32>
    %87 = vector.shape_cast %86 : vector<1x16x8xf32> to vector<16x8xf32>
    %88 = vector.extract_strided_slice %64 {offsets = [0, 19], sizes = [8, 324], strides = [1, 1]} : vector<8x362xf32> to vector<8x324xf32>
    %cst_70 = arith.constant dense<0.000000e+00> : vector<16x324xf32>
    %89 = tpu.matmul %87, %88, %cst_70 {dimension_numbers = #tpu.dot_dimension_numbers<[1], [0], [0], [1], [0, 0, 1, 1], [], []>} : vector<16x8xf32>, vector<8x324xf32>, vector<16x324xf32> -> vector<16x324xf32>
    %90 = arith.addf %85, %89 : vector<16x324xf32>
    %c5_71 = arith.constant 5 : index
    %c0_72 = arith.constant 0 : index
    %c0_73 = arith.constant 0 : index
    %91 = vector.load %arg4[%c5_71, %c0_72, %c0_73] : memref<9x16x8xf32, #tpu.memory_space<vmem>>, vector<1x16x8xf32>
    %92 = vector.shape_cast %91 : vector<1x16x8xf32> to vector<16x8xf32>
    %93 = vector.extract_strided_slice %64 {offsets = [0, 20], sizes = [8, 324], strides = [1, 1]} : vector<8x362xf32> to vector<8x324xf32>
    %cst_74 = arith.constant dense<0.000000e+00> : vector<16x324xf32>
    %94 = tpu.matmul %92, %93, %cst_74 {dimension_numbers = #tpu.dot_dimension_numbers<[1], [0], [0], [1], [0, 0, 1, 1], [], []>} : vector<16x8xf32>, vector<8x324xf32>, vector<16x324xf32> -> vector<16x324xf32>
    %95 = arith.addf %90, %94 : vector<16x324xf32>
    %c6_75 = arith.constant 6 : index
    %c0_76 = arith.constant 0 : index
    %c0_77 = arith.constant 0 : index
    %96 = vector.load %arg4[%c6_75, %c0_76, %c0_77] : memref<9x16x8xf32, #tpu.memory_space<vmem>>, vector<1x16x8xf32>
    %97 = vector.shape_cast %96 : vector<1x16x8xf32> to vector<16x8xf32>
    %98 = vector.extract_strided_slice %64 {offsets = [0, 36], sizes = [8, 324], strides = [1, 1]} : vector<8x362xf32> to vector<8x324xf32>
    %cst_78 = arith.constant dense<0.000000e+00> : vector<16x324xf32>
    %99 = tpu.matmul %97, %98, %cst_78 {dimension_numbers = #tpu.dot_dimension_numbers<[1], [0], [0], [1], [0, 0, 1, 1], [], []>} : vector<16x8xf32>, vector<8x324xf32>, vector<16x324xf32> -> vector<16x324xf32>
    %100 = arith.addf %95, %99 : vector<16x324xf32>
    %c7_79 = arith.constant 7 : index
    %c0_80 = arith.constant 0 : index
    %c0_81 = arith.constant 0 : index
    %101 = vector.load %arg4[%c7_79, %c0_80, %c0_81] : memref<9x16x8xf32, #tpu.memory_space<vmem>>, vector<1x16x8xf32>
    %102 = vector.shape_cast %101 : vector<1x16x8xf32> to vector<16x8xf32>
    %103 = vector.extract_strided_slice %64 {offsets = [0, 37], sizes = [8, 324], strides = [1, 1]} : vector<8x362xf32> to vector<8x324xf32>
    %cst_82 = arith.constant dense<0.000000e+00> : vector<16x324xf32>
    %104 = tpu.matmul %102, %103, %cst_82 {dimension_numbers = #tpu.dot_dimension_numbers<[1], [0], [0], [1], [0, 0, 1, 1], [], []>} : vector<16x8xf32>, vector<8x324xf32>, vector<16x324xf32> -> vector<16x324xf32>
    %105 = arith.addf %100, %104 : vector<16x324xf32>
    %c8_83 = arith.constant 8 : index
    %c0_84 = arith.constant 0 : index
    %c0_85 = arith.constant 0 : index
    %106 = vector.load %arg4[%c8_83, %c0_84, %c0_85] : memref<9x16x8xf32, #tpu.memory_space<vmem>>, vector<1x16x8xf32>
    %107 = vector.shape_cast %106 : vector<1x16x8xf32> to vector<16x8xf32>
    %108 = vector.extract_strided_slice %64 {offsets = [0, 38], sizes = [8, 324], strides = [1, 1]} : vector<8x362xf32> to vector<8x324xf32>
    %cst_86 = arith.constant dense<0.000000e+00> : vector<16x324xf32>
    %109 = tpu.matmul %107, %108, %cst_86 {dimension_numbers = #tpu.dot_dimension_numbers<[1], [0], [0], [1], [0, 0, 1, 1], [], []>} : vector<16x8xf32>, vector<8x324xf32>, vector<16x324xf32> -> vector<16x324xf32>
    %110 = arith.addf %105, %109 : vector<16x324xf32>
    %111 = vector.broadcast %3 : vector<16x1xf32> to vector<16x324xf32>
    %112 = arith.addf %110, %111 : vector<16x324xf32>
    %cst_87 = arith.constant 0.000000e+00 : f32
    %113 = vector.broadcast %cst_87 : f32 to vector<16x324xf32>
    %114 = arith.maximumf %112, %113 : vector<16x324xf32>
    %115 = vector.broadcast %1 : vector<1x324xf32> to vector<16x324xf32>
    %116 = arith.mulf %114, %115 : vector<16x324xf32>
    %cst_88 = arith.constant dense<0.000000e+00> : vector<16xf32>
    %117 = vector.multi_reduction <add>, %116, %cst_88 [1] : vector<16x324xf32> to vector<16xf32>
    %118 = vector.shape_cast %117 : vector<16xf32> to vector<16x1xf32>
    %119 = vector.broadcast %118 : vector<16x1xf32> to vector<16x256xf32>
    %120 = arith.mulf %119, %4 : vector<16x256xf32>
    %cst_89 = arith.constant dense<0.000000e+00> : vector<256xf32>
    %121 = vector.multi_reduction <add>, %120, %cst_89 [0] : vector<16x256xf32> to vector<256xf32>
    %122 = vector.shape_cast %121 : vector<256xf32> to vector<1x256xf32>
    %123 = arith.addf %122, %5 : vector<1x256xf32>
    %c0_90 = arith.constant 0 : index
    %c0_91 = arith.constant 0 : index
    %124 = vector.load %arg10[%c0_90, %c0_91] : memref<2x256xf32, #tpu.memory_space<vmem>>, vector<1x256xf32>
    tpu.vector_store %arg10[%c0_90, %c0_91], %123 {strides = array<i32>} : memref<2x256xf32, #tpu.memory_space<vmem>>, vector<1x256xf32>,
    %c1_92 = arith.constant 1 : index
    %c0_93 = arith.constant 0 : index
    %c0_94 = arith.constant 0 : index
    %125 = vector.load %arg1[%c1_92, %c0_93, %c0_94] : memref<2x4x362xf32, #tpu.memory_space<vmem>>, vector<1x4x362xf32>
    %126 = vector.shape_cast %125 : vector<1x4x362xf32> to vector<4x362xf32>
    %cst_95 = arith.constant 0.000000e+00 : f32
    %127 = vector.broadcast %cst_95 : f32 to vector<8x324xf32>
    %c0_96 = arith.constant 0 : index
    %c0_97 = arith.constant 0 : index
    %c0_98 = arith.constant 0 : index
    %128 = vector.load %arg2[%c0_96, %c0_97, %c0_98] : memref<9x8x4xf32, #tpu.memory_space<vmem>>, vector<1x8x4xf32>
    %129 = vector.shape_cast %128 : vector<1x8x4xf32> to vector<8x4xf32>
    %130 = vector.extract_strided_slice %126 {offsets = [0, 0], sizes = [4, 324], strides = [1, 1]} : vector<4x362xf32> to vector<4x324xf32>
    %cst_99 = arith.constant dense<0.000000e+00> : vector<8x324xf32>
    %131 = tpu.matmul %129, %130, %cst_99 {dimension_numbers = #tpu.dot_dimension_numbers<[1], [0], [0], [1], [0, 0, 1, 1], [], []>} : vector<8x4xf32>, vector<4x324xf32>, vector<8x324xf32> -> vector<8x324xf32>
    %132 = arith.addf %127, %131 : vector<8x324xf32>
    %c1_100 = arith.constant 1 : index
    %c0_101 = arith.constant 0 : index
    %c0_102 = arith.constant 0 : index
    %133 = vector.load %arg2[%c1_100, %c0_101, %c0_102] : memref<9x8x4xf32, #tpu.memory_space<vmem>>, vector<1x8x4xf32>
    %134 = vector.shape_cast %133 : vector<1x8x4xf32> to vector<8x4xf32>
    %135 = vector.extract_strided_slice %126 {offsets = [0, 1], sizes = [4, 324], strides = [1, 1]} : vector<4x362xf32> to vector<4x324xf32>
    %cst_103 = arith.constant dense<0.000000e+00> : vector<8x324xf32>
    %136 = tpu.matmul %134, %135, %cst_103 {dimension_numbers = #tpu.dot_dimension_numbers<[1], [0], [0], [1], [0, 0, 1, 1], [], []>} : vector<8x4xf32>, vector<4x324xf32>, vector<8x324xf32> -> vector<8x324xf32>
    %137 = arith.addf %132, %136 : vector<8x324xf32>
    %c2_104 = arith.constant 2 : index
    %c0_105 = arith.constant 0 : index
    %c0_106 = arith.constant 0 : index
    %138 = vector.load %arg2[%c2_104, %c0_105, %c0_106] : memref<9x8x4xf32, #tpu.memory_space<vmem>>, vector<1x8x4xf32>
    %139 = vector.shape_cast %138 : vector<1x8x4xf32> to vector<8x4xf32>
    %140 = vector.extract_strided_slice %126 {offsets = [0, 2], sizes = [4, 324], strides = [1, 1]} : vector<4x362xf32> to vector<4x324xf32>
    %cst_107 = arith.constant dense<0.000000e+00> : vector<8x324xf32>
    %141 = tpu.matmul %139, %140, %cst_107 {dimension_numbers = #tpu.dot_dimension_numbers<[1], [0], [0], [1], [0, 0, 1, 1], [], []>} : vector<8x4xf32>, vector<4x324xf32>, vector<8x324xf32> -> vector<8x324xf32>
    %142 = arith.addf %137, %141 : vector<8x324xf32>
    %c3_108 = arith.constant 3 : index
    %c0_109 = arith.constant 0 : index
    %c0_110 = arith.constant 0 : index
    %143 = vector.load %arg2[%c3_108, %c0_109, %c0_110] : memref<9x8x4xf32, #tpu.memory_space<vmem>>, vector<1x8x4xf32>
    %144 = vector.shape_cast %143 : vector<1x8x4xf32> to vector<8x4xf32>
    %145 = vector.extract_strided_slice %126 {offsets = [0, 18], sizes = [4, 324], strides = [1, 1]} : vector<4x362xf32> to vector<4x324xf32>
    %cst_111 = arith.constant dense<0.000000e+00> : vector<8x324xf32>
    %146 = tpu.matmul %144, %145, %cst_111 {dimension_numbers = #tpu.dot_dimension_numbers<[1], [0], [0], [1], [0, 0, 1, 1], [], []>} : vector<8x4xf32>, vector<4x324xf32>, vector<8x324xf32> -> vector<8x324xf32>
    %147 = arith.addf %142, %146 : vector<8x324xf32>
    %c4_112 = arith.constant 4 : index
    %c0_113 = arith.constant 0 : index
    %c0_114 = arith.constant 0 : index
    %148 = vector.load %arg2[%c4_112, %c0_113, %c0_114] : memref<9x8x4xf32, #tpu.memory_space<vmem>>, vector<1x8x4xf32>
    %149 = vector.shape_cast %148 : vector<1x8x4xf32> to vector<8x4xf32>
    %150 = vector.extract_strided_slice %126 {offsets = [0, 19], sizes = [4, 324], strides = [1, 1]} : vector<4x362xf32> to vector<4x324xf32>
    %cst_115 = arith.constant dense<0.000000e+00> : vector<8x324xf32>
    %151 = tpu.matmul %149, %150, %cst_115 {dimension_numbers = #tpu.dot_dimension_numbers<[1], [0], [0], [1], [0, 0, 1, 1], [], []>} : vector<8x4xf32>, vector<4x324xf32>, vector<8x324xf32> -> vector<8x324xf32>
    %152 = arith.addf %147, %151 : vector<8x324xf32>
    %c5_116 = arith.constant 5 : index
    %c0_117 = arith.constant 0 : index
    %c0_118 = arith.constant 0 : index
    %153 = vector.load %arg2[%c5_116, %c0_117, %c0_118] : memref<9x8x4xf32, #tpu.memory_space<vmem>>, vector<1x8x4xf32>
    %154 = vector.shape_cast %153 : vector<1x8x4xf32> to vector<8x4xf32>
    %155 = vector.extract_strided_slice %126 {offsets = [0, 20], sizes = [4, 324], strides = [1, 1]} : vector<4x362xf32> to vector<4x324xf32>
    %cst_119 = arith.constant dense<0.000000e+00> : vector<8x324xf32>
    %156 = tpu.matmul %154, %155, %cst_119 {dimension_numbers = #tpu.dot_dimension_numbers<[1], [0], [0], [1], [0, 0, 1, 1], [], []>} : vector<8x4xf32>, vector<4x324xf32>, vector<8x324xf32> -> vector<8x324xf32>
    %157 = arith.addf %152, %156 : vector<8x324xf32>
    %c6_120 = arith.constant 6 : index
    %c0_121 = arith.constant 0 : index
    %c0_122 = arith.constant 0 : index
    %158 = vector.load %arg2[%c6_120, %c0_121, %c0_122] : memref<9x8x4xf32, #tpu.memory_space<vmem>>, vector<1x8x4xf32>
    %159 = vector.shape_cast %158 : vector<1x8x4xf32> to vector<8x4xf32>
    %160 = vector.extract_strided_slice %126 {offsets = [0, 36], sizes = [4, 324], strides = [1, 1]} : vector<4x362xf32> to vector<4x324xf32>
    %cst_123 = arith.constant dense<0.000000e+00> : vector<8x324xf32>
    %161 = tpu.matmul %159, %160, %cst_123 {dimension_numbers = #tpu.dot_dimension_numbers<[1], [0], [0], [1], [0, 0, 1, 1], [], []>} : vector<8x4xf32>, vector<4x324xf32>, vector<8x324xf32> -> vector<8x324xf32>
    %162 = arith.addf %157, %161 : vector<8x324xf32>
    %c7_124 = arith.constant 7 : index
    %c0_125 = arith.constant 0 : index
    %c0_126 = arith.constant 0 : index
    %163 = vector.load %arg2[%c7_124, %c0_125, %c0_126] : memref<9x8x4xf32, #tpu.memory_space<vmem>>, vector<1x8x4xf32>
    %164 = vector.shape_cast %163 : vector<1x8x4xf32> to vector<8x4xf32>
    %165 = vector.extract_strided_slice %126 {offsets = [0, 37], sizes = [4, 324], strides = [1, 1]} : vector<4x362xf32> to vector<4x324xf32>
    %cst_127 = arith.constant dense<0.000000e+00> : vector<8x324xf32>
    %166 = tpu.matmul %164, %165, %cst_127 {dimension_numbers = #tpu.dot_dimension_numbers<[1], [0], [0], [1], [0, 0, 1, 1], [], []>} : vector<8x4xf32>, vector<4x324xf32>, vector<8x324xf32> -> vector<8x324xf32>
    %167 = arith.addf %162, %166 : vector<8x324xf32>
    %c8_128 = arith.constant 8 : index
    %c0_129 = arith.constant 0 : index
    %c0_130 = arith.constant 0 : index
    %168 = vector.load %arg2[%c8_128, %c0_129, %c0_130] : memref<9x8x4xf32, #tpu.memory_space<vmem>>, vector<1x8x4xf32>
    %169 = vector.shape_cast %168 : vector<1x8x4xf32> to vector<8x4xf32>
    %170 = vector.extract_strided_slice %126 {offsets = [0, 38], sizes = [4, 324], strides = [1, 1]} : vector<4x362xf32> to vector<4x324xf32>
    %cst_131 = arith.constant dense<0.000000e+00> : vector<8x324xf32>
    %171 = tpu.matmul %169, %170, %cst_131 {dimension_numbers = #tpu.dot_dimension_numbers<[1], [0], [0], [1], [0, 0, 1, 1], [], []>} : vector<8x4xf32>, vector<4x324xf32>, vector<8x324xf32> -> vector<8x324xf32>
    %172 = arith.addf %167, %171 : vector<8x324xf32>
    %173 = vector.broadcast %2 : vector<8x1xf32> to vector<8x324xf32>
    %174 = arith.addf %172, %173 : vector<8x324xf32>
    %cst_132 = arith.constant 0.000000e+00 : f32
    %175 = vector.broadcast %cst_132 : f32 to vector<8x324xf32>
    %176 = arith.maximumf %174, %175 : vector<8x324xf32>
    %177 = vector.broadcast %0 : vector<1x324xf32> to vector<8x324xf32>
    %178 = arith.mulf %177, %176 : vector<8x324xf32>
    %c0_133 = arith.constant 0 : index
    %c19_134 = arith.constant 19 : index
    %179 = vector.load %arg11[%c0_133, %c19_134] : memref<8x362xf32, #tpu.memory_space<vmem>>, vector<8x324xf32>
    tpu.vector_store %arg11[%c0_133, %c19_134], %178 {strides = array<i32>} : memref<8x362xf32, #tpu.memory_space<vmem>>, vector<8x324xf32>,
    %c0_135 = arith.constant 0 : index
    %c0_136 = arith.constant 0 : index
    %180 = vector.load %arg11[%c0_135, %c0_136] : memref<8x362xf32, #tpu.memory_space<vmem>>, vector<8x362xf32>
    %cst_137 = arith.constant 0.000000e+00 : f32
    %181 = vector.broadcast %cst_137 : f32 to vector<16x324xf32>
    %c0_138 = arith.constant 0 : index
    %c0_139 = arith.constant 0 : index
    %c0_140 = arith.constant 0 : index
    %182 = vector.load %arg4[%c0_138, %c0_139, %c0_140] : memref<9x16x8xf32, #tpu.memory_space<vmem>>, vector<1x16x8xf32>
    %183 = vector.shape_cast %182 : vector<1x16x8xf32> to vector<16x8xf32>
    %184 = vector.extract_strided_slice %180 {offsets = [0, 0], sizes = [8, 324], strides = [1, 1]} : vector<8x362xf32> to vector<8x324xf32>
    %cst_141 = arith.constant dense<0.000000e+00> : vector<16x324xf32>
    %185 = tpu.matmul %183, %184, %cst_141 {dimension_numbers = #tpu.dot_dimension_numbers<[1], [0], [0], [1], [0, 0, 1, 1], [], []>} : vector<16x8xf32>, vector<8x324xf32>, vector<16x324xf32> -> vector<16x324xf32>
    %186 = arith.addf %181, %185 : vector<16x324xf32>
    %c1_142 = arith.constant 1 : index
    %c0_143 = arith.constant 0 : index
    %c0_144 = arith.constant 0 : index
    %187 = vector.load %arg4[%c1_142, %c0_143, %c0_144] : memref<9x16x8xf32, #tpu.memory_space<vmem>>, vector<1x16x8xf32>
    %188 = vector.shape_cast %187 : vector<1x16x8xf32> to vector<16x8xf32>
    %189 = vector.extract_strided_slice %180 {offsets = [0, 1], sizes = [8, 324], strides = [1, 1]} : vector<8x362xf32> to vector<8x324xf32>
    %cst_145 = arith.constant dense<0.000000e+00> : vector<16x324xf32>
    %190 = tpu.matmul %188, %189, %cst_145 {dimension_numbers = #tpu.dot_dimension_numbers<[1], [0], [0], [1], [0, 0, 1, 1], [], []>} : vector<16x8xf32>, vector<8x324xf32>, vector<16x324xf32> -> vector<16x324xf32>
    %191 = arith.addf %186, %190 : vector<16x324xf32>
    %c2_146 = arith.constant 2 : index
    %c0_147 = arith.constant 0 : index
    %c0_148 = arith.constant 0 : index
    %192 = vector.load %arg4[%c2_146, %c0_147, %c0_148] : memref<9x16x8xf32, #tpu.memory_space<vmem>>, vector<1x16x8xf32>
    %193 = vector.shape_cast %192 : vector<1x16x8xf32> to vector<16x8xf32>
    %194 = vector.extract_strided_slice %180 {offsets = [0, 2], sizes = [8, 324], strides = [1, 1]} : vector<8x362xf32> to vector<8x324xf32>
    %cst_149 = arith.constant dense<0.000000e+00> : vector<16x324xf32>
    %195 = tpu.matmul %193, %194, %cst_149 {dimension_numbers = #tpu.dot_dimension_numbers<[1], [0], [0], [1], [0, 0, 1, 1], [], []>} : vector<16x8xf32>, vector<8x324xf32>, vector<16x324xf32> -> vector<16x324xf32>
    %196 = arith.addf %191, %195 : vector<16x324xf32>
    %c3_150 = arith.constant 3 : index
    %c0_151 = arith.constant 0 : index
    %c0_152 = arith.constant 0 : index
    %197 = vector.load %arg4[%c3_150, %c0_151, %c0_152] : memref<9x16x8xf32, #tpu.memory_space<vmem>>, vector<1x16x8xf32>
    %198 = vector.shape_cast %197 : vector<1x16x8xf32> to vector<16x8xf32>
    %199 = vector.extract_strided_slice %180 {offsets = [0, 18], sizes = [8, 324], strides = [1, 1]} : vector<8x362xf32> to vector<8x324xf32>
    %cst_153 = arith.constant dense<0.000000e+00> : vector<16x324xf32>
    %200 = tpu.matmul %198, %199, %cst_153 {dimension_numbers = #tpu.dot_dimension_numbers<[1], [0], [0], [1], [0, 0, 1, 1], [], []>} : vector<16x8xf32>, vector<8x324xf32>, vector<16x324xf32> -> vector<16x324xf32>
    %201 = arith.addf %196, %200 : vector<16x324xf32>
    %c4_154 = arith.constant 4 : index
    %c0_155 = arith.constant 0 : index
    %c0_156 = arith.constant 0 : index
    %202 = vector.load %arg4[%c4_154, %c0_155, %c0_156] : memref<9x16x8xf32, #tpu.memory_space<vmem>>, vector<1x16x8xf32>
    %203 = vector.shape_cast %202 : vector<1x16x8xf32> to vector<16x8xf32>
    %204 = vector.extract_strided_slice %180 {offsets = [0, 19], sizes = [8, 324], strides = [1, 1]} : vector<8x362xf32> to vector<8x324xf32>
    %cst_157 = arith.constant dense<0.000000e+00> : vector<16x324xf32>
    %205 = tpu.matmul %203, %204, %cst_157 {dimension_numbers = #tpu.dot_dimension_numbers<[1], [0], [0], [1], [0, 0, 1, 1], [], []>} : vector<16x8xf32>, vector<8x324xf32>, vector<16x324xf32> -> vector<16x324xf32>
    %206 = arith.addf %201, %205 : vector<16x324xf32>
    %c5_158 = arith.constant 5 : index
    %c0_159 = arith.constant 0 : index
    %c0_160 = arith.constant 0 : index
    %207 = vector.load %arg4[%c5_158, %c0_159, %c0_160] : memref<9x16x8xf32, #tpu.memory_space<vmem>>, vector<1x16x8xf32>
    %208 = vector.shape_cast %207 : vector<1x16x8xf32> to vector<16x8xf32>
    %209 = vector.extract_strided_slice %180 {offsets = [0, 20], sizes = [8, 324], strides = [1, 1]} : vector<8x362xf32> to vector<8x324xf32>
    %cst_161 = arith.constant dense<0.000000e+00> : vector<16x324xf32>
    %210 = tpu.matmul %208, %209, %cst_161 {dimension_numbers = #tpu.dot_dimension_numbers<[1], [0], [0], [1], [0, 0, 1, 1], [], []>} : vector<16x8xf32>, vector<8x324xf32>, vector<16x324xf32> -> vector<16x324xf32>
    %211 = arith.addf %206, %210 : vector<16x324xf32>
    %c6_162 = arith.constant 6 : index
    %c0_163 = arith.constant 0 : index
    %c0_164 = arith.constant 0 : index
    %212 = vector.load %arg4[%c6_162, %c0_163, %c0_164] : memref<9x16x8xf32, #tpu.memory_space<vmem>>, vector<1x16x8xf32>
    %213 = vector.shape_cast %212 : vector<1x16x8xf32> to vector<16x8xf32>
    %214 = vector.extract_strided_slice %180 {offsets = [0, 36], sizes = [8, 324], strides = [1, 1]} : vector<8x362xf32> to vector<8x324xf32>
    %cst_165 = arith.constant dense<0.000000e+00> : vector<16x324xf32>
    %215 = tpu.matmul %213, %214, %cst_165 {dimension_numbers = #tpu.dot_dimension_numbers<[1], [0], [0], [1], [0, 0, 1, 1], [], []>} : vector<16x8xf32>, vector<8x324xf32>, vector<16x324xf32> -> vector<16x324xf32>
    %216 = arith.addf %211, %215 : vector<16x324xf32>
    %c7_166 = arith.constant 7 : index
    %c0_167 = arith.constant 0 : index
    %c0_168 = arith.constant 0 : index
    %217 = vector.load %arg4[%c7_166, %c0_167, %c0_168] : memref<9x16x8xf32, #tpu.memory_space<vmem>>, vector<1x16x8xf32>
    %218 = vector.shape_cast %217 : vector<1x16x8xf32> to vector<16x8xf32>
    %219 = vector.extract_strided_slice %180 {offsets = [0, 37], sizes = [8, 324], strides = [1, 1]} : vector<8x362xf32> to vector<8x324xf32>
    %cst_169 = arith.constant dense<0.000000e+00> : vector<16x324xf32>
    %220 = tpu.matmul %218, %219, %cst_169 {dimension_numbers = #tpu.dot_dimension_numbers<[1], [0], [0], [1], [0, 0, 1, 1], [], []>} : vector<16x8xf32>, vector<8x324xf32>, vector<16x324xf32> -> vector<16x324xf32>
    %221 = arith.addf %216, %220 : vector<16x324xf32>
    %c8_170 = arith.constant 8 : index
    %c0_171 = arith.constant 0 : index
    %c0_172 = arith.constant 0 : index
    %222 = vector.load %arg4[%c8_170, %c0_171, %c0_172] : memref<9x16x8xf32, #tpu.memory_space<vmem>>, vector<1x16x8xf32>
    %223 = vector.shape_cast %222 : vector<1x16x8xf32> to vector<16x8xf32>
    %224 = vector.extract_strided_slice %180 {offsets = [0, 38], sizes = [8, 324], strides = [1, 1]} : vector<8x362xf32> to vector<8x324xf32>
    %cst_173 = arith.constant dense<0.000000e+00> : vector<16x324xf32>
    %225 = tpu.matmul %223, %224, %cst_173 {dimension_numbers = #tpu.dot_dimension_numbers<[1], [0], [0], [1], [0, 0, 1, 1], [], []>} : vector<16x8xf32>, vector<8x324xf32>, vector<16x324xf32> -> vector<16x324xf32>
    %226 = arith.addf %221, %225 : vector<16x324xf32>
    %227 = vector.broadcast %3 : vector<16x1xf32> to vector<16x324xf32>
    %228 = arith.addf %226, %227 : vector<16x324xf32>
    %cst_174 = arith.constant 0.000000e+00 : f32
    %229 = vector.broadcast %cst_174 : f32 to vector<16x324xf32>
    %230 = arith.maximumf %228, %229 : vector<16x324xf32>
    %231 = vector.broadcast %1 : vector<1x324xf32> to vector<16x324xf32>
    %232 = arith.mulf %230, %231 : vector<16x324xf32>
    %cst_175 = arith.constant dense<0.000000e+00> : vector<16xf32>
    %233 = vector.multi_reduction <add>, %232, %cst_175 [1] : vector<16x324xf32> to vector<16xf32>
    %234 = vector.shape_cast %233 : vector<16xf32> to vector<16x1xf32>
    %235 = vector.broadcast %234 : vector<16x1xf32> to vector<16x256xf32>
    %236 = arith.mulf %235, %4 : vector<16x256xf32>
    %cst_176 = arith.constant dense<0.000000e+00> : vector<256xf32>
    %237 = vector.multi_reduction <add>, %236, %cst_176 [0] : vector<16x256xf32> to vector<256xf32>
    %238 = vector.shape_cast %237 : vector<256xf32> to vector<1x256xf32>
    %239 = arith.addf %238, %5 : vector<1x256xf32>
    %c1_177 = arith.constant 1 : index
    %c0_178 = arith.constant 0 : index
    %240 = vector.load %arg10[%c1_177, %c0_178] : memref<2x256xf32, #tpu.memory_space<vmem>>, vector<1x256xf32>
    tpu.vector_store %arg10[%c1_177, %c0_178], %239 {strides = array<i32>} : memref<2x256xf32, #tpu.memory_space<vmem>>, vector<1x256xf32>,
    return
  }
  func.func @transform_0(%arg0: i32) -> (i32, i32, i32) {
    %c0_i32 = arith.constant 0 : i32
    %c0_i32_0 = arith.constant 0 : i32
    %c0_i32_1 = arith.constant 0 : i32
    return %arg0, %c0_i32, %c0_i32_0 : i32, i32, i32
  }
  func.func @transform_1(%arg0: i32) -> (i32, i32, i32) {
    %c0_i32 = arith.constant 0 : i32
    %c0_i32_0 = arith.constant 0 : i32
    %c0_i32_1 = arith.constant 0 : i32
    %c0_i32_2 = arith.constant 0 : i32
    return %c0_i32, %c0_i32_0, %c0_i32_1 : i32, i32, i32
  }
  func.func @transform_2(%arg0: i32) -> (i32, i32) {
    %c0_i32 = arith.constant 0 : i32
    %c0_i32_0 = arith.constant 0 : i32
    %c0_i32_1 = arith.constant 0 : i32
    return %c0_i32, %c0_i32_0 : i32, i32
  }
  func.func @transform_3(%arg0: i32) -> (i32, i32, i32) {
    %c0_i32 = arith.constant 0 : i32
    %c0_i32_0 = arith.constant 0 : i32
    %c0_i32_1 = arith.constant 0 : i32
    %c0_i32_2 = arith.constant 0 : i32
    return %c0_i32, %c0_i32_0, %c0_i32_1 : i32, i32, i32
  }
  func.func @transform_4(%arg0: i32) -> (i32, i32) {
    %c0_i32 = arith.constant 0 : i32
    %c0_i32_0 = arith.constant 0 : i32
    %c0_i32_1 = arith.constant 0 : i32
    return %c0_i32, %c0_i32_0 : i32, i32
  }
  func.func @transform_5(%arg0: i32) -> (i32, i32) {
    %c0_i32 = arith.constant 0 : i32
    %c0_i32_0 = arith.constant 0 : i32
    %c0_i32_1 = arith.constant 0 : i32
    return %c0_i32, %c0_i32_0 : i32, i32
  }
  func.func @transform_6(%arg0: i32) -> (i32, i32) {
    %c0_i32 = arith.constant 0 : i32
    %c0_i32_0 = arith.constant 0 : i32
    %c0_i32_1 = arith.constant 0 : i32
    return %c0_i32, %c0_i32_0 : i32, i32
  }
  func.func @transform_7(%arg0: i32) -> (i32, i32) {
    %c0_i32 = arith.constant 0 : i32
    %c0_i32_0 = arith.constant 0 : i32
    %c0_i32_1 = arith.constant 0 : i32
    return %c0_i32, %c0_i32_0 : i32, i32
  }
  func.func @transform_8(%arg0: i32) -> (i32, i32) {
    %c0_i32 = arith.constant 0 : i32
    %c0_i32_0 = arith.constant 0 : i32
    %c0_i32_1 = arith.constant 0 : i32
    return %c0_i32, %c0_i32_0 : i32, i32
  }
  func.func @transform_9(%arg0: i32) -> (i32, i32) {
    %c0_i32 = arith.constant 0 : i32
    %c0_i32_0 = arith.constant 0 : i32
    return %arg0, %c0_i32 : i32, i32
  }
}

</mosaic_0001>

<llo_original>
// kernel: state_encoder_forward.1
$region0: #{state_encoder_forward.1}
  #allocation0 [shape = 'u32[]', space=smem, size = 0x4, offset = 0x4, fixed_abs, tag = 'smem constant byte address 0x4 - core index']
  #allocation1 [shape = 'u32[72,128]{1,0:T(1,128)}', space=vmem, size = 0x9000, scoped, tag = 'internal scratch']
  #allocation2 [shape = 'f32[8,362]{1,0:T(8,128)}', space=vmem, size = 0x3000, scoped, tag = 'scratch operand']
  %s0 = inlined_call_operand.vmem [shape: f32[2,4,362], index: 0, kind: input, shape index: {}]
  %s1 = inlined_call_operand.vmem [shape: f32[9,8,4], index: 1, kind: input, shape index: {}]
  %s2 = inlined_call_operand.vmem [shape: f32[8,1], index: 2, kind: input, shape index: {}]
  %s3 = inlined_call_operand.vmem [shape: f32[9,16,8], index: 3, kind: input, shape index: {}]
  %s4 = inlined_call_operand.vmem [shape: f32[16,1], index: 4, kind: input, shape index: {}]
  %s5 = inlined_call_operand.vmem [shape: f32[16,256], index: 5, kind: input, shape index: {}]
  %s6 = inlined_call_operand.vmem [shape: f32[1,256], index: 6, kind: input, shape index: {}]
  %s7 = inlined_call_operand.vmem [shape: f32[1,324], index: 7, kind: input, shape index: {}]
  %s8 = inlined_call_operand.vmem [shape: f32[1,324], index: 8, kind: input, shape index: {}]
  %s9 = inlined_call_operand.hbm [shape: f32[2,256], index: 9, kind: output, shape index: {}]
  %s10 = sld [smem:[#allocation0]]
  $region46: #{state_encoder_forward.1} parent=0
    _
  %s12 = ssub.s32 1, %s10
  %s13 = scalar_select 0, %s12, %s10
  $region1: #{state_encoder_forward.1} parent=0
    #allocation3 [shape = 'u8[2048]{0}', space=vmem, size = 0x800, scoped, tag = 'output window, operand 0, single buffered']
    #allocation4 [shape = 's32[1]{0}', space=sflag, size = 0x4, scoped, tag = 'scoped memory for state_encoder_forward.1']
    %14 = vsyncpa [#allocation4], 0
    // Predicated region
    $region2: #{state_encoder_forward.1} parent=1 // pred_check
      _
    $region3: #{state_encoder_forward.1} parent=1 // pred_check_branch
      %16 = sbr.rel (0) target = $region5
    $region4: #{state_encoder_forward.1} parent=1 // pred_region
      _
    $region5: #{state_encoder_forward.1} parent=1 // pred_fallthru
      _
    // Predicated region
    $region6: #{state_encoder_forward.1} parent=1 // pred_check
      _
    $region7: #{state_encoder_forward.1} parent=1 // pred_check_branch
      %18 = sbr.rel (0) target = $region9
    $region8: #{state_encoder_forward.1} parent=1 // pred_region
      _
    $region9: #{state_encoder_forward.1} parent=1 // pred_fallthru
      _
    // Predicated region
    $region10: #{state_encoder_forward.1} parent=1 // pred_check
      _
    $region11: #{state_encoder_forward.1} parent=1 // pred_check_branch
      %20 = sbr.rel (0) target = $region13
    $region12: #{state_encoder_forward.1} parent=1 // pred_region
      _
    $region13: #{state_encoder_forward.1} parent=1 // pred_fallthru
      _
    // Predicated region
    $region14: #{state_encoder_forward.1} parent=1 // pred_check
      _
    $region15: #{state_encoder_forward.1} parent=1 // pred_check_branch
      %22 = sbr.rel (0) target = $region17
    $region16: #{state_encoder_forward.1} parent=1 // pred_region
      _
    $region17: #{state_encoder_forward.1} parent=1 // pred_fallthru
      _
    // Predicated region
    $region18: #{state_encoder_forward.1} parent=1 // pred_check
      _
    $region19: #{state_encoder_forward.1} parent=1 // pred_check_branch
      %24 = sbr.rel (0) target = $region21
    $region20: #{state_encoder_forward.1} parent=1 // pred_region
      _
    $region21: #{state_encoder_forward.1} parent=1 // pred_fallthru
      _
    // Predicated region
    $region22: #{state_encoder_forward.1} parent=1 // pred_check
      _
    $region23: #{state_encoder_forward.1} parent=1 // pred_check_branch
      %26 = sbr.rel (0) target = $region25
    $region24: #{state_encoder_forward.1} parent=1 // pred_region
      _
    $region25: #{state_encoder_forward.1} parent=1 // pred_fallthru
      _
    // Predicated region
    $region26: #{state_encoder_forward.1} parent=1 // pred_check
      _
    $region27: #{state_encoder_forward.1} parent=1 // pred_check_branch
      %28 = sbr.rel (0) target = $region29
    $region28: #{state_encoder_forward.1} parent=1 // pred_region
      _
    $region29: #{state_encoder_forward.1} parent=1 // pred_fallthru
      _
    // Predicated region
    $region30: #{state_encoder_forward.1} parent=1 // pred_check
      _
    $region31: #{state_encoder_forward.1} parent=1 // pred_check_branch
      %30 = sbr.rel (0) target = $region33
    $region32: #{state_encoder_forward.1} parent=1 // pred_region
      _
    $region33: #{state_encoder_forward.1} parent=1 // pred_fallthru
      _
    // Predicated region
    $region34: #{state_encoder_forward.1} parent=1 // pred_check
      _
    $region35: #{state_encoder_forward.1} parent=1 // pred_check_branch
      %32 = sbr.rel (0) target = $region37
    $region36: #{state_encoder_forward.1} parent=1 // pred_region
      _
    $region37: #{state_encoder_forward.1} parent=1 // pred_fallthru
      _
    %v33 = vld [vmem:[%s7] sm:$0x7]
    %v34 = vld [vmem:[%s8] sm:$0x7]
    %v35 = vld [vmem:[%s2] sm:$0xff]
    %v36 = vld [vmem:[%s4] sm:$0xff]
    %v37 = vld [vmem:[%s4 + $0x8] sm:$0xff]
    %v38 = vld [vmem:[%s5] sm:$0xff]
    %v39 = vld [vmem:[%s5 + $0x8] sm:$0xff]
    %v40 = vld [vmem:[%s5 + $0x10] sm:$0xff]
    %v41 = vld [vmem:[%s5 + $0x18] sm:$0xff]
    %v42 = vld [vmem:[%s6] sm:$0x3]
    %vm43 = vcmask 154624
    %44 = vst.msk [vmem:[#allocation2] sm:$0xff] %vm43, 0.0
    %vm45 = vcmask 868024
    %46 = vst.msk [vmem:[#allocation2 + $0x10] sm:$0xff] %vm45, 0.0
    %v47 = vld [vmem:[%s0] sm:$0xff]
    %v48 = vld [vmem:[%s0 + $0x8] sm:$0xf]
    %v49 = vld [vmem:[%s1] sm:$0xff]
    %s50 = scalar_lea.vmem %s1, 8
    %v51 = vld [vmem:[%s50] sm:$0xff]
    %54 = vst [vmem:[#allocation1] ss:$2 sm:$0xff] %v47
    %s55 = scalar_lea.vmem [#allocation1], 16
    %56 = vst [vmem:[%s55] ss:$2 sm:$0xff] %v48
    %v57 = vld.sshfl [vmem:[#allocation1] sm:$0xff pattern:$0x75316420]
    %v58 = vld.sshfl [vmem:[#allocation1 + $0x8] sm:$0xff pattern:$0x75316420]
    %v59 = vld.sshfl [vmem:[#allocation1 + $0x10] sm:$0xff pattern:$0x75316420]
    %60 = vrot.lane.b32.xlu0 %v57, 127
    %v61 = vpop.permute.xlu0 %60
    %62 = vrot.lane.b32.xlu0 %v58, 127
    %v63 = vpop.permute.xlu0 %62
    %64 = vrot.lane.b32.xlu0 %v59, 127
    %v65 = vpop.permute.xlu0 %64
    %vm66 = vcmask 1039360
    %v67 = vsel %vm66, %v61, %v63
    %v68 = vsel %vm66, %v63, %v65
    %vm69 = vcmask 31744
    %v71 = vsel %vm69, %v51, 0
    %vm73 = vcmask 1043456
    %v74 = vsel %vm73, %v67, 0
    %v76 = vsel %vm73, %v68, 0
    %v78 = vsel %vm73, %v65, 0
    %80 = vmatpush.msra.mxu0 0.0
    %81 = vmatpush.msra.mxu0 0.0
    %82 = vmatpush.msra.mxu0 0.0
    %83 = vmatpush.msra.mxu0 0.0
    %84 = vmatpush.msra.mxu0 0.0
    %85 = vmatpush.msra.mxu0 0.0
    %86 = vmatpush.msra.mxu0 0.0
    %87 = vmatpush.msra.mxu0 0.0
    %88 = vmatpush.msra.mxu0 0.0
    %89 = vmatpush.msra.mxu0 0.0
    %90 = vmatpush.msra.mxu0 0.0
    %91 = vmatpush.msra.mxu0 0.0
    %92 = vmatpush.msra.mxu0 0.0
    %93 = vmatpush.msra.mxu0 0.0
    %94 = vmatpush.msra.mxu0 0.0
    %95 = vmatpush.msra.mxu0 %v74
    %96 = vmatmul.f32.gmra.mxu0 %v71
    %v97 = vpop.f32.mrf.mxu0
    %v98 = vadd.f32 0.0, %v97
    %99 = vdwg.mxu0
    %100 = vmatpush.msra.mxu0 0.0
    %101 = vmatpush.msra.mxu0 0.0
    %102 = vmatpush.msra.mxu0 0.0
    %103 = vmatpush.msra.mxu0 0.0
    %104 = vmatpush.msra.mxu0 0.0
    %105 = vmatpush.msra.mxu0 0.0
    %106 = vmatpush.msra.mxu0 0.0
    %107 = vmatpush.msra.mxu0 0.0
    %108 = vmatpush.msra.mxu0 0.0
    %109 = vmatpush.msra.mxu0 0.0
    %110 = vmatpush.msra.mxu0 0.0
    %111 = vmatpush.msra.mxu0 0.0
    %112 = vmatpush.msra.mxu0 0.0
    %113 = vmatpush.msra.mxu0 0.0
    %114 = vmatpush.msra.mxu0 0.0
    %115 = vmatpush.msra.mxu0 %v76
    %116 = vmatmul.f32.gmra.mxu0 %v71
    %v117 = vpop.f32.mrf.mxu0
    %v118 = vadd.f32 0.0, %v117
    %119 = vdwg.mxu0
    %120 = vmatpush.msra.mxu0 0.0
    %121 = vmatpush.msra.mxu0 0.0
    %122 = vmatpush.msra.mxu0 0.0
    %123 = vmatpush.msra.mxu0 0.0
    %124 = vmatpush.msra.mxu0 0.0
    %125 = vmatpush.msra.mxu0 0.0
    %126 = vmatpush.msra.mxu0 0.0
    %127 = vmatpush.msra.mxu0 0.0
    %128 = vmatpush.msra.mxu0 0.0
    %129 = vmatpush.msra.mxu0 0.0
    %130 = vmatpush.msra.mxu0 0.0
    %131 = vmatpush.msra.mxu0 0.0
    %132 = vmatpush.msra.mxu0 0.0
    %133 = vmatpush.msra.mxu0 0.0
    %134 = vmatpush.msra.mxu0 0.0
    %135 = vmatpush.msra.mxu0 %v78
    %136 = vmatmul.f32.gmra.mxu0 %v71
    %v137 = vpop.f32.mrf.mxu0
    %v138 = vadd.f32 0.0, %v137
    %139 = vdwg.mxu0
    %140 = vst [vmem:[#allocation1] ss:$2 sm:$0xff] %v47
    %s141 = scalar_lea.vmem [#allocation1], 16
    %142 = vst [vmem:[%s141] ss:$2 sm:$0xff] %v48
    %v143 = vld.sshfl [vmem:[#allocation1] sm:$0xff pattern:$0x75316420]
    %v144 = vld.sshfl [vmem:[#allocation1 + $0x8] sm:$0xff pattern:$0x75316420]
    %v145 = vld.sshfl [vmem:[#allocation1 + $0x10] sm:$0xff pattern:$0x75316420]
    %v147 = vsel %vm69, %v49, 0
    %v149 = vsel %vm73, %v143, 0
    %v151 = vsel %vm73, %v144, 0
    %v153 = vsel %vm73, %v145, 0
    %155 = vmatpush.msra.mxu0 0.0
    %156 = vmatpush.msra.mxu0 0.0
    %157 = vmatpush.msra.mxu0 0.0
    %158 = vmatpush.msra.mxu0 0.0
    %159 = vmatpush.msra.mxu0 0.0
    %160 = vmatpush.msra.mxu0 0.0
    %161 = vmatpush.msra.mxu0 0.0
    %162 = vmatpush.msra.mxu0 0.0
    %163 = vmatpush.msra.mxu0 0.0
    %164 = vmatpush.msra.mxu0 0.0
    %165 = vmatpush.msra.mxu0 0.0
    %166 = vmatpush.msra.mxu0 0.0
    %167 = vmatpush.msra.mxu0 0.0
    %168 = vmatpush.msra.mxu0 0.0
    %169 = vmatpush.msra.mxu0 0.0
    %170 = vmatpush.msra.mxu0 %v149
    %171 = vmatmul.f32.gmra.mxu0 %v147
    %v172 = vpop.f32.mrf.mxu0
    %v173 = vadd.f32 %v98, %v172
    %174 = vdwg.mxu0
    %175 = vmatpush.msra.mxu0 0.0
    %176 = vmatpush.msra.mxu0 0.0
    %177 = vmatpush.msra.mxu0 0.0
    %178 = vmatpush.msra.mxu0 0.0
    %179 = vmatpush.msra.mxu0 0.0
    %180 = vmatpush.msra.mxu0 0.0
    %181 = vmatpush.msra.mxu0 0.0
    %182 = vmatpush.msra.mxu0 0.0
    %183 = vmatpush.msra.mxu0 0.0
    %184 = vmatpush.msra.mxu0 0.0
    %185 = vmatpush.msra.mxu0 0.0
    %186 = vmatpush.msra.mxu0 0.0
    %187 = vmatpush.msra.mxu0 0.0
    %188 = vmatpush.msra.mxu0 0.0
    %189 = vmatpush.msra.mxu0 0.0
    %190 = vmatpush.msra.mxu0 %v151
    %191 = vmatmul.f32.gmra.mxu0 %v147
    %v192 = vpop.f32.mrf.mxu0
    %v193 = vadd.f32 %v118, %v192
    %194 = vdwg.mxu0
    %195 = vmatpush.msra.mxu0 0.0
    %196 = vmatpush.msra.mxu0 0.0
    %197 = vmatpush.msra.mxu0 0.0
    %198 = vmatpush.msra.mxu0 0.0
    %199 = vmatpush.msra.mxu0 0.0
    %200 = vmatpush.msra.mxu0 0.0
    %201 = vmatpush.msra.mxu0 0.0
    %202 = vmatpush.msra.mxu0 0.0
    %203 = vmatpush.msra.mxu0 0.0
    %204 = vmatpush.msra.mxu0 0.0
    %205 = vmatpush.msra.mxu0 0.0
    %206 = vmatpush.msra.mxu0 0.0
    %207 = vmatpush.msra.mxu0 0.0
    %208 = vmatpush.msra.mxu0 0.0
    %209 = vmatpush.msra.mxu0 0.0
    %210 = vmatpush.msra.mxu0 %v153
    %211 = vmatmul.f32.gmra.mxu0 %v147
    %v212 = vpop.f32.mrf.mxu0
    %v213 = vadd.f32 %v138, %v212
    %214 = vdwg.mxu0
    %s215 = scalar_lea.vmem %s1, 16
    %v216 = vld [vmem:[%s215] sm:$0xff]
    %217 = vst [vmem:[#allocation1] ss:$2 sm:$0xff] %v47
    %s218 = scalar_lea.vmem [#allocation1], 16
    %219 = vst [vmem:[%s218] ss:$2 sm:$0xff] %v48
    %v220 = vld.sshfl [vmem:[#allocation1] sm:$0xff pattern:$0x75316420]
    %v221 = vld.sshfl [vmem:[#allocation1 + $0x8] sm:$0xff pattern:$0x75316420]
    %v222 = vld.sshfl [vmem:[#allocation1 + $0x10] sm:$0xff pattern:$0x75316420]
    %223 = vrot.lane.b32.xlu0 %v220, 126
    %v224 = vpop.permute.xlu0 %223
    %225 = vrot.lane.b32.xlu0 %v221, 126
    %v226 = vpop.permute.xlu0 %225
    %227 = vrot.lane.b32.xlu0 %v222, 126
    %v228 = vpop.permute.xlu0 %227
    %vm229 = vcmask 1031168
    %v230 = vsel %vm229, %v224, %v226
    %v231 = vsel %vm229, %v226, %v228
    %v233 = vsel %vm69, %v216, 0
    %v235 = vsel %vm73, %v230, 0
    %v237 = vsel %vm73, %v231, 0
    %v239 = vsel %vm73, %v228, 0
    %241 = vmatpush.msra.mxu0 0.0
    %242 = vmatpush.msra.mxu0 0.0
    %243 = vmatpush.msra.mxu0 0.0
    %244 = vmatpush.msra.mxu0 0.0
    %245 = vmatpush.msra.mxu0 0.0
    %246 = vmatpush.msra.mxu0 0.0
    %247 = vmatpush.msra.mxu0 0.0
    %248 = vmatpush.msra.mxu0 0.0
    %249 = vmatpush.msra.mxu0 0.0
    %250 = vmatpush.msra.mxu0 0.0
    %251 = vmatpush.msra.mxu0 0.0
    %252 = vmatpush.msra.mxu0 0.0
    %253 = vmatpush.msra.mxu0 0.0
    %254 = vmatpush.msra.mxu0 0.0
    %255 = vmatpush.msra.mxu0 0.0
    %256 = vmatpush.msra.mxu0 %v235
    %257 = vmatmul.f32.gmra.mxu0 %v233
    %v258 = vpop.f32.mrf.mxu0
    %v259 = vadd.f32 0.0, %v258
    %260 = vdwg.mxu0
    %261 = vmatpush.msra.mxu0 0.0
    %262 = vmatpush.msra.mxu0 0.0
    %263 = vmatpush.msra.mxu0 0.0
    %264 = vmatpush.msra.mxu0 0.0
    %265 = vmatpush.msra.mxu0 0.0
    %266 = vmatpush.msra.mxu0 0.0
    %267 = vmatpush.msra.mxu0 0.0
    %268 = vmatpush.msra.mxu0 0.0
    %269 = vmatpush.msra.mxu0 0.0
    %270 = vmatpush.msra.mxu0 0.0
    %271 = vmatpush.msra.mxu0 0.0
    %272 = vmatpush.msra.mxu0 0.0
    %273 = vmatpush.msra.mxu0 0.0
    %274 = vmatpush.msra.mxu0 0.0
    %275 = vmatpush.msra.mxu0 0.0
    %276 = vmatpush.msra.mxu0 %v237
    %277 = vmatmul.f32.gmra.mxu0 %v233
    %v278 = vpop.f32.mrf.mxu0
    %v279 = vadd.f32 0.0, %v278
    %280 = vdwg.mxu0
    %281 = vmatpush.msra.mxu0 0.0
    %282 = vmatpush.msra.mxu0 0.0
    %283 = vmatpush.msra.mxu0 0.0
    %284 = vmatpush.msra.mxu0 0.0
    %285 = vmatpush.msra.mxu0 0.0
    %286 = vmatpush.msra.mxu0 0.0
    %287 = vmatpush.msra.mxu0 0.0
    %288 = vmatpush.msra.mxu0 0.0
    %289 = vmatpush.msra.mxu0 0.0
    %290 = vmatpush.msra.mxu0 0.0
    %291 = vmatpush.msra.mxu0 0.0
    %292 = vmatpush.msra.mxu0 0.0
    %293 = vmatpush.msra.mxu0 0.0
    %294 = vmatpush.msra.mxu0 0.0
    %295 = vmatpush.msra.mxu0 0.0
    %296 = vmatpush.msra.mxu0 %v239
    %297 = vmatmul.f32.gmra.mxu0 %v233
    %v298 = vpop.f32.mrf.mxu0
    %v299 = vadd.f32 0.0, %v298
    %300 = vdwg.mxu0
    %v301 = vadd.f32 %v173, %v259
    %v302 = vadd.f32 %v193, %v279
    %v303 = vadd.f32 %v213, %v299
    %s304 = scalar_lea.vmem %s1, 24
    %v305 = vld [vmem:[%s304] sm:$0xff]
    %306 = vst [vmem:[#allocation1] ss:$2 sm:$0xff] %v47
    %s307 = scalar_lea.vmem [#allocation1], 16
    %308 = vst [vmem:[%s307] ss:$2 sm:$0xff] %v48
    %v309 = vld.sshfl [vmem:[#allocation1] sm:$0xff pattern:$0x75316420]
    %v310 = vld.sshfl [vmem:[#allocation1 + $0x8] sm:$0xff pattern:$0x75316420]
    %v311 = vld.sshfl [vmem:[#allocation1 + $0x10] sm:$0xff pattern:$0x75316420]
    %312 = vrot.lane.b32.xlu0 %v309, 110
    %v313 = vpop.permute.xlu0 %312
    %314 = vrot.lane.b32.xlu0 %v310, 110
    %v315 = vpop.permute.xlu0 %314
    %316 = vrot.lane.b32.xlu0 %v311, 110
    %v317 = vpop.permute.xlu0 %316
    %vm318 = vcmask 900096
    %v319 = vsel %vm318, %v313, %v315
    %v320 = vsel %vm318, %v315, %v317
    %v322 = vsel %vm69, %v305, 0
    %v324 = vsel %vm73, %v319, 0
    %v326 = vsel %vm73, %v320, 0
    %v328 = vsel %vm73, %v317, 0
    %330 = vmatpush.msra.mxu0 0.0
    %331 = vmatpush.msra.mxu0 0.0
    %332 = vmatpush.msra.mxu0 0.0
    %333 = vmatpush.msra.mxu0 0.0
    %334 = vmatpush.msra.mxu0 0.0
    %335 = vmatpush.msra.mxu0 0.0
    %336 = vmatpush.msra.mxu0 0.0
    %337 = vmatpush.msra.mxu0 0.0
    %338 = vmatpush.msra.mxu0 0.0
    %339 = vmatpush.msra.mxu0 0.0
    %340 = vmatpush.msra.mxu0 0.0
    %341 = vmatpush.msra.mxu0 0.0
    %342 = vmatpush.msra.mxu0 0.0
    %343 = vmatpush.msra.mxu0 0.0
    %344 = vmatpush.msra.mxu0 0.0
    %345 = vmatpush.msra.mxu0 %v324
    %346 = vmatmul.f32.gmra.mxu0 %v322
    %v347 = vpop.f32.mrf.mxu0
    %v348 = vadd.f32 0.0, %v347
    %349 = vdwg.mxu0
    %350 = vmatpush.msra.mxu0 0.0
    %351 = vmatpush.msra.mxu0 0.0
    %352 = vmatpush.msra.mxu0 0.0
    %353 = vmatpush.msra.mxu0 0.0
    %354 = vmatpush.msra.mxu0 0.0
    %355 = vmatpush.msra.mxu0 0.0
    %356 = vmatpush.msra.mxu0 0.0
    %357 = vmatpush.msra.mxu0 0.0
    %358 = vmatpush.msra.mxu0 0.0
    %359 = vmatpush.msra.mxu0 0.0
    %360 = vmatpush.msra.mxu0 0.0
    %361 = vmatpush.msra.mxu0 0.0
    %362 = vmatpush.msra.mxu0 0.0
    %363 = vmatpush.msra.mxu0 0.0
    %364 = vmatpush.msra.mxu0 0.0
    %365 = vmatpush.msra.mxu0 %v326
    %366 = vmatmul.f32.gmra.mxu0 %v322
    %v367 = vpop.f32.mrf.mxu0
    %v368 = vadd.f32 0.0, %v367
    %369 = vdwg.mxu0
    %370 = vmatpush.msra.mxu0 0.0
    %371 = vmatpush.msra.mxu0 0.0
    %372 = vmatpush.msra.mxu0 0.0
    %373 = vmatpush.msra.mxu0 0.0
    %374 = vmatpush.msra.mxu0 0.0
    %375 = vmatpush.msra.mxu0 0.0
    %376 = vmatpush.msra.mxu0 0.0
    %377 = vmatpush.msra.mxu0 0.0
    %378 = vmatpush.msra.mxu0 0.0
    %379 = vmatpush.msra.mxu0 0.0
    %380 = vmatpush.msra.mxu0 0.0
    %381 = vmatpush.msra.mxu0 0.0
    %382 = vmatpush.msra.mxu0 0.0
    %383 = vmatpush.msra.mxu0 0.0
    %384 = vmatpush.msra.mxu0 0.0
    %385 = vmatpush.msra.mxu0 %v328
    %386 = vmatmul.f32.gmra.mxu0 %v322
    %v387 = vpop.f32.mrf.mxu0
    %v388 = vadd.f32 0.0, %v387
    %389 = vdwg.mxu0
    %v390 = vadd.f32 %v301, %v348
    %v391 = vadd.f32 %v302, %v368
    %v392 = vadd.f32 %v303, %v388
    %s393 = scalar_lea.vmem %s1, 32
    %v394 = vld [vmem:[%s393] sm:$0xff]
    %395 = vst [vmem:[#allocation1] ss:$2 sm:$0xff] %v47
    %s396 = scalar_lea.vmem [#allocation1], 16
    %397 = vst [vmem:[%s396] ss:$2 sm:$0xff] %v48
    %v398 = vld.sshfl [vmem:[#allocation1] sm:$0xff pattern:$0x75316420]
    %v399 = vld.sshfl [vmem:[#allocation1 + $0x8] sm:$0xff pattern:$0x75316420]
    %v400 = vld.sshfl [vmem:[#allocation1 + $0x10] sm:$0xff pattern:$0x75316420]
    %401 = vrot.lane.b32.xlu0 %v398, 109
    %v402 = vpop.permute.xlu0 %401
    %403 = vrot.lane.b32.xlu0 %v399, 109
    %v404 = vpop.permute.xlu0 %403
    %405 = vrot.lane.b32.xlu0 %v400, 109
    %v406 = vpop.permute.xlu0 %405
    %vm407 = vcmask 891904
    %v408 = vsel %vm407, %v402, %v404
    %v409 = vsel %vm407, %v404, %v406
    %v411 = vsel %vm69, %v394, 0
    %v413 = vsel %vm73, %v408, 0
    %v415 = vsel %vm73, %v409, 0
    %v417 = vsel %vm73, %v406, 0
    %419 = vmatpush.msra.mxu0 0.0
    %420 = vmatpush.msra.mxu0 0.0
    %421 = vmatpush.msra.mxu0 0.0
    %422 = vmatpush.msra.mxu0 0.0
    %423 = vmatpush.msra.mxu0 0.0
    %424 = vmatpush.msra.mxu0 0.0
    %425 = vmatpush.msra.mxu0 0.0
    %426 = vmatpush.msra.mxu0 0.0
    %427 = vmatpush.msra.mxu0 0.0
    %428 = vmatpush.msra.mxu0 0.0
    %429 = vmatpush.msra.mxu0 0.0
    %430 = vmatpush.msra.mxu0 0.0
    %431 = vmatpush.msra.mxu0 0.0
    %432 = vmatpush.msra.mxu0 0.0
    %433 = vmatpush.msra.mxu0 0.0
    %434 = vmatpush.msra.mxu0 %v413
    %435 = vmatmul.f32.gmra.mxu0 %v411
    %v436 = vpop.f32.mrf.mxu0
    %v437 = vadd.f32 0.0, %v436
    %438 = vdwg.mxu0
    %439 = vmatpush.msra.mxu0 0.0
    %440 = vmatpush.msra.mxu0 0.0
    %441 = vmatpush.msra.mxu0 0.0
    %442 = vmatpush.msra.mxu0 0.0
    %443 = vmatpush.msra.mxu0 0.0
    %444 = vmatpush.msra.mxu0 0.0
    %445 = vmatpush.msra.mxu0 0.0
    %446 = vmatpush.msra.mxu0 0.0
    %447 = vmatpush.msra.mxu0 0.0
    %448 = vmatpush.msra.mxu0 0.0
    %449 = vmatpush.msra.mxu0 0.0
    %450 = vmatpush.msra.mxu0 0.0
    %451 = vmatpush.msra.mxu0 0.0
    %452 = vmatpush.msra.mxu0 0.0
    %453 = vmatpush.msra.mxu0 0.0
    %454 = vmatpush.msra.mxu0 %v415
    %455 = vmatmul.f32.gmra.mxu0 %v411
    %v456 = vpop.f32.mrf.mxu0
    %v457 = vadd.f32 0.0, %v456
    %458 = vdwg.mxu0
    %459 = vmatpush.msra.mxu0 0.0
    %460 = vmatpush.msra.mxu0 0.0
    %461 = vmatpush.msra.mxu0 0.0
    %462 = vmatpush.msra.mxu0 0.0
    %463 = vmatpush.msra.mxu0 0.0
    %464 = vmatpush.msra.mxu0 0.0
    %465 = vmatpush.msra.mxu0 0.0
    %466 = vmatpush.msra.mxu0 0.0
    %467 = vmatpush.msra.mxu0 0.0
    %468 = vmatpush.msra.mxu0 0.0
    %469 = vmatpush.msra.mxu0 0.0
    %470 = vmatpush.msra.mxu0 0.0
    %471 = vmatpush.msra.mxu0 0.0
    %472 = vmatpush.msra.mxu0 0.0
    %473 = vmatpush.msra.mxu0 0.0
    %474 = vmatpush.msra.mxu0 %v417
    %475 = vmatmul.f32.gmra.mxu0 %v411
    %v476 = vpop.f32.mrf.mxu0
    %v477 = vadd.f32 0.0, %v476
    %478 = vdwg.mxu0
    %v479 = vadd.f32 %v390, %v437
    %v480 = vadd.f32 %v391, %v457
    %v481 = vadd.f32 %v392, %v477
    %s482 = scalar_lea.vmem %s1, 40
    %v483 = vld [vmem:[%s482] sm:$0xff]
    %484 = vst [vmem:[#allocation1] ss:$2 sm:$0xff] %v47
    %s485 = scalar_lea.vmem [#allocation1], 16
    %486 = vst [vmem:[%s485] ss:$2 sm:$0xff] %v48
    %v487 = vld.sshfl [vmem:[#allocation1] sm:$0xff pattern:$0x75316420]
    %v488 = vld.sshfl [vmem:[#allocation1 + $0x8] sm:$0xff pattern:$0x75316420]
    %v489 = vld.sshfl [vmem:[#allocation1 + $0x10] sm:$0xff pattern:$0x75316420]
    %490 = vrot.lane.b32.xlu0 %v487, 108
    %v491 = vpop.permute.xlu0 %490
    %492 = vrot.lane.b32.xlu0 %v488, 108
    %v493 = vpop.permute.xlu0 %492
    %494 = vrot.lane.b32.xlu0 %v489, 108
    %v495 = vpop.permute.xlu0 %494
    %vm496 = vcmask 883712
    %v497 = vsel %vm496, %v491, %v493
    %v498 = vsel %vm496, %v493, %v495
    %v500 = vsel %vm69, %v483, 0
    %v502 = vsel %vm73, %v497, 0
    %v504 = vsel %vm73, %v498, 0
    %v506 = vsel %vm73, %v495, 0
    %508 = vmatpush.msra.mxu0 0.0
    %509 = vmatpush.msra.mxu0 0.0
    %510 = vmatpush.msra.mxu0 0.0
    %511 = vmatpush.msra.mxu0 0.0
    %512 = vmatpush.msra.mxu0 0.0
    %513 = vmatpush.msra.mxu0 0.0
    %514 = vmatpush.msra.mxu0 0.0
    %515 = vmatpush.msra.mxu0 0.0
    %516 = vmatpush.msra.mxu0 0.0
    %517 = vmatpush.msra.mxu0 0.0
    %518 = vmatpush.msra.mxu0 0.0
    %519 = vmatpush.msra.mxu0 0.0
    %520 = vmatpush.msra.mxu0 0.0
    %521 = vmatpush.msra.mxu0 0.0
    %522 = vmatpush.msra.mxu0 0.0
    %523 = vmatpush.msra.mxu0 %v502
    %524 = vmatmul.f32.gmra.mxu0 %v500
    %v525 = vpop.f32.mrf.mxu0
    %v526 = vadd.f32 0.0, %v525
    %527 = vdwg.mxu0
    %528 = vmatpush.msra.mxu0 0.0
    %529 = vmatpush.msra.mxu0 0.0
    %530 = vmatpush.msra.mxu0 0.0
    %531 = vmatpush.msra.mxu0 0.0
    %532 = vmatpush.msra.mxu0 0.0
    %533 = vmatpush.msra.mxu0 0.0
    %534 = vmatpush.msra.mxu0 0.0
    %535 = vmatpush.msra.mxu0 0.0
    %536 = vmatpush.msra.mxu0 0.0
    %537 = vmatpush.msra.mxu0 0.0
    %538 = vmatpush.msra.mxu0 0.0
    %539 = vmatpush.msra.mxu0 0.0
    %540 = vmatpush.msra.mxu0 0.0
    %541 = vmatpush.msra.mxu0 0.0
    %542 = vmatpush.msra.mxu0 0.0
    %543 = vmatpush.msra.mxu0 %v504
    %544 = vmatmul.f32.gmra.mxu0 %v500
    %v545 = vpop.f32.mrf.mxu0
    %v546 = vadd.f32 0.0, %v545
    %547 = vdwg.mxu0
    %548 = vmatpush.msra.mxu0 0.0
    %549 = vmatpush.msra.mxu0 0.0
    %550 = vmatpush.msra.mxu0 0.0
    %551 = vmatpush.msra.mxu0 0.0
    %552 = vmatpush.msra.mxu0 0.0
    %553 = vmatpush.msra.mxu0 0.0
    %554 = vmatpush.msra.mxu0 0.0
    %555 = vmatpush.msra.mxu0 0.0
    %556 = vmatpush.msra.mxu0 0.0
    %557 = vmatpush.msra.mxu0 0.0
    %558 = vmatpush.msra.mxu0 0.0
    %559 = vmatpush.msra.mxu0 0.0
    %560 = vmatpush.msra.mxu0 0.0
    %561 = vmatpush.msra.mxu0 0.0
    %562 = vmatpush.msra.mxu0 0.0
    %563 = vmatpush.msra.mxu0 %v506
    %564 = vmatmul.f32.gmra.mxu0 %v500
    %v565 = vpop.f32.mrf.mxu0
    %v566 = vadd.f32 0.0, %v565
    %567 = vdwg.mxu0
    %v568 = vadd.f32 %v479, %v526
    %v569 = vadd.f32 %v480, %v546
    %v570 = vadd.f32 %v481, %v566
    %s571 = scalar_lea.vmem %s1, 48
    %v572 = vld [vmem:[%s571] sm:$0xff]
    %573 = vst [vmem:[#allocation1] ss:$2 sm:$0xff] %v47
    %s574 = scalar_lea.vmem [#allocation1], 16
    %575 = vst [vmem:[%s574] ss:$2 sm:$0xff] %v48
    %v576 = vld.sshfl [vmem:[#allocation1] sm:$0xff pattern:$0x75316420]
    %v577 = vld.sshfl [vmem:[#allocation1 + $0x8] sm:$0xff pattern:$0x75316420]
    %v578 = vld.sshfl [vmem:[#allocation1 + $0x10] sm:$0xff pattern:$0x75316420]
    %579 = vrot.lane.b32.xlu0 %v576, 92
    %v580 = vpop.permute.xlu0 %579
    %581 = vrot.lane.b32.xlu0 %v577, 92
    %v582 = vpop.permute.xlu0 %581
    %583 = vrot.lane.b32.xlu0 %v578, 92
    %v584 = vpop.permute.xlu0 %583
    %vm585 = vcmask 752640
    %v586 = vsel %vm585, %v580, %v582
    %v587 = vsel %vm585, %v582, %v584
    %v589 = vsel %vm69, %v572, 0
    %v591 = vsel %vm73, %v586, 0
    %v593 = vsel %vm73, %v587, 0
    %v595 = vsel %vm73, %v584, 0
    %597 = vmatpush.msra.mxu0 0.0
    %598 = vmatpush.msra.mxu0 0.0
    %599 = vmatpush.msra.mxu0 0.0
    %600 = vmatpush.msra.mxu0 0.0
    %601 = vmatpush.msra.mxu0 0.0
    %602 = vmatpush.msra.mxu0 0.0
    %603 = vmatpush.msra.mxu0 0.0
    %604 = vmatpush.msra.mxu0 0.0
    %605 = vmatpush.msra.mxu0 0.0
    %606 = vmatpush.msra.mxu0 0.0
    %607 = vmatpush.msra.mxu0 0.0
    %608 = vmatpush.msra.mxu0 0.0
    %609 = vmatpush.msra.mxu0 0.0
    %610 = vmatpush.msra.mxu0 0.0
    %611 = vmatpush.msra.mxu0 0.0
    %612 = vmatpush.msra.mxu0 %v591
    %613 = vmatmul.f32.gmra.mxu0 %v589
    %v614 = vpop.f32.mrf.mxu0
    %v615 = vadd.f32 0.0, %v614
    %616 = vdwg.mxu0
    %617 = vmatpush.msra.mxu0 0.0
    %618 = vmatpush.msra.mxu0 0.0
    %619 = vmatpush.msra.mxu0 0.0
    %620 = vmatpush.msra.mxu0 0.0
    %621 = vmatpush.msra.mxu0 0.0
    %622 = vmatpush.msra.mxu0 0.0
    %623 = vmatpush.msra.mxu0 0.0
    %624 = vmatpush.msra.mxu0 0.0
    %625 = vmatpush.msra.mxu0 0.0
    %626 = vmatpush.msra.mxu0 0.0
    %627 = vmatpush.msra.mxu0 0.0
    %628 = vmatpush.msra.mxu0 0.0
    %629 = vmatpush.msra.mxu0 0.0
    %630 = vmatpush.msra.mxu0 0.0
    %631 = vmatpush.msra.mxu0 0.0
    %632 = vmatpush.msra.mxu0 %v593
    %633 = vmatmul.f32.gmra.mxu0 %v589
    %v634 = vpop.f32.mrf.mxu0
    %v635 = vadd.f32 0.0, %v634
    %636 = vdwg.mxu0
    %637 = vmatpush.msra.mxu0 0.0
    %638 = vmatpush.msra.mxu0 0.0
    %639 = vmatpush.msra.mxu0 0.0
    %640 = vmatpush.msra.mxu0 0.0
    %641 = vmatpush.msra.mxu0 0.0
    %642 = vmatpush.msra.mxu0 0.0
    %643 = vmatpush.msra.mxu0 0.0
    %644 = vmatpush.msra.mxu0 0.0
    %645 = vmatpush.msra.mxu0 0.0
    %646 = vmatpush.msra.mxu0 0.0
    %647 = vmatpush.msra.mxu0 0.0
    %648 = vmatpush.msra.mxu0 0.0
    %649 = vmatpush.msra.mxu0 0.0
    %650 = vmatpush.msra.mxu0 0.0
    %651 = vmatpush.msra.mxu0 0.0
    %652 = vmatpush.msra.mxu0 %v595
    %653 = vmatmul.f32.gmra.mxu0 %v589
    %v654 = vpop.f32.mrf.mxu0
    %v655 = vadd.f32 0.0, %v654
    %656 = vdwg.mxu0
    %v657 = vadd.f32 %v568, %v615
    %v658 = vadd.f32 %v569, %v635
    %v659 = vadd.f32 %v570, %v655
    %s660 = scalar_lea.vmem %s1, 56
    %v661 = vld [vmem:[%s660] sm:$0xff]
    %662 = vst [vmem:[#allocation1] ss:$2 sm:$0xff] %v47
    %s663 = scalar_lea.vmem [#allocation1], 16
    %664 = vst [vmem:[%s663] ss:$2 sm:$0xff] %v48
    %v665 = vld.sshfl [vmem:[#allocation1] sm:$0xff pattern:$0x75316420]
    %v666 = vld.sshfl [vmem:[#allocation1 + $0x8] sm:$0xff pattern:$0x75316420]
    %v667 = vld.sshfl [vmem:[#allocation1 + $0x10] sm:$0xff pattern:$0x75316420]
    %668 = vrot.lane.b32.xlu0 %v665, 91
    %v669 = vpop.permute.xlu0 %668
    %670 = vrot.lane.b32.xlu0 %v666, 91
    %v671 = vpop.permute.xlu0 %670
    %672 = vrot.lane.b32.xlu0 %v667, 91
    %v673 = vpop.permute.xlu0 %672
    %vm674 = vcmask 744448
    %v675 = vsel %vm674, %v669, %v671
    %v676 = vsel %vm674, %v671, %v673
    %v678 = vsel %vm69, %v661, 0
    %v680 = vsel %vm73, %v675, 0
    %v682 = vsel %vm73, %v676, 0
    %v684 = vsel %vm73, %v673, 0
    %686 = vmatpush.msra.mxu0 0.0
    %687 = vmatpush.msra.mxu0 0.0
    %688 = vmatpush.msra.mxu0 0.0
    %689 = vmatpush.msra.mxu0 0.0
    %690 = vmatpush.msra.mxu0 0.0
    %691 = vmatpush.msra.mxu0 0.0
    %692 = vmatpush.msra.mxu0 0.0
    %693 = vmatpush.msra.mxu0 0.0
    %694 = vmatpush.msra.mxu0 0.0
    %695 = vmatpush.msra.mxu0 0.0
    %696 = vmatpush.msra.mxu0 0.0
    %697 = vmatpush.msra.mxu0 0.0
    %698 = vmatpush.msra.mxu0 0.0
    %699 = vmatpush.msra.mxu0 0.0
    %700 = vmatpush.msra.mxu0 0.0
    %701 = vmatpush.msra.mxu0 %v680
    %702 = vmatmul.f32.gmra.mxu0 %v678
    %v703 = vpop.f32.mrf.mxu0
    %v704 = vadd.f32 0.0, %v703
    %705 = vdwg.mxu0
    %706 = vmatpush.msra.mxu0 0.0
    %707 = vmatpush.msra.mxu0 0.0
    %708 = vmatpush.msra.mxu0 0.0
    %709 = vmatpush.msra.mxu0 0.0
    %710 = vmatpush.msra.mxu0 0.0
    %711 = vmatpush.msra.mxu0 0.0
    %712 = vmatpush.msra.mxu0 0.0
    %713 = vmatpush.msra.mxu0 0.0
    %714 = vmatpush.msra.mxu0 0.0
    %715 = vmatpush.msra.mxu0 0.0
    %716 = vmatpush.msra.mxu0 0.0
    %717 = vmatpush.msra.mxu0 0.0
    %718 = vmatpush.msra.mxu0 0.0
    %719 = vmatpush.msra.mxu0 0.0
    %720 = vmatpush.msra.mxu0 0.0
    %721 = vmatpush.msra.mxu0 %v682
    %722 = vmatmul.f32.gmra.mxu0 %v678
    %v723 = vpop.f32.mrf.mxu0
    %v724 = vadd.f32 0.0, %v723
    %725 = vdwg.mxu0
    %726 = vmatpush.msra.mxu0 0.0
    %727 = vmatpush.msra.mxu0 0.0
    %728 = vmatpush.msra.mxu0 0.0
    %729 = vmatpush.msra.mxu0 0.0
    %730 = vmatpush.msra.mxu0 0.0
    %731 = vmatpush.msra.mxu0 0.0
    %732 = vmatpush.msra.mxu0 0.0
    %733 = vmatpush.msra.mxu0 0.0
    %734 = vmatpush.msra.mxu0 0.0
    %735 = vmatpush.msra.mxu0 0.0
    %736 = vmatpush.msra.mxu0 0.0
    %737 = vmatpush.msra.mxu0 0.0
    %738 = vmatpush.msra.mxu0 0.0
    %739 = vmatpush.msra.mxu0 0.0
    %740 = vmatpush.msra.mxu0 0.0
    %741 = vmatpush.msra.mxu0 %v684
    %742 = vmatmul.f32.gmra.mxu0 %v678
    %v743 = vpop.f32.mrf.mxu0
    %v744 = vadd.f32 0.0, %v743
    %745 = vdwg.mxu0
    %v746 = vadd.f32 %v657, %v704
    %v747 = vadd.f32 %v658, %v724
    %v748 = vadd.f32 %v659, %v744
    %s749 = scalar_lea.vmem %s1, 64
    %v750 = vld [vmem:[%s749] sm:$0xff]
    %751 = vst [vmem:[#allocation1] ss:$2 sm:$0xff] %v47
    %s752 = scalar_lea.vmem [#allocation1], 16
    %753 = vst [vmem:[%s752] ss:$2 sm:$0xff] %v48
    %v754 = vld.sshfl [vmem:[#allocation1] sm:$0xff pattern:$0x75316420]
    %v755 = vld.sshfl [vmem:[#allocation1 + $0x8] sm:$0xff pattern:$0x75316420]
    %v756 = vld.sshfl [vmem:[#allocation1 + $0x10] sm:$0xff pattern:$0x75316420]
    %757 = vrot.lane.b32.xlu0 %v754, 90
    %v758 = vpop.permute.xlu0 %757
    %759 = vrot.lane.b32.xlu0 %v755, 90
    %v760 = vpop.permute.xlu0 %759
    %761 = vrot.lane.b32.xlu0 %v756, 90
    %v762 = vpop.permute.xlu0 %761
    %vm763 = vcmask 736256
    %v764 = vsel %vm763, %v758, %v760
    %v765 = vsel %vm763, %v760, %v762
    %v767 = vsel %vm69, %v750, 0
    %v769 = vsel %vm73, %v764, 0
    %v771 = vsel %vm73, %v765, 0
    %v773 = vsel %vm73, %v762, 0
    %775 = vmatpush.msra.mxu0 0.0
    %776 = vmatpush.msra.mxu0 0.0
    %777 = vmatpush.msra.mxu0 0.0
    %778 = vmatpush.msra.mxu0 0.0
    %779 = vmatpush.msra.mxu0 0.0
    %780 = vmatpush.msra.mxu0 0.0
    %781 = vmatpush.msra.mxu0 0.0
    %782 = vmatpush.msra.mxu0 0.0
    %783 = vmatpush.msra.mxu0 0.0
    %784 = vmatpush.msra.mxu0 0.0
    %785 = vmatpush.msra.mxu0 0.0
    %786 = vmatpush.msra.mxu0 0.0
    %787 = vmatpush.msra.mxu0 0.0
    %788 = vmatpush.msra.mxu0 0.0
    %789 = vmatpush.msra.mxu0 0.0
    %790 = vmatpush.msra.mxu0 %v769
    %791 = vmatmul.f32.gmra.mxu0 %v767
    %v792 = vpop.f32.mrf.mxu0
    %v793 = vadd.f32 0.0, %v792
    %794 = vdwg.mxu0
    %795 = vmatpush.msra.mxu0 0.0
    %796 = vmatpush.msra.mxu0 0.0
    %797 = vmatpush.msra.mxu0 0.0
    %798 = vmatpush.msra.mxu0 0.0
    %799 = vmatpush.msra.mxu0 0.0
    %800 = vmatpush.msra.mxu0 0.0
    %801 = vmatpush.msra.mxu0 0.0
    %802 = vmatpush.msra.mxu0 0.0
    %803 = vmatpush.msra.mxu0 0.0
    %804 = vmatpush.msra.mxu0 0.0
    %805 = vmatpush.msra.mxu0 0.0
    %806 = vmatpush.msra.mxu0 0.0
    %807 = vmatpush.msra.mxu0 0.0
    %808 = vmatpush.msra.mxu0 0.0
    %809 = vmatpush.msra.mxu0 0.0
    %810 = vmatpush.msra.mxu0 %v771
    %811 = vmatmul.f32.gmra.mxu0 %v767
    %v812 = vpop.f32.mrf.mxu0
    %v813 = vadd.f32 0.0, %v812
    %814 = vdwg.mxu0
    %815 = vmatpush.msra.mxu0 0.0
    %816 = vmatpush.msra.mxu0 0.0
    %817 = vmatpush.msra.mxu0 0.0
    %818 = vmatpush.msra.mxu0 0.0
    %819 = vmatpush.msra.mxu0 0.0
    %820 = vmatpush.msra.mxu0 0.0
    %821 = vmatpush.msra.mxu0 0.0
    %822 = vmatpush.msra.mxu0 0.0
    %823 = vmatpush.msra.mxu0 0.0
    %824 = vmatpush.msra.mxu0 0.0
    %825 = vmatpush.msra.mxu0 0.0
    %826 = vmatpush.msra.mxu0 0.0
    %827 = vmatpush.msra.mxu0 0.0
    %828 = vmatpush.msra.mxu0 0.0
    %829 = vmatpush.msra.mxu0 0.0
    %830 = vmatpush.msra.mxu0 %v773
    %831 = vmatmul.f32.gmra.mxu0 %v767
    %v832 = vpop.f32.mrf.mxu0
    %v833 = vadd.f32 0.0, %v832
    %834 = vdwg.mxu0
    %v835 = vadd.f32 %v746, %v793
    %v836 = vadd.f32 %v747, %v813
    %v837 = vadd.f32 %v748, %v833
    %839 = vset.pattern.permute.xlu0 0
    %840 = vperm.xlu0 %839, %v35
    %v841 = vpop.permute.xlu0 %840
    %v843 = vadd.f32 %v835, %v841
    %v844 = vadd.f32 %v836, %v841
    %v845 = vadd.f32 %v837, %v841
    %v846 = vmax.f32 %v843, 0.0
    %v847 = vmax.f32 %v844, 0.0
    %v848 = vmax.f32 %v845, 0.0
    %v850 = vperm.slane %v33, 0
    %v851 = vperm.slane %v33, 1
    %v852 = vperm.slane %v33, 2
    %v856 = vmul.f32 %v850, %v846
    %v857 = vmul.f32 %v851, %v847
    %v858 = vmul.f32 %v852, %v848
    %862 = vrot.lane.b32.xlu0 %v856, 19
    %v863 = vpop.permute.xlu0 %862
    %864 = vrot.lane.b32.xlu0 %v857, 19
    %v865 = vpop.permute.xlu0 %864
    %866 = vrot.lane.b32.xlu0 %v858, 19
    %v867 = vpop.permute.xlu0 %866
    %v868 = vsel %vm43, %v863, %v865
    %v869 = vsel %vm43, %v865, %v867
    %vm873 = vcmask 1047704
    %874 = vst.msk [vmem:[#allocation2] sm:$0xff] %vm873, %v863
    %875 = vst [vmem:[#allocation2 + $0x8] sm:$0xff] %v868
    %vm876 = vcmask 711680
    %877 = vst.msk [vmem:[#allocation2 + $0x10] sm:$0xff] %vm876, %v869
    %v878 = vld [vmem:[#allocation2] sm:$0xff]
    %v879 = vld [vmem:[#allocation2 + $0x8] sm:$0xff]
    %v880 = vld [vmem:[#allocation2 + $0x10] sm:$0xff]
    %v881 = vld [vmem:[%s3] sm:$0xff]
    %v882 = vld [vmem:[%s3 + $0x8] sm:$0xff]
    %s883 = scalar_lea.vmem %s3, 16
    %v884 = vld [vmem:[%s883] sm:$0xff]
    %v885 = vld [vmem:[%s883 + $0x8] sm:$0xff]
    %889 = vrot.lane.b32.xlu0 %v878, 127
    %v890 = vpop.permute.xlu0 %889
    %891 = vrot.lane.b32.xlu0 %v879, 127
    %v892 = vpop.permute.xlu0 %891
    %893 = vrot.lane.b32.xlu0 %v880, 127
    %v894 = vpop.permute.xlu0 %893
    %v895 = vsel %vm66, %v890, %v892
    %v896 = vsel %vm66, %v892, %v894
    %vm900 = vcmask 64512
    %v902 = vsel %vm900, %v884, 0
    %v905 = vsel %vm900, %v885, 0
    %907 = vmatpush.msra.mxu0 0.0
    %908 = vmatpush.msra.mxu0 0.0
    %909 = vmatpush.msra.mxu0 0.0
    %910 = vmatpush.msra.mxu0 0.0
    %911 = vmatpush.msra.mxu0 0.0
    %912 = vmatpush.msra.mxu0 0.0
    %913 = vmatpush.msra.mxu0 0.0
    %914 = vmatpush.msra.mxu0 0.0
    %915 = vmatpush.msra.mxu0 0.0
    %916 = vmatpush.msra.mxu0 0.0
    %917 = vmatpush.msra.mxu0 0.0
    %918 = vmatpush.msra.mxu0 0.0
    %919 = vmatpush.msra.mxu0 0.0
    %920 = vmatpush.msra.mxu0 0.0
    %921 = vmatpush.msra.mxu0 0.0
    %922 = vmatpush.msra.mxu0 %v895
    %923 = vmatmul.f32.gmra.mxu0 %v902
    %v924 = vpop.f32.mrf.mxu0
    %v925 = vadd.f32 0.0, %v924
    %926 = vmatmul.f32.gmra.mxu0 %v905
    %v927 = vpop.f32.mrf.mxu0
    %v928 = vadd.f32 0.0, %v927
    %929 = vdwg.mxu0
    %930 = vmatpush.msra.mxu0 0.0
    %931 = vmatpush.msra.mxu0 0.0
    %932 = vmatpush.msra.mxu0 0.0
    %933 = vmatpush.msra.mxu0 0.0
    %934 = vmatpush.msra.mxu0 0.0
    %935 = vmatpush.msra.mxu0 0.0
    %936 = vmatpush.msra.mxu0 0.0
    %937 = vmatpush.msra.mxu0 0.0
    %938 = vmatpush.msra.mxu0 0.0
    %939 = vmatpush.msra.mxu0 0.0
    %940 = vmatpush.msra.mxu0 0.0
    %941 = vmatpush.msra.mxu0 0.0
    %942 = vmatpush.msra.mxu0 0.0
    %943 = vmatpush.msra.mxu0 0.0
    %944 = vmatpush.msra.mxu0 0.0
    %945 = vmatpush.msra.mxu0 %v896
    %946 = vmatmul.f32.gmra.mxu0 %v902
    %v947 = vpop.f32.mrf.mxu0
    %v948 = vadd.f32 0.0, %v947
    %949 = vmatmul.f32.gmra.mxu0 %v905
    %v950 = vpop.f32.mrf.mxu0
    %v951 = vadd.f32 0.0, %v950
    %952 = vdwg.mxu0
    %953 = vmatpush.msra.mxu0 0.0
    %954 = vmatpush.msra.mxu0 0.0
    %955 = vmatpush.msra.mxu0 0.0
    %956 = vmatpush.msra.mxu0 0.0
    %957 = vmatpush.msra.mxu0 0.0
    %958 = vmatpush.msra.mxu0 0.0
    %959 = vmatpush.msra.mxu0 0.0
    %960 = vmatpush.msra.mxu0 0.0
    %961 = vmatpush.msra.mxu0 0.0
    %962 = vmatpush.msra.mxu0 0.0
    %963 = vmatpush.msra.mxu0 0.0
    %964 = vmatpush.msra.mxu0 0.0
    %965 = vmatpush.msra.mxu0 0.0
    %966 = vmatpush.msra.mxu0 0.0
    %967 = vmatpush.msra.mxu0 0.0
    %968 = vmatpush.msra.mxu0 %v894
    %969 = vmatmul.f32.gmra.mxu0 %v902
    %v970 = vpop.f32.mrf.mxu0
    %v971 = vadd.f32 0.0, %v970
    %972 = vmatmul.f32.gmra.mxu0 %v905
    %v973 = vpop.f32.mrf.mxu0
    %v974 = vadd.f32 0.0, %v973
    %975 = vdwg.mxu0
    %v977 = vsel %vm900, %v881, 0
    %v980 = vsel %vm900, %v882, 0
    %982 = vmatpush.msra.mxu0 0.0
    %983 = vmatpush.msra.mxu0 0.0
    %984 = vmatpush.msra.mxu0 0.0
    %985 = vmatpush.msra.mxu0 0.0
    %986 = vmatpush.msra.mxu0 0.0
    %987 = vmatpush.msra.mxu0 0.0
    %988 = vmatpush.msra.mxu0 0.0
    %989 = vmatpush.msra.mxu0 0.0
    %990 = vmatpush.msra.mxu0 0.0
    %991 = vmatpush.msra.mxu0 0.0
    %992 = vmatpush.msra.mxu0 0.0
    %993 = vmatpush.msra.mxu0 0.0
    %994 = vmatpush.msra.mxu0 0.0
    %995 = vmatpush.msra.mxu0 0.0
    %996 = vmatpush.msra.mxu0 0.0
    %997 = vmatpush.msra.mxu0 %v878
    %998 = vmatmul.f32.gmra.mxu0 %v977
    %v999 = vpop.f32.mrf.mxu0
    %v1000 = vadd.f32 %v925, %v999
    %1001 = vmatmul.f32.gmra.mxu0 %v980
    %v1002 = vpop.f32.mrf.mxu0
    %v1003 = vadd.f32 %v928, %v1002
    %1004 = vdwg.mxu0
    %1005 = vmatpush.msra.mxu0 0.0
    %1006 = vmatpush.msra.mxu0 0.0
    %1007 = vmatpush.msra.mxu0 0.0
    %1008 = vmatpush.msra.mxu0 0.0
    %1009 = vmatpush.msra.mxu0 0.0
    %1010 = vmatpush.msra.mxu0 0.0
    %1011 = vmatpush.msra.mxu0 0.0
    %1012 = vmatpush.msra.mxu0 0.0
    %1013 = vmatpush.msra.mxu0 0.0
    %1014 = vmatpush.msra.mxu0 0.0
    %1015 = vmatpush.msra.mxu0 0.0
    %1016 = vmatpush.msra.mxu0 0.0
    %1017 = vmatpush.msra.mxu0 0.0
    %1018 = vmatpush.msra.mxu0 0.0
    %1019 = vmatpush.msra.mxu0 0.0
    %1020 = vmatpush.msra.mxu0 %v879
    %1021 = vmatmul.f32.gmra.mxu0 %v977
    %v1022 = vpop.f32.mrf.mxu0
    %v1023 = vadd.f32 %v948, %v1022
    %1024 = vmatmul.f32.gmra.mxu0 %v980
    %v1025 = vpop.f32.mrf.mxu0
    %v1026 = vadd.f32 %v951, %v1025
    %1027 = vdwg.mxu0
    %1028 = vmatpush.msra.mxu0 0.0
    %1029 = vmatpush.msra.mxu0 0.0
    %1030 = vmatpush.msra.mxu0 0.0
    %1031 = vmatpush.msra.mxu0 0.0
    %1032 = vmatpush.msra.mxu0 0.0
    %1033 = vmatpush.msra.mxu0 0.0
    %1034 = vmatpush.msra.mxu0 0.0
    %1035 = vmatpush.msra.mxu0 0.0
    %1036 = vmatpush.msra.mxu0 0.0
    %1037 = vmatpush.msra.mxu0 0.0
    %1038 = vmatpush.msra.mxu0 0.0
    %1039 = vmatpush.msra.mxu0 0.0
    %1040 = vmatpush.msra.mxu0 0.0
    %1041 = vmatpush.msra.mxu0 0.0
    %1042 = vmatpush.msra.mxu0 0.0
    %1043 = vmatpush.msra.mxu0 %v880
    %1044 = vmatmul.f32.gmra.mxu0 %v977
    %v1045 = vpop.f32.mrf.mxu0
    %v1046 = vadd.f32 %v971, %v1045
    %1047 = vmatmul.f32.gmra.mxu0 %v980
    %v1048 = vpop.f32.mrf.mxu0
    %v1049 = vadd.f32 %v974, %v1048
    %1050 = vdwg.mxu0
    %s1051 = scalar_lea.vmem %s3, 32
    %v1052 = vld [vmem:[%s1051] sm:$0xff]
    %v1053 = vld [vmem:[%s1051 + $0x8] sm:$0xff]
    %1054 = vrot.lane.b32.xlu0 %v878, 126
    %v1055 = vpop.permute.xlu0 %1054
    %1056 = vrot.lane.b32.xlu0 %v879, 126
    %v1057 = vpop.permute.xlu0 %1056
    %1058 = vrot.lane.b32.xlu0 %v880, 126
    %v1059 = vpop.permute.xlu0 %1058
    %v1060 = vsel %vm229, %v1055, %v1057
    %v1061 = vsel %vm229, %v1057, %v1059
    %v1066 = vsel %vm900, %v1052, 0
    %v1069 = vsel %vm900, %v1053, 0
    %1071 = vmatpush.msra.mxu0 0.0
    %1072 = vmatpush.msra.mxu0 0.0
    %1073 = vmatpush.msra.mxu0 0.0
    %1074 = vmatpush.msra.mxu0 0.0
    %1075 = vmatpush.msra.mxu0 0.0
    %1076 = vmatpush.msra.mxu0 0.0
    %1077 = vmatpush.msra.mxu0 0.0
    %1078 = vmatpush.msra.mxu0 0.0
    %1079 = vmatpush.msra.mxu0 0.0
    %1080 = vmatpush.msra.mxu0 0.0
    %1081 = vmatpush.msra.mxu0 0.0
    %1082 = vmatpush.msra.mxu0 0.0
    %1083 = vmatpush.msra.mxu0 0.0
    %1084 = vmatpush.msra.mxu0 0.0
    %1085 = vmatpush.msra.mxu0 0.0
    %1086 = vmatpush.msra.mxu0 %v1060
    %1087 = vmatmul.f32.gmra.mxu0 %v1066
    %v1088 = vpop.f32.mrf.mxu0
    %v1089 = vadd.f32 0.0, %v1088
    %1090 = vmatmul.f32.gmra.mxu0 %v1069
    %v1091 = vpop.f32.mrf.mxu0
    %v1092 = vadd.f32 0.0, %v1091
    %1093 = vdwg.mxu0
    %1094 = vmatpush.msra.mxu0 0.0
    %1095 = vmatpush.msra.mxu0 0.0
    %1096 = vmatpush.msra.mxu0 0.0
    %1097 = vmatpush.msra.mxu0 0.0
    %1098 = vmatpush.msra.mxu0 0.0
    %1099 = vmatpush.msra.mxu0 0.0
    %1100 = vmatpush.msra.mxu0 0.0
    %1101 = vmatpush.msra.mxu0 0.0
    %1102 = vmatpush.msra.mxu0 0.0
    %1103 = vmatpush.msra.mxu0 0.0
    %1104 = vmatpush.msra.mxu0 0.0
    %1105 = vmatpush.msra.mxu0 0.0
    %1106 = vmatpush.msra.mxu0 0.0
    %1107 = vmatpush.msra.mxu0 0.0
    %1108 = vmatpush.msra.mxu0 0.0
    %1109 = vmatpush.msra.mxu0 %v1061
    %1110 = vmatmul.f32.gmra.mxu0 %v1066
    %v1111 = vpop.f32.mrf.mxu0
    %v1112 = vadd.f32 0.0, %v1111
    %1113 = vmatmul.f32.gmra.mxu0 %v1069
    %v1114 = vpop.f32.mrf.mxu0
    %v1115 = vadd.f32 0.0, %v1114
    %1116 = vdwg.mxu0
    %1117 = vmatpush.msra.mxu0 0.0
    %1118 = vmatpush.msra.mxu0 0.0
    %1119 = vmatpush.msra.mxu0 0.0
    %1120 = vmatpush.msra.mxu0 0.0
    %1121 = vmatpush.msra.mxu0 0.0
    %1122 = vmatpush.msra.mxu0 0.0
    %1123 = vmatpush.msra.mxu0 0.0
    %1124 = vmatpush.msra.mxu0 0.0
    %1125 = vmatpush.msra.mxu0 0.0
    %1126 = vmatpush.msra.mxu0 0.0
    %1127 = vmatpush.msra.mxu0 0.0
    %1128 = vmatpush.msra.mxu0 0.0
    %1129 = vmatpush.msra.mxu0 0.0
    %1130 = vmatpush.msra.mxu0 0.0
    %1131 = vmatpush.msra.mxu0 0.0
    %1132 = vmatpush.msra.mxu0 %v1059
    %1133 = vmatmul.f32.gmra.mxu0 %v1066
    %v1134 = vpop.f32.mrf.mxu0
    %v1135 = vadd.f32 0.0, %v1134
    %1136 = vmatmul.f32.gmra.mxu0 %v1069
    %v1137 = vpop.f32.mrf.mxu0
    %v1138 = vadd.f32 0.0, %v1137
    %1139 = vdwg.mxu0
    %v1140 = vadd.f32 %v1000, %v1089
    %v1141 = vadd.f32 %v1023, %v1112
    %v1142 = vadd.f32 %v1046, %v1135
    %v1143 = vadd.f32 %v1003, %v1092
    %v1144 = vadd.f32 %v1026, %v1115
    %v1145 = vadd.f32 %v1049, %v1138
    %s1146 = scalar_lea.vmem %s3, 48
    %v1147 = vld [vmem:[%s1146] sm:$0xff]
    %v1148 = vld [vmem:[%s1146 + $0x8] sm:$0xff]
    %1149 = vrot.lane.b32.xlu0 %v878, 110
    %v1150 = vpop.permute.xlu0 %1149
    %1151 = vrot.lane.b32.xlu0 %v879, 110
    %v1152 = vpop.permute.xlu0 %1151
    %1153 = vrot.lane.b32.xlu0 %v880, 110
    %v1154 = vpop.permute.xlu0 %1153
    %v1155 = vsel %vm318, %v1150, %v1152
    %v1156 = vsel %vm318, %v1152, %v1154
    %v1161 = vsel %vm900, %v1147, 0
    %v1164 = vsel %vm900, %v1148, 0
    %1166 = vmatpush.msra.mxu0 0.0
    %1167 = vmatpush.msra.mxu0 0.0
    %1168 = vmatpush.msra.mxu0 0.0
    %1169 = vmatpush.msra.mxu0 0.0
    %1170 = vmatpush.msra.mxu0 0.0
    %1171 = vmatpush.msra.mxu0 0.0
    %1172 = vmatpush.msra.mxu0 0.0
    %1173 = vmatpush.msra.mxu0 0.0
    %1174 = vmatpush.msra.mxu0 0.0
    %1175 = vmatpush.msra.mxu0 0.0
    %1176 = vmatpush.msra.mxu0 0.0
    %1177 = vmatpush.msra.mxu0 0.0
    %1178 = vmatpush.msra.mxu0 0.0
    %1179 = vmatpush.msra.mxu0 0.0
    %1180 = vmatpush.msra.mxu0 0.0
    %1181 = vmatpush.msra.mxu0 %v1155
    %1182 = vmatmul.f32.gmra.mxu0 %v1161
    %v1183 = vpop.f32.mrf.mxu0
    %v1184 = vadd.f32 0.0, %v1183
    %1185 = vmatmul.f32.gmra.mxu0 %v1164
    %v1186 = vpop.f32.mrf.mxu0
    %v1187 = vadd.f32 0.0, %v1186
    %1188 = vdwg.mxu0
    %1189 = vmatpush.msra.mxu0 0.0
    %1190 = vmatpush.msra.mxu0 0.0
    %1191 = vmatpush.msra.mxu0 0.0
    %1192 = vmatpush.msra.mxu0 0.0
    %1193 = vmatpush.msra.mxu0 0.0
    %1194 = vmatpush.msra.mxu0 0.0
    %1195 = vmatpush.msra.mxu0 0.0
    %1196 = vmatpush.msra.mxu0 0.0
    %1197 = vmatpush.msra.mxu0 0.0
    %1198 = vmatpush.msra.mxu0 0.0
    %1199 = vmatpush.msra.mxu0 0.0
    %1200 = vmatpush.msra.mxu0 0.0
    %1201 = vmatpush.msra.mxu0 0.0
    %1202 = vmatpush.msra.mxu0 0.0
    %1203 = vmatpush.msra.mxu0 0.0
    %1204 = vmatpush.msra.mxu0 %v1156
    %1205 = vmatmul.f32.gmra.mxu0 %v1161
    %v1206 = vpop.f32.mrf.mxu0
    %v1207 = vadd.f32 0.0, %v1206
    %1208 = vmatmul.f32.gmra.mxu0 %v1164
    %v1209 = vpop.f32.mrf.mxu0
    %v1210 = vadd.f32 0.0, %v1209
    %1211 = vdwg.mxu0
    %1212 = vmatpush.msra.mxu0 0.0
    %1213 = vmatpush.msra.mxu0 0.0
    %1214 = vmatpush.msra.mxu0 0.0
    %1215 = vmatpush.msra.mxu0 0.0
    %1216 = vmatpush.msra.mxu0 0.0
    %1217 = vmatpush.msra.mxu0 0.0
    %1218 = vmatpush.msra.mxu0 0.0
    %1219 = vmatpush.msra.mxu0 0.0
    %1220 = vmatpush.msra.mxu0 0.0
    %1221 = vmatpush.msra.mxu0 0.0
    %1222 = vmatpush.msra.mxu0 0.0
    %1223 = vmatpush.msra.mxu0 0.0
    %1224 = vmatpush.msra.mxu0 0.0
    %1225 = vmatpush.msra.mxu0 0.0
    %1226 = vmatpush.msra.mxu0 0.0
    %1227 = vmatpush.msra.mxu0 %v1154
    %1228 = vmatmul.f32.gmra.mxu0 %v1161
    %v1229 = vpop.f32.mrf.mxu0
    %v1230 = vadd.f32 0.0, %v1229
    %1231 = vmatmul.f32.gmra.mxu0 %v1164
    %v1232 = vpop.f32.mrf.mxu0
    %v1233 = vadd.f32 0.0, %v1232
    %1234 = vdwg.mxu0
    %v1235 = vadd.f32 %v1140, %v1184
    %v1236 = vadd.f32 %v1141, %v1207
    %v1237 = vadd.f32 %v1142, %v1230
    %v1238 = vadd.f32 %v1143, %v1187
    %v1239 = vadd.f32 %v1144, %v1210
    %v1240 = vadd.f32 %v1145, %v1233
    %s1241 = scalar_lea.vmem %s3, 64
    %v1242 = vld [vmem:[%s1241] sm:$0xff]
    %v1243 = vld [vmem:[%s1241 + $0x8] sm:$0xff]
    %1244 = vrot.lane.b32.xlu0 %v878, 109
    %v1245 = vpop.permute.xlu0 %1244
    %1246 = vrot.lane.b32.xlu0 %v879, 109
    %v1247 = vpop.permute.xlu0 %1246
    %1248 = vrot.lane.b32.xlu0 %v880, 109
    %v1249 = vpop.permute.xlu0 %1248
    %v1250 = vsel %vm407, %v1245, %v1247
    %v1251 = vsel %vm407, %v1247, %v1249
    %v1256 = vsel %vm900, %v1242, 0
    %v1259 = vsel %vm900, %v1243, 0
    %1261 = vmatpush.msra.mxu0 0.0
    %1262 = vmatpush.msra.mxu0 0.0
    %1263 = vmatpush.msra.mxu0 0.0
    %1264 = vmatpush.msra.mxu0 0.0
    %1265 = vmatpush.msra.mxu0 0.0
    %1266 = vmatpush.msra.mxu0 0.0
    %1267 = vmatpush.msra.mxu0 0.0
    %1268 = vmatpush.msra.mxu0 0.0
    %1269 = vmatpush.msra.mxu0 0.0
    %1270 = vmatpush.msra.mxu0 0.0
    %1271 = vmatpush.msra.mxu0 0.0
    %1272 = vmatpush.msra.mxu0 0.0
    %1273 = vmatpush.msra.mxu0 0.0
    %1274 = vmatpush.msra.mxu0 0.0
    %1275 = vmatpush.msra.mxu0 0.0
    %1276 = vmatpush.msra.mxu0 %v1250
    %1277 = vmatmul.f32.gmra.mxu0 %v1256
    %v1278 = vpop.f32.mrf.mxu0
    %v1279 = vadd.f32 0.0, %v1278
    %1280 = vmatmul.f32.gmra.mxu0 %v1259
    %v1281 = vpop.f32.mrf.mxu0
    %v1282 = vadd.f32 0.0, %v1281
    %1283 = vdwg.mxu0
    %1284 = vmatpush.msra.mxu0 0.0
    %1285 = vmatpush.msra.mxu0 0.0
    %1286 = vmatpush.msra.mxu0 0.0
    %1287 = vmatpush.msra.mxu0 0.0
    %1288 = vmatpush.msra.mxu0 0.0
    %1289 = vmatpush.msra.mxu0 0.0
    %1290 = vmatpush.msra.mxu0 0.0
    %1291 = vmatpush.msra.mxu0 0.0
    %1292 = vmatpush.msra.mxu0 0.0
    %1293 = vmatpush.msra.mxu0 0.0
    %1294 = vmatpush.msra.mxu0 0.0
    %1295 = vmatpush.msra.mxu0 0.0
    %1296 = vmatpush.msra.mxu0 0.0
    %1297 = vmatpush.msra.mxu0 0.0
    %1298 = vmatpush.msra.mxu0 0.0
    %1299 = vmatpush.msra.mxu0 %v1251
    %1300 = vmatmul.f32.gmra.mxu0 %v1256
    %v1301 = vpop.f32.mrf.mxu0
    %v1302 = vadd.f32 0.0, %v1301
    %1303 = vmatmul.f32.gmra.mxu0 %v1259
    %v1304 = vpop.f32.mrf.mxu0
    %v1305 = vadd.f32 0.0, %v1304
    %1306 = vdwg.mxu0
    %1307 = vmatpush.msra.mxu0 0.0
    %1308 = vmatpush.msra.mxu0 0.0
    %1309 = vmatpush.msra.mxu0 0.0
    %1310 = vmatpush.msra.mxu0 0.0
    %1311 = vmatpush.msra.mxu0 0.0
    %1312 = vmatpush.msra.mxu0 0.0
    %1313 = vmatpush.msra.mxu0 0.0
    %1314 = vmatpush.msra.mxu0 0.0
    %1315 = vmatpush.msra.mxu0 0.0
    %1316 = vmatpush.msra.mxu0 0.0
    %1317 = vmatpush.msra.mxu0 0.0
    %1318 = vmatpush.msra.mxu0 0.0
    %1319 = vmatpush.msra.mxu0 0.0
    %1320 = vmatpush.msra.mxu0 0.0
    %1321 = vmatpush.msra.mxu0 0.0
    %1322 = vmatpush.msra.mxu0 %v1249
    %1323 = vmatmul.f32.gmra.mxu0 %v1256
    %v1324 = vpop.f32.mrf.mxu0
    %v1325 = vadd.f32 0.0, %v1324
    %1326 = vmatmul.f32.gmra.mxu0 %v1259
    %v1327 = vpop.f32.mrf.mxu0
    %v1328 = vadd.f32 0.0, %v1327
    %1329 = vdwg.mxu0
    %v1330 = vadd.f32 %v1235, %v1279
    %v1331 = vadd.f32 %v1236, %v1302
    %v1332 = vadd.f32 %v1237, %v1325
    %v1333 = vadd.f32 %v1238, %v1282
    %v1334 = vadd.f32 %v1239, %v1305
    %v1335 = vadd.f32 %v1240, %v1328
    %s1336 = scalar_lea.vmem %s3, 80
    %v1337 = vld [vmem:[%s1336] sm:$0xff]
    %v1338 = vld [vmem:[%s1336 + $0x8] sm:$0xff]
    %1339 = vrot.lane.b32.xlu0 %v878, 108
    %v1340 = vpop.permute.xlu0 %1339
    %1341 = vrot.lane.b32.xlu0 %v879, 108
    %v1342 = vpop.permute.xlu0 %1341
    %1343 = vrot.lane.b32.xlu0 %v880, 108
    %v1344 = vpop.permute.xlu0 %1343
    %v1345 = vsel %vm496, %v1340, %v1342
    %v1346 = vsel %vm496, %v1342, %v1344
    %v1351 = vsel %vm900, %v1337, 0
    %v1354 = vsel %vm900, %v1338, 0
    %1356 = vmatpush.msra.mxu0 0.0
    %1357 = vmatpush.msra.mxu0 0.0
    %1358 = vmatpush.msra.mxu0 0.0
    %1359 = vmatpush.msra.mxu0 0.0
    %1360 = vmatpush.msra.mxu0 0.0
    %1361 = vmatpush.msra.mxu0 0.0
    %1362 = vmatpush.msra.mxu0 0.0
    %1363 = vmatpush.msra.mxu0 0.0
    %1364 = vmatpush.msra.mxu0 0.0
    %1365 = vmatpush.msra.mxu0 0.0
    %1366 = vmatpush.msra.mxu0 0.0
    %1367 = vmatpush.msra.mxu0 0.0
    %1368 = vmatpush.msra.mxu0 0.0
    %1369 = vmatpush.msra.mxu0 0.0
    %1370 = vmatpush.msra.mxu0 0.0
    %1371 = vmatpush.msra.mxu0 %v1345
    %1372 = vmatmul.f32.gmra.mxu0 %v1351
    %v1373 = vpop.f32.mrf.mxu0
    %v1374 = vadd.f32 0.0, %v1373
    %1375 = vmatmul.f32.gmra.mxu0 %v1354
    %v1376 = vpop.f32.mrf.mxu0
    %v1377 = vadd.f32 0.0, %v1376
    %1378 = vdwg.mxu0
    %1379 = vmatpush.msra.mxu0 0.0
    %1380 = vmatpush.msra.mxu0 0.0
    %1381 = vmatpush.msra.mxu0 0.0
    %1382 = vmatpush.msra.mxu0 0.0
    %1383 = vmatpush.msra.mxu0 0.0
    %1384 = vmatpush.msra.mxu0 0.0
    %1385 = vmatpush.msra.mxu0 0.0
    %1386 = vmatpush.msra.mxu0 0.0
    %1387 = vmatpush.msra.mxu0 0.0
    %1388 = vmatpush.msra.mxu0 0.0
    %1389 = vmatpush.msra.mxu0 0.0
    %1390 = vmatpush.msra.mxu0 0.0
    %1391 = vmatpush.msra.mxu0 0.0
    %1392 = vmatpush.msra.mxu0 0.0
    %1393 = vmatpush.msra.mxu0 0.0
    %1394 = vmatpush.msra.mxu0 %v1346
    %1395 = vmatmul.f32.gmra.mxu0 %v1351
    %v1396 = vpop.f32.mrf.mxu0
    %v1397 = vadd.f32 0.0, %v1396
    %1398 = vmatmul.f32.gmra.mxu0 %v1354
    %v1399 = vpop.f32.mrf.mxu0
    %v1400 = vadd.f32 0.0, %v1399
    %1401 = vdwg.mxu0
    %1402 = vmatpush.msra.mxu0 0.0
    %1403 = vmatpush.msra.mxu0 0.0
    %1404 = vmatpush.msra.mxu0 0.0
    %1405 = vmatpush.msra.mxu0 0.0
    %1406 = vmatpush.msra.mxu0 0.0
    %1407 = vmatpush.msra.mxu0 0.0
    %1408 = vmatpush.msra.mxu0 0.0
    %1409 = vmatpush.msra.mxu0 0.0
    %1410 = vmatpush.msra.mxu0 0.0
    %1411 = vmatpush.msra.mxu0 0.0
    %1412 = vmatpush.msra.mxu0 0.0
    %1413 = vmatpush.msra.mxu0 0.0
    %1414 = vmatpush.msra.mxu0 0.0
    %1415 = vmatpush.msra.mxu0 0.0
    %1416 = vmatpush.msra.mxu0 0.0
    %1417 = vmatpush.msra.mxu0 %v1344
    %1418 = vmatmul.f32.gmra.mxu0 %v1351
    %v1419 = vpop.f32.mrf.mxu0
    %v1420 = vadd.f32 0.0, %v1419
    %1421 = vmatmul.f32.gmra.mxu0 %v1354
    %v1422 = vpop.f32.mrf.mxu0
    %v1423 = vadd.f32 0.0, %v1422
    %1424 = vdwg.mxu0
    %v1425 = vadd.f32 %v1330, %v1374
    %v1426 = vadd.f32 %v1331, %v1397
    %v1427 = vadd.f32 %v1332, %v1420
    %v1428 = vadd.f32 %v1333, %v1377
    %v1429 = vadd.f32 %v1334, %v1400
    %v1430 = vadd.f32 %v1335, %v1423
    %s1431 = scalar_lea.vmem %s3, 96
    %v1432 = vld [vmem:[%s1431] sm:$0xff]
    %v1433 = vld [vmem:[%s1431 + $0x8] sm:$0xff]
    %1434 = vrot.lane.b32.xlu0 %v878, 92
    %v1435 = vpop.permute.xlu0 %1434
    %1436 = vrot.lane.b32.xlu0 %v879, 92
    %v1437 = vpop.permute.xlu0 %1436
    %1438 = vrot.lane.b32.xlu0 %v880, 92
    %v1439 = vpop.permute.xlu0 %1438
    %v1440 = vsel %vm585, %v1435, %v1437
    %v1441 = vsel %vm585, %v1437, %v1439
    %v1446 = vsel %vm900, %v1432, 0
    %v1449 = vsel %vm900, %v1433, 0
    %1451 = vmatpush.msra.mxu0 0.0
    %1452 = vmatpush.msra.mxu0 0.0
    %1453 = vmatpush.msra.mxu0 0.0
    %1454 = vmatpush.msra.mxu0 0.0
    %1455 = vmatpush.msra.mxu0 0.0
    %1456 = vmatpush.msra.mxu0 0.0
    %1457 = vmatpush.msra.mxu0 0.0
    %1458 = vmatpush.msra.mxu0 0.0
    %1459 = vmatpush.msra.mxu0 0.0
    %1460 = vmatpush.msra.mxu0 0.0
    %1461 = vmatpush.msra.mxu0 0.0
    %1462 = vmatpush.msra.mxu0 0.0
    %1463 = vmatpush.msra.mxu0 0.0
    %1464 = vmatpush.msra.mxu0 0.0
    %1465 = vmatpush.msra.mxu0 0.0
    %1466 = vmatpush.msra.mxu0 %v1440
    %1467 = vmatmul.f32.gmra.mxu0 %v1446
    %v1468 = vpop.f32.mrf.mxu0
    %v1469 = vadd.f32 0.0, %v1468
    %1470 = vmatmul.f32.gmra.mxu0 %v1449
    %v1471 = vpop.f32.mrf.mxu0
    %v1472 = vadd.f32 0.0, %v1471
    %1473 = vdwg.mxu0
    %1474 = vmatpush.msra.mxu0 0.0
    %1475 = vmatpush.msra.mxu0 0.0
    %1476 = vmatpush.msra.mxu0 0.0
    %1477 = vmatpush.msra.mxu0 0.0
    %1478 = vmatpush.msra.mxu0 0.0
    %1479 = vmatpush.msra.mxu0 0.0
    %1480 = vmatpush.msra.mxu0 0.0
    %1481 = vmatpush.msra.mxu0 0.0
    %1482 = vmatpush.msra.mxu0 0.0
    %1483 = vmatpush.msra.mxu0 0.0
    %1484 = vmatpush.msra.mxu0 0.0
    %1485 = vmatpush.msra.mxu0 0.0
    %1486 = vmatpush.msra.mxu0 0.0
    %1487 = vmatpush.msra.mxu0 0.0
    %1488 = vmatpush.msra.mxu0 0.0
    %1489 = vmatpush.msra.mxu0 %v1441
    %1490 = vmatmul.f32.gmra.mxu0 %v1446
    %v1491 = vpop.f32.mrf.mxu0
    %v1492 = vadd.f32 0.0, %v1491
    %1493 = vmatmul.f32.gmra.mxu0 %v1449
    %v1494 = vpop.f32.mrf.mxu0
    %v1495 = vadd.f32 0.0, %v1494
    %1496 = vdwg.mxu0
    %1497 = vmatpush.msra.mxu0 0.0
    %1498 = vmatpush.msra.mxu0 0.0
    %1499 = vmatpush.msra.mxu0 0.0
    %1500 = vmatpush.msra.mxu0 0.0
    %1501 = vmatpush.msra.mxu0 0.0
    %1502 = vmatpush.msra.mxu0 0.0
    %1503 = vmatpush.msra.mxu0 0.0
    %1504 = vmatpush.msra.mxu0 0.0
    %1505 = vmatpush.msra.mxu0 0.0
    %1506 = vmatpush.msra.mxu0 0.0
    %1507 = vmatpush.msra.mxu0 0.0
    %1508 = vmatpush.msra.mxu0 0.0
    %1509 = vmatpush.msra.mxu0 0.0
    %1510 = vmatpush.msra.mxu0 0.0
    %1511 = vmatpush.msra.mxu0 0.0
    %1512 = vmatpush.msra.mxu0 %v1439
    %1513 = vmatmul.f32.gmra.mxu0 %v1446
    %v1514 = vpop.f32.mrf.mxu0
    %v1515 = vadd.f32 0.0, %v1514
    %1516 = vmatmul.f32.gmra.mxu0 %v1449
    %v1517 = vpop.f32.mrf.mxu0
    %v1518 = vadd.f32 0.0, %v1517
    %1519 = vdwg.mxu0
    %v1520 = vadd.f32 %v1425, %v1469
    %v1521 = vadd.f32 %v1426, %v1492
    %v1522 = vadd.f32 %v1427, %v1515
    %v1523 = vadd.f32 %v1428, %v1472
    %v1524 = vadd.f32 %v1429, %v1495
    %v1525 = vadd.f32 %v1430, %v1518
    %s1526 = scalar_lea.vmem %s3, 112
    %v1527 = vld [vmem:[%s1526] sm:$0xff]
    %v1528 = vld [vmem:[%s1526 + $0x8] sm:$0xff]
    %1529 = vrot.lane.b32.xlu0 %v878, 91
    %v1530 = vpop.permute.xlu0 %1529
    %1531 = vrot.lane.b32.xlu0 %v879, 91
    %v1532 = vpop.permute.xlu0 %1531
    %1533 = vrot.lane.b32.xlu0 %v880, 91
    %v1534 = vpop.permute.xlu0 %1533
    %v1535 = vsel %vm674, %v1530, %v1532
    %v1536 = vsel %vm674, %v1532, %v1534
    %v1541 = vsel %vm900, %v1527, 0
    %v1544 = vsel %vm900, %v1528, 0
    %1546 = vmatpush.msra.mxu0 0.0
    %1547 = vmatpush.msra.mxu0 0.0
    %1548 = vmatpush.msra.mxu0 0.0
    %1549 = vmatpush.msra.mxu0 0.0
    %1550 = vmatpush.msra.mxu0 0.0
    %1551 = vmatpush.msra.mxu0 0.0
    %1552 = vmatpush.msra.mxu0 0.0
    %1553 = vmatpush.msra.mxu0 0.0
    %1554 = vmatpush.msra.mxu0 0.0
    %1555 = vmatpush.msra.mxu0 0.0
    %1556 = vmatpush.msra.mxu0 0.0
    %1557 = vmatpush.msra.mxu0 0.0
    %1558 = vmatpush.msra.mxu0 0.0
    %1559 = vmatpush.msra.mxu0 0.0
    %1560 = vmatpush.msra.mxu0 0.0
    %1561 = vmatpush.msra.mxu0 %v1535
    %1562 = vmatmul.f32.gmra.mxu0 %v1541
    %v1563 = vpop.f32.mrf.mxu0
    %v1564 = vadd.f32 0.0, %v1563
    %1565 = vmatmul.f32.gmra.mxu0 %v1544
    %v1566 = vpop.f32.mrf.mxu0
    %v1567 = vadd.f32 0.0, %v1566
    %1568 = vdwg.mxu0
    %1569 = vmatpush.msra.mxu0 0.0
    %1570 = vmatpush.msra.mxu0 0.0
    %1571 = vmatpush.msra.mxu0 0.0
    %1572 = vmatpush.msra.mxu0 0.0
    %1573 = vmatpush.msra.mxu0 0.0
    %1574 = vmatpush.msra.mxu0 0.0
    %1575 = vmatpush.msra.mxu0 0.0
    %1576 = vmatpush.msra.mxu0 0.0
    %1577 = vmatpush.msra.mxu0 0.0
    %1578 = vmatpush.msra.mxu0 0.0
    %1579 = vmatpush.msra.mxu0 0.0
    %1580 = vmatpush.msra.mxu0 0.0
    %1581 = vmatpush.msra.mxu0 0.0
    %1582 = vmatpush.msra.mxu0 0.0
    %1583 = vmatpush.msra.mxu0 0.0
    %1584 = vmatpush.msra.mxu0 %v1536
    %1585 = vmatmul.f32.gmra.mxu0 %v1541
    %v1586 = vpop.f32.mrf.mxu0
    %v1587 = vadd.f32 0.0, %v1586
    %1588 = vmatmul.f32.gmra.mxu0 %v1544
    %v1589 = vpop.f32.mrf.mxu0
    %v1590 = vadd.f32 0.0, %v1589
    %1591 = vdwg.mxu0
    %1592 = vmatpush.msra.mxu0 0.0
    %1593 = vmatpush.msra.mxu0 0.0
    %1594 = vmatpush.msra.mxu0 0.0
    %1595 = vmatpush.msra.mxu0 0.0
    %1596 = vmatpush.msra.mxu0 0.0
    %1597 = vmatpush.msra.mxu0 0.0
    %1598 = vmatpush.msra.mxu0 0.0
    %1599 = vmatpush.msra.mxu0 0.0
    %1600 = vmatpush.msra.mxu0 0.0
    %1601 = vmatpush.msra.mxu0 0.0
    %1602 = vmatpush.msra.mxu0 0.0
    %1603 = vmatpush.msra.mxu0 0.0
    %1604 = vmatpush.msra.mxu0 0.0
    %1605 = vmatpush.msra.mxu0 0.0
    %1606 = vmatpush.msra.mxu0 0.0
    %1607 = vmatpush.msra.mxu0 %v1534
    %1608 = vmatmul.f32.gmra.mxu0 %v1541
    %v1609 = vpop.f32.mrf.mxu0
    %v1610 = vadd.f32 0.0, %v1609
    %1611 = vmatmul.f32.gmra.mxu0 %v1544
    %v1612 = vpop.f32.mrf.mxu0
    %v1613 = vadd.f32 0.0, %v1612
    %1614 = vdwg.mxu0
    %v1615 = vadd.f32 %v1520, %v1564
    %v1616 = vadd.f32 %v1521, %v1587
    %v1617 = vadd.f32 %v1522, %v1610
    %v1618 = vadd.f32 %v1523, %v1567
    %v1619 = vadd.f32 %v1524, %v1590
    %v1620 = vadd.f32 %v1525, %v1613
    %s1621 = scalar_lea.vmem %s3, 128
    %v1622 = vld [vmem:[%s1621] sm:$0xff]
    %v1623 = vld [vmem:[%s1621 + $0x8] sm:$0xff]
    %1624 = vrot.lane.b32.xlu0 %v878, 90
    %v1625 = vpop.permute.xlu0 %1624
    %1626 = vrot.lane.b32.xlu0 %v879, 90
    %v1627 = vpop.permute.xlu0 %1626
    %1628 = vrot.lane.b32.xlu0 %v880, 90
    %v1629 = vpop.permute.xlu0 %1628
    %v1630 = vsel %vm763, %v1625, %v1627
    %v1631 = vsel %vm763, %v1627, %v1629
    %v1636 = vsel %vm900, %v1622, 0
    %v1639 = vsel %vm900, %v1623, 0
    %1641 = vmatpush.msra.mxu0 0.0
    %1642 = vmatpush.msra.mxu0 0.0
    %1643 = vmatpush.msra.mxu0 0.0
    %1644 = vmatpush.msra.mxu0 0.0
    %1645 = vmatpush.msra.mxu0 0.0
    %1646 = vmatpush.msra.mxu0 0.0
    %1647 = vmatpush.msra.mxu0 0.0
    %1648 = vmatpush.msra.mxu0 0.0
    %1649 = vmatpush.msra.mxu0 0.0
    %1650 = vmatpush.msra.mxu0 0.0
    %1651 = vmatpush.msra.mxu0 0.0
    %1652 = vmatpush.msra.mxu0 0.0
    %1653 = vmatpush.msra.mxu0 0.0
    %1654 = vmatpush.msra.mxu0 0.0
    %1655 = vmatpush.msra.mxu0 0.0
    %1656 = vmatpush.msra.mxu0 %v1630
    %1657 = vmatmul.f32.gmra.mxu0 %v1636
    %v1658 = vpop.f32.mrf.mxu0
    %v1659 = vadd.f32 0.0, %v1658
    %1660 = vmatmul.f32.gmra.mxu0 %v1639
    %v1661 = vpop.f32.mrf.mxu0
    %v1662 = vadd.f32 0.0, %v1661
    %1663 = vdwg.mxu0
    %1664 = vmatpush.msra.mxu0 0.0
    %1665 = vmatpush.msra.mxu0 0.0
    %1666 = vmatpush.msra.mxu0 0.0
    %1667 = vmatpush.msra.mxu0 0.0
    %1668 = vmatpush.msra.mxu0 0.0
    %1669 = vmatpush.msra.mxu0 0.0
    %1670 = vmatpush.msra.mxu0 0.0
    %1671 = vmatpush.msra.mxu0 0.0
    %1672 = vmatpush.msra.mxu0 0.0
    %1673 = vmatpush.msra.mxu0 0.0
    %1674 = vmatpush.msra.mxu0 0.0
    %1675 = vmatpush.msra.mxu0 0.0
    %1676 = vmatpush.msra.mxu0 0.0
    %1677 = vmatpush.msra.mxu0 0.0
    %1678 = vmatpush.msra.mxu0 0.0
    %1679 = vmatpush.msra.mxu0 %v1631
    %1680 = vmatmul.f32.gmra.mxu0 %v1636
    %v1681 = vpop.f32.mrf.mxu0
    %v1682 = vadd.f32 0.0, %v1681
    %1683 = vmatmul.f32.gmra.mxu0 %v1639
    %v1684 = vpop.f32.mrf.mxu0
    %v1685 = vadd.f32 0.0, %v1684
    %1686 = vdwg.mxu0
    %1687 = vmatpush.msra.mxu0 0.0
    %1688 = vmatpush.msra.mxu0 0.0
    %1689 = vmatpush.msra.mxu0 0.0
    %1690 = vmatpush.msra.mxu0 0.0
    %1691 = vmatpush.msra.mxu0 0.0
    %1692 = vmatpush.msra.mxu0 0.0
    %1693 = vmatpush.msra.mxu0 0.0
    %1694 = vmatpush.msra.mxu0 0.0
    %1695 = vmatpush.msra.mxu0 0.0
    %1696 = vmatpush.msra.mxu0 0.0
    %1697 = vmatpush.msra.mxu0 0.0
    %1698 = vmatpush.msra.mxu0 0.0
    %1699 = vmatpush.msra.mxu0 0.0
    %1700 = vmatpush.msra.mxu0 0.0
    %1701 = vmatpush.msra.mxu0 0.0
    %1702 = vmatpush.msra.mxu0 %v1629
    %1703 = vmatmul.f32.gmra.mxu0 %v1636
    %v1704 = vpop.f32.mrf.mxu0
    %v1705 = vadd.f32 0.0, %v1704
    %1706 = vmatmul.f32.gmra.mxu0 %v1639
    %v1707 = vpop.f32.mrf.mxu0
    %v1708 = vadd.f32 0.0, %v1707
    %1709 = vdwg.mxu0
    %v1710 = vadd.f32 %v1615, %v1659
    %v1711 = vadd.f32 %v1616, %v1682
    %v1712 = vadd.f32 %v1617, %v1705
    %v1713 = vadd.f32 %v1618, %v1662
    %v1714 = vadd.f32 %v1619, %v1685
    %v1715 = vadd.f32 %v1620, %v1708
    %1717 = vset.pattern.permute.xlu0 0
    %1718 = vperm.xlu0 %1717, %v36
    %v1719 = vpop.permute.xlu0 %1718
    %1722 = vset.pattern.permute.xlu0 0
    %1723 = vperm.xlu0 %1722, %v37
    %v1724 = vpop.permute.xlu0 %1723
    %v1726 = vadd.f32 %v1710, %v1719
    %v1727 = vadd.f32 %v1711, %v1719
    %v1728 = vadd.f32 %v1712, %v1719
    %v1729 = vadd.f32 %v1713, %v1724
    %v1730 = vadd.f32 %v1714, %v1724
    %v1731 = vadd.f32 %v1715, %v1724
    %v1732 = vmax.f32 %v1726, 0.0
    %v1733 = vmax.f32 %v1727, 0.0
    %v1734 = vmax.f32 %v1728, 0.0
    %v1735 = vmax.f32 %v1729, 0.0
    %v1736 = vmax.f32 %v1730, 0.0
    %v1737 = vmax.f32 %v1731, 0.0
    %v1739 = vperm.slane %v34, 0
    %v1740 = vperm.slane %v34, 1
    %v1741 = vperm.slane %v34, 2
    %v1745 = vmul.f32 %v1732, %v1739
    %v1746 = vmul.f32 %v1733, %v1740
    %v1747 = vmul.f32 %v1734, %v1741
    %v1748 = vmul.f32 %v1735, %v1739
    %v1749 = vmul.f32 %v1736, %v1740
    %v1750 = vmul.f32 %v1737, %v1741
    %v1751 = vadd.f32 %v1745, %v1746
    %vm1752 = vcmask 556032
    %v1753 = vsel %vm1752, %v1747, 0.0
    %v1754 = vadd.f32 %v1751, %v1753
    %1755 = vadd.xlane.f32.xlu0 %v1754
    %v1756 = vpop.xlane.xlu0 %1755
    %v1757 = vadd.f32 %v1748, %v1749
    %v1758 = vsel %vm1752, %v1750, 0.0
    %v1759 = vadd.f32 %v1757, %v1758
    %1760 = vadd.xlane.f32.xlu0 %v1759
    %v1761 = vpop.xlane.xlu0 %1760
    %v1762 = vmul.f32 %v1756, %v38
    %v1763 = vmul.f32 %v1756, %v39
    %v1764 = vmul.f32 %v1761, %v40
    %v1765 = vmul.f32 %v1761, %v41
    %v1766 = vadd.f32 %v1762, %v1764
    %v1767 = vrot.slane %v1766, 4
    %v1768 = vadd.f32 %v1766, %v1767
    %v1769 = vrot.slane %v1768, 2
    %v1770 = vadd.f32 %v1768, %v1769
    %v1771 = vrot.slane %v1770, 1
    %v1772 = vadd.f32 %v1770, %v1771
    %v1773 = vadd.f32 %v1763, %v1765
    %v1774 = vrot.slane %v1773, 4
    %v1775 = vadd.f32 %v1773, %v1774
    %v1776 = vrot.slane %v1775, 2
    %v1777 = vadd.f32 %v1775, %v1776
    %v1778 = vrot.slane %v1777, 1
    %v1779 = vadd.f32 %v1777, %v1778
    %v1781 = vperm.slane %v42, 0
    %v1782 = vperm.slane %v42, 1
    %v1785 = vadd.f32 %v1772, %v1781
    %v1786 = vadd.f32 %v1779, %v1782
    %v1789 = vrot.slane %v1786, 7
    %vm1790 = vcmask 1040384
    %v1791 = vsel %vm1790, %v1785, %v1789
    %v1793 = vlaneseq
    %vm1794 = vcmp.ge.s32.totalorder %v1793, 0
    %vm1795 = vcmp.lt.s32.totalorder %v1793, 256
    %vm1796 = vmand %vm1794, %vm1795
    %1797 = vst.msk [vmem:[#allocation3] ss:$2 sm:$0x3] %vm1796, %v1791
    %s1798 = scalar_lea.vmem %s0, 12
    %v1799 = vld [vmem:[%s1798] sm:$0xff]
    %v1800 = vld [vmem:[%s1798 + $0x8] sm:$0xf]
    %v1801 = vld [vmem:[%s1] sm:$0xff]
    %v1802 = vld [vmem:[%s50] sm:$0xff]
    %1805 = vst [vmem:[#allocation1] ss:$2 sm:$0xff] %v1799
    %s1806 = scalar_lea.vmem [#allocation1], 16
    %1807 = vst [vmem:[%s1806] ss:$2 sm:$0xff] %v1800
    %v1808 = vld.sshfl [vmem:[#allocation1] sm:$0xff pattern:$0x75316420]
    %v1809 = vld.sshfl [vmem:[#allocation1 + $0x8] sm:$0xff pattern:$0x75316420]
    %v1810 = vld.sshfl [vmem:[#allocation1 + $0x10] sm:$0xff pattern:$0x75316420]
    %1811 = vrot.lane.b32.xlu0 %v1808, 127
    %v1812 = vpop.permute.xlu0 %1811
    %1813 = vrot.lane.b32.xlu0 %v1809, 127
    %v1814 = vpop.permute.xlu0 %1813
    %1815 = vrot.lane.b32.xlu0 %v1810, 127
    %v1816 = vpop.permute.xlu0 %1815
    %v1817 = vsel %vm66, %v1812, %v1814
    %v1818 = vsel %vm66, %v1814, %v1816
    %v1820 = vsel %vm69, %v1802, 0
    %v1822 = vsel %vm73, %v1817, 0
    %v1824 = vsel %vm73, %v1818, 0
    %v1826 = vsel %vm73, %v1816, 0
    %1828 = vmatpush.msra.mxu0 0.0
    %1829 = vmatpush.msra.mxu0 0.0
    %1830 = vmatpush.msra.mxu0 0.0
    %1831 = vmatpush.msra.mxu0 0.0
    %1832 = vmatpush.msra.mxu0 0.0
    %1833 = vmatpush.msra.mxu0 0.0
    %1834 = vmatpush.msra.mxu0 0.0
    %1835 = vmatpush.msra.mxu0 0.0
    %1836 = vmatpush.msra.mxu0 0.0
    %1837 = vmatpush.msra.mxu0 0.0
    %1838 = vmatpush.msra.mxu0 0.0
    %1839 = vmatpush.msra.mxu0 0.0
    %1840 = vmatpush.msra.mxu0 0.0
    %1841 = vmatpush.msra.mxu0 0.0
    %1842 = vmatpush.msra.mxu0 0.0
    %1843 = vmatpush.msra.mxu0 %v1822
    %1844 = vmatmul.f32.gmra.mxu0 %v1820
    %v1845 = vpop.f32.mrf.mxu0
    %v1846 = vadd.f32 0.0, %v1845
    %1847 = vdwg.mxu0
    %1848 = vmatpush.msra.mxu0 0.0
    %1849 = vmatpush.msra.mxu0 0.0
    %1850 = vmatpush.msra.mxu0 0.0
    %1851 = vmatpush.msra.mxu0 0.0
    %1852 = vmatpush.msra.mxu0 0.0
    %1853 = vmatpush.msra.mxu0 0.0
    %1854 = vmatpush.msra.mxu0 0.0
    %1855 = vmatpush.msra.mxu0 0.0
    %1856 = vmatpush.msra.mxu0 0.0
    %1857 = vmatpush.msra.mxu0 0.0
    %1858 = vmatpush.msra.mxu0 0.0
    %1859 = vmatpush.msra.mxu0 0.0
    %1860 = vmatpush.msra.mxu0 0.0
    %1861 = vmatpush.msra.mxu0 0.0
    %1862 = vmatpush.msra.mxu0 0.0
    %1863 = vmatpush.msra.mxu0 %v1824
    %1864 = vmatmul.f32.gmra.mxu0 %v1820
    %v1865 = vpop.f32.mrf.mxu0
    %v1866 = vadd.f32 0.0, %v1865
    %1867 = vdwg.mxu0
    %1868 = vmatpush.msra.mxu0 0.0
    %1869 = vmatpush.msra.mxu0 0.0
    %1870 = vmatpush.msra.mxu0 0.0
    %1871 = vmatpush.msra.mxu0 0.0
    %1872 = vmatpush.msra.mxu0 0.0
    %1873 = vmatpush.msra.mxu0 0.0
    %1874 = vmatpush.msra.mxu0 0.0
    %1875 = vmatpush.msra.mxu0 0.0
    %1876 = vmatpush.msra.mxu0 0.0
    %1877 = vmatpush.msra.mxu0 0.0
    %1878 = vmatpush.msra.mxu0 0.0
    %1879 = vmatpush.msra.mxu0 0.0
    %1880 = vmatpush.msra.mxu0 0.0
    %1881 = vmatpush.msra.mxu0 0.0
    %1882 = vmatpush.msra.mxu0 0.0
    %1883 = vmatpush.msra.mxu0 %v1826
    %1884 = vmatmul.f32.gmra.mxu0 %v1820
    %v1885 = vpop.f32.mrf.mxu0
    %v1886 = vadd.f32 0.0, %v1885
    %1887 = vdwg.mxu0
    %1888 = vst [vmem:[#allocation1] ss:$2 sm:$0xff] %v1799
    %s1889 = scalar_lea.vmem [#allocation1], 16
    %1890 = vst [vmem:[%s1889] ss:$2 sm:$0xff] %v1800
    %v1891 = vld.sshfl [vmem:[#allocation1] sm:$0xff pattern:$0x75316420]
    %v1892 = vld.sshfl [vmem:[#allocation1 + $0x8] sm:$0xff pattern:$0x75316420]
    %v1893 = vld.sshfl [vmem:[#allocation1 + $0x10] sm:$0xff pattern:$0x75316420]
    %v1895 = vsel %vm69, %v1801, 0
    %v1897 = vsel %vm73, %v1891, 0
    %v1899 = vsel %vm73, %v1892, 0
    %v1901 = vsel %vm73, %v1893, 0
    %1903 = vmatpush.msra.mxu0 0.0
    %1904 = vmatpush.msra.mxu0 0.0
    %1905 = vmatpush.msra.mxu0 0.0
    %1906 = vmatpush.msra.mxu0 0.0
    %1907 = vmatpush.msra.mxu0 0.0
    %1908 = vmatpush.msra.mxu0 0.0
    %1909 = vmatpush.msra.mxu0 0.0
    %1910 = vmatpush.msra.mxu0 0.0
    %1911 = vmatpush.msra.mxu0 0.0
    %1912 = vmatpush.msra.mxu0 0.0
    %1913 = vmatpush.msra.mxu0 0.0
    %1914 = vmatpush.msra.mxu0 0.0
    %1915 = vmatpush.msra.mxu0 0.0
    %1916 = vmatpush.msra.mxu0 0.0
    %1917 = vmatpush.msra.mxu0 0.0
    %1918 = vmatpush.msra.mxu0 %v1897
    %1919 = vmatmul.f32.gmra.mxu0 %v1895
    %v1920 = vpop.f32.mrf.mxu0
    %v1921 = vadd.f32 %v1846, %v1920
    %1922 = vdwg.mxu0
    %1923 = vmatpush.msra.mxu0 0.0
    %1924 = vmatpush.msra.mxu0 0.0
    %1925 = vmatpush.msra.mxu0 0.0
    %1926 = vmatpush.msra.mxu0 0.0
    %1927 = vmatpush.msra.mxu0 0.0
    %1928 = vmatpush.msra.mxu0 0.0
    %1929 = vmatpush.msra.mxu0 0.0
    %1930 = vmatpush.msra.mxu0 0.0
    %1931 = vmatpush.msra.mxu0 0.0
    %1932 = vmatpush.msra.mxu0 0.0
    %1933 = vmatpush.msra.mxu0 0.0
    %1934 = vmatpush.msra.mxu0 0.0
    %1935 = vmatpush.msra.mxu0 0.0
    %1936 = vmatpush.msra.mxu0 0.0
    %1937 = vmatpush.msra.mxu0 0.0
    %1938 = vmatpush.msra.mxu0 %v1899
    %1939 = vmatmul.f32.gmra.mxu0 %v1895
    %v1940 = vpop.f32.mrf.mxu0
    %v1941 = vadd.f32 %v1866, %v1940
    %1942 = vdwg.mxu0
    %1943 = vmatpush.msra.mxu0 0.0
    %1944 = vmatpush.msra.mxu0 0.0
    %1945 = vmatpush.msra.mxu0 0.0
    %1946 = vmatpush.msra.mxu0 0.0
    %1947 = vmatpush.msra.mxu0 0.0
    %1948 = vmatpush.msra.mxu0 0.0
    %1949 = vmatpush.msra.mxu0 0.0
    %1950 = vmatpush.msra.mxu0 0.0
    %1951 = vmatpush.msra.mxu0 0.0
    %1952 = vmatpush.msra.mxu0 0.0
    %1953 = vmatpush.msra.mxu0 0.0
    %1954 = vmatpush.msra.mxu0 0.0
    %1955 = vmatpush.msra.mxu0 0.0
    %1956 = vmatpush.msra.mxu0 0.0
    %1957 = vmatpush.msra.mxu0 0.0
    %1958 = vmatpush.msra.mxu0 %v1901
    %1959 = vmatmul.f32.gmra.mxu0 %v1895
    %v1960 = vpop.f32.mrf.mxu0
    %v1961 = vadd.f32 %v1886, %v1960
    %1962 = vdwg.mxu0
    %v1963 = vld [vmem:[%s215] sm:$0xff]
    %1964 = vst [vmem:[#allocation1] ss:$2 sm:$0xff] %v1799
    %s1965 = scalar_lea.vmem [#allocation1], 16
    %1966 = vst [vmem:[%s1965] ss:$2 sm:$0xff] %v1800
    %v1967 = vld.sshfl [vmem:[#allocation1] sm:$0xff pattern:$0x75316420]
    %v1968 = vld.sshfl [vmem:[#allocation1 + $0x8] sm:$0xff pattern:$0x75316420]
    %v1969 = vld.sshfl [vmem:[#allocation1 + $0x10] sm:$0xff pattern:$0x75316420]
    %1970 = vrot.lane.b32.xlu0 %v1967, 126
    %v1971 = vpop.permute.xlu0 %1970
    %1972 = vrot.lane.b32.xlu0 %v1968, 126
    %v1973 = vpop.permute.xlu0 %1972
    %1974 = vrot.lane.b32.xlu0 %v1969, 126
    %v1975 = vpop.permute.xlu0 %1974
    %v1976 = vsel %vm229, %v1971, %v1973
    %v1977 = vsel %vm229, %v1973, %v1975
    %v1979 = vsel %vm69, %v1963, 0
    %v1981 = vsel %vm73, %v1976, 0
    %v1983 = vsel %vm73, %v1977, 0
    %v1985 = vsel %vm73, %v1975, 0
    %1987 = vmatpush.msra.mxu0 0.0
    %1988 = vmatpush.msra.mxu0 0.0
    %1989 = vmatpush.msra.mxu0 0.0
    %1990 = vmatpush.msra.mxu0 0.0
    %1991 = vmatpush.msra.mxu0 0.0
    %1992 = vmatpush.msra.mxu0 0.0
    %1993 = vmatpush.msra.mxu0 0.0
    %1994 = vmatpush.msra.mxu0 0.0
    %1995 = vmatpush.msra.mxu0 0.0
    %1996 = vmatpush.msra.mxu0 0.0
    %1997 = vmatpush.msra.mxu0 0.0
    %1998 = vmatpush.msra.mxu0 0.0
    %1999 = vmatpush.msra.mxu0 0.0
    %2000 = vmatpush.msra.mxu0 0.0
    %2001 = vmatpush.msra.mxu0 0.0
    %2002 = vmatpush.msra.mxu0 %v1981
    %2003 = vmatmul.f32.gmra.mxu0 %v1979
    %v2004 = vpop.f32.mrf.mxu0
    %v2005 = vadd.f32 0.0, %v2004
    %2006 = vdwg.mxu0
    %2007 = vmatpush.msra.mxu0 0.0
    %2008 = vmatpush.msra.mxu0 0.0
    %2009 = vmatpush.msra.mxu0 0.0
    %2010 = vmatpush.msra.mxu0 0.0
    %2011 = vmatpush.msra.mxu0 0.0
    %2012 = vmatpush.msra.mxu0 0.0
    %2013 = vmatpush.msra.mxu0 0.0
    %2014 = vmatpush.msra.mxu0 0.0
    %2015 = vmatpush.msra.mxu0 0.0
    %2016 = vmatpush.msra.mxu0 0.0
    %2017 = vmatpush.msra.mxu0 0.0
    %2018 = vmatpush.msra.mxu0 0.0
    %2019 = vmatpush.msra.mxu0 0.0
    %2020 = vmatpush.msra.mxu0 0.0
    %2021 = vmatpush.msra.mxu0 0.0
    %2022 = vmatpush.msra.mxu0 %v1983
    %2023 = vmatmul.f32.gmra.mxu0 %v1979
    %v2024 = vpop.f32.mrf.mxu0
    %v2025 = vadd.f32 0.0, %v2024
    %2026 = vdwg.mxu0
    %2027 = vmatpush.msra.mxu0 0.0
    %2028 = vmatpush.msra.mxu0 0.0
    %2029 = vmatpush.msra.mxu0 0.0
    %2030 = vmatpush.msra.mxu0 0.0
    %2031 = vmatpush.msra.mxu0 0.0
    %2032 = vmatpush.msra.mxu0 0.0
    %2033 = vmatpush.msra.mxu0 0.0
    %2034 = vmatpush.msra.mxu0 0.0
    %2035 = vmatpush.msra.mxu0 0.0
    %2036 = vmatpush.msra.mxu0 0.0
    %2037 = vmatpush.msra.mxu0 0.0
    %2038 = vmatpush.msra.mxu0 0.0
    %2039 = vmatpush.msra.mxu0 0.0
    %2040 = vmatpush.msra.mxu0 0.0
    %2041 = vmatpush.msra.mxu0 0.0
    %2042 = vmatpush.msra.mxu0 %v1985
    %2043 = vmatmul.f32.gmra.mxu0 %v1979
    %v2044 = vpop.f32.mrf.mxu0
    %v2045 = vadd.f32 0.0, %v2044
    %2046 = vdwg.mxu0
    %v2047 = vadd.f32 %v1921, %v2005
    %v2048 = vadd.f32 %v1941, %v2025
    %v2049 = vadd.f32 %v1961, %v2045
    %v2050 = vld [vmem:[%s304] sm:$0xff]
    %2051 = vst [vmem:[#allocation1] ss:$2 sm:$0xff] %v1799
    %s2052 = scalar_lea.vmem [#allocation1], 16
    %2053 = vst [vmem:[%s2052] ss:$2 sm:$0xff] %v1800
    %v2054 = vld.sshfl [vmem:[#allocation1] sm:$0xff pattern:$0x75316420]
    %v2055 = vld.sshfl [vmem:[#allocation1 + $0x8] sm:$0xff pattern:$0x75316420]
    %v2056 = vld.sshfl [vmem:[#allocation1 + $0x10] sm:$0xff pattern:$0x75316420]
    %2057 = vrot.lane.b32.xlu0 %v2054, 110
    %v2058 = vpop.permute.xlu0 %2057
    %2059 = vrot.lane.b32.xlu0 %v2055, 110
    %v2060 = vpop.permute.xlu0 %2059
    %2061 = vrot.lane.b32.xlu0 %v2056, 110
    %v2062 = vpop.permute.xlu0 %2061
    %v2063 = vsel %vm318, %v2058, %v2060
    %v2064 = vsel %vm318, %v2060, %v2062
    %v2066 = vsel %vm69, %v2050, 0
    %v2068 = vsel %vm73, %v2063, 0
    %v2070 = vsel %vm73, %v2064, 0
    %v2072 = vsel %vm73, %v2062, 0
    %2074 = vmatpush.msra.mxu0 0.0
    %2075 = vmatpush.msra.mxu0 0.0
    %2076 = vmatpush.msra.mxu0 0.0
    %2077 = vmatpush.msra.mxu0 0.0
    %2078 = vmatpush.msra.mxu0 0.0
    %2079 = vmatpush.msra.mxu0 0.0
    %2080 = vmatpush.msra.mxu0 0.0
    %2081 = vmatpush.msra.mxu0 0.0
    %2082 = vmatpush.msra.mxu0 0.0
    %2083 = vmatpush.msra.mxu0 0.0
    %2084 = vmatpush.msra.mxu0 0.0
    %2085 = vmatpush.msra.mxu0 0.0
    %2086 = vmatpush.msra.mxu0 0.0
    %2087 = vmatpush.msra.mxu0 0.0
    %2088 = vmatpush.msra.mxu0 0.0
    %2089 = vmatpush.msra.mxu0 %v2068
    %2090 = vmatmul.f32.gmra.mxu0 %v2066
    %v2091 = vpop.f32.mrf.mxu0
    %v2092 = vadd.f32 0.0, %v2091
    %2093 = vdwg.mxu0
    %2094 = vmatpush.msra.mxu0 0.0
    %2095 = vmatpush.msra.mxu0 0.0
    %2096 = vmatpush.msra.mxu0 0.0
    %2097 = vmatpush.msra.mxu0 0.0
    %2098 = vmatpush.msra.mxu0 0.0
    %2099 = vmatpush.msra.mxu0 0.0
    %2100 = vmatpush.msra.mxu0 0.0
    %2101 = vmatpush.msra.mxu0 0.0
    %2102 = vmatpush.msra.mxu0 0.0
    %2103 = vmatpush.msra.mxu0 0.0
    %2104 = vmatpush.msra.mxu0 0.0
    %2105 = vmatpush.msra.mxu0 0.0
    %2106 = vmatpush.msra.mxu0 0.0
    %2107 = vmatpush.msra.mxu0 0.0
    %2108 = vmatpush.msra.mxu0 0.0
    %2109 = vmatpush.msra.mxu0 %v2070
    %2110 = vmatmul.f32.gmra.mxu0 %v2066
    %v2111 = vpop.f32.mrf.mxu0
    %v2112 = vadd.f32 0.0, %v2111
    %2113 = vdwg.mxu0
    %2114 = vmatpush.msra.mxu0 0.0
    %2115 = vmatpush.msra.mxu0 0.0
    %2116 = vmatpush.msra.mxu0 0.0
    %2117 = vmatpush.msra.mxu0 0.0
    %2118 = vmatpush.msra.mxu0 0.0
    %2119 = vmatpush.msra.mxu0 0.0
    %2120 = vmatpush.msra.mxu0 0.0
    %2121 = vmatpush.msra.mxu0 0.0
    %2122 = vmatpush.msra.mxu0 0.0
    %2123 = vmatpush.msra.mxu0 0.0
    %2124 = vmatpush.msra.mxu0 0.0
    %2125 = vmatpush.msra.mxu0 0.0
    %2126 = vmatpush.msra.mxu0 0.0
    %2127 = vmatpush.msra.mxu0 0.0
    %2128 = vmatpush.msra.mxu0 0.0
    %2129 = vmatpush.msra.mxu0 %v2072
    %2130 = vmatmul.f32.gmra.mxu0 %v2066
    %v2131 = vpop.f32.mrf.mxu0
    %v2132 = vadd.f32 0.0, %v2131
    %2133 = vdwg.mxu0
    %v2134 = vadd.f32 %v2047, %v2092
    %v2135 = vadd.f32 %v2048, %v2112
    %v2136 = vadd.f32 %v2049, %v2132
    %v2137 = vld [vmem:[%s393] sm:$0xff]
    %2138 = vst [vmem:[#allocation1] ss:$2 sm:$0xff] %v1799
    %s2139 = scalar_lea.vmem [#allocation1], 16
    %2140 = vst [vmem:[%s2139] ss:$2 sm:$0xff] %v1800
    %v2141 = vld.sshfl [vmem:[#allocation1] sm:$0xff pattern:$0x75316420]
    %v2142 = vld.sshfl [vmem:[#allocation1 + $0x8] sm:$0xff pattern:$0x75316420]
    %v2143 = vld.sshfl [vmem:[#allocation1 + $0x10] sm:$0xff pattern:$0x75316420]
    %2144 = vrot.lane.b32.xlu0 %v2141, 109
    %v2145 = vpop.permute.xlu0 %2144
    %2146 = vrot.lane.b32.xlu0 %v2142, 109
    %v2147 = vpop.permute.xlu0 %2146
    %2148 = vrot.lane.b32.xlu0 %v2143, 109
    %v2149 = vpop.permute.xlu0 %2148
    %v2150 = vsel %vm407, %v2145, %v2147
    %v2151 = vsel %vm407, %v2147, %v2149
    %v2153 = vsel %vm69, %v2137, 0
    %v2155 = vsel %vm73, %v2150, 0
    %v2157 = vsel %vm73, %v2151, 0
    %v2159 = vsel %vm73, %v2149, 0
    %2161 = vmatpush.msra.mxu0 0.0
    %2162 = vmatpush.msra.mxu0 0.0
    %2163 = vmatpush.msra.mxu0 0.0
    %2164 = vmatpush.msra.mxu0 0.0
    %2165 = vmatpush.msra.mxu0 0.0
    %2166 = vmatpush.msra.mxu0 0.0
    %2167 = vmatpush.msra.mxu0 0.0
    %2168 = vmatpush.msra.mxu0 0.0
    %2169 = vmatpush.msra.mxu0 0.0
    %2170 = vmatpush.msra.mxu0 0.0
    %2171 = vmatpush.msra.mxu0 0.0
    %2172 = vmatpush.msra.mxu0 0.0
    %2173 = vmatpush.msra.mxu0 0.0
    %2174 = vmatpush.msra.mxu0 0.0
    %2175 = vmatpush.msra.mxu0 0.0
    %2176 = vmatpush.msra.mxu0 %v2155
    %2177 = vmatmul.f32.gmra.mxu0 %v2153
    %v2178 = vpop.f32.mrf.mxu0
    %v2179 = vadd.f32 0.0, %v2178
    %2180 = vdwg.mxu0
    %2181 = vmatpush.msra.mxu0 0.0
    %2182 = vmatpush.msra.mxu0 0.0
    %2183 = vmatpush.msra.mxu0 0.0
    %2184 = vmatpush.msra.mxu0 0.0
    %2185 = vmatpush.msra.mxu0 0.0
    %2186 = vmatpush.msra.mxu0 0.0
    %2187 = vmatpush.msra.mxu0 0.0
    %2188 = vmatpush.msra.mxu0 0.0
    %2189 = vmatpush.msra.mxu0 0.0
    %2190 = vmatpush.msra.mxu0 0.0
    %2191 = vmatpush.msra.mxu0 0.0
    %2192 = vmatpush.msra.mxu0 0.0
    %2193 = vmatpush.msra.mxu0 0.0
    %2194 = vmatpush.msra.mxu0 0.0
    %2195 = vmatpush.msra.mxu0 0.0
    %2196 = vmatpush.msra.mxu0 %v2157
    %2197 = vmatmul.f32.gmra.mxu0 %v2153
    %v2198 = vpop.f32.mrf.mxu0
    %v2199 = vadd.f32 0.0, %v2198
    %2200 = vdwg.mxu0
    %2201 = vmatpush.msra.mxu0 0.0
    %2202 = vmatpush.msra.mxu0 0.0
    %2203 = vmatpush.msra.mxu0 0.0
    %2204 = vmatpush.msra.mxu0 0.0
    %2205 = vmatpush.msra.mxu0 0.0
    %2206 = vmatpush.msra.mxu0 0.0
    %2207 = vmatpush.msra.mxu0 0.0
    %2208 = vmatpush.msra.mxu0 0.0
    %2209 = vmatpush.msra.mxu0 0.0
    %2210 = vmatpush.msra.mxu0 0.0
    %2211 = vmatpush.msra.mxu0 0.0
    %2212 = vmatpush.msra.mxu0 0.0
    %2213 = vmatpush.msra.mxu0 0.0
    %2214 = vmatpush.msra.mxu0 0.0
    %2215 = vmatpush.msra.mxu0 0.0
    %2216 = vmatpush.msra.mxu0 %v2159
    %2217 = vmatmul.f32.gmra.mxu0 %v2153
    %v2218 = vpop.f32.mrf.mxu0
    %v2219 = vadd.f32 0.0, %v2218
    %2220 = vdwg.mxu0
    %v2221 = vadd.f32 %v2134, %v2179
    %v2222 = vadd.f32 %v2135, %v2199
    %v2223 = vadd.f32 %v2136, %v2219
    %v2224 = vld [vmem:[%s482] sm:$0xff]
    %2225 = vst [vmem:[#allocation1] ss:$2 sm:$0xff] %v1799
    %s2226 = scalar_lea.vmem [#allocation1], 16
    %2227 = vst [vmem:[%s2226] ss:$2 sm:$0xff] %v1800
    %v2228 = vld.sshfl [vmem:[#allocation1] sm:$0xff pattern:$0x75316420]
    %v2229 = vld.sshfl [vmem:[#allocation1 + $0x8] sm:$0xff pattern:$0x75316420]
    %v2230 = vld.sshfl [vmem:[#allocation1 + $0x10] sm:$0xff pattern:$0x75316420]
    %2231 = vrot.lane.b32.xlu0 %v2228, 108
    %v2232 = vpop.permute.xlu0 %2231
    %2233 = vrot.lane.b32.xlu0 %v2229, 108
    %v2234 = vpop.permute.xlu0 %2233
    %2235 = vrot.lane.b32.xlu0 %v2230, 108
    %v2236 = vpop.permute.xlu0 %2235
    %v2237 = vsel %vm496, %v2232, %v2234
    %v2238 = vsel %vm496, %v2234, %v2236
    %v2240 = vsel %vm69, %v2224, 0
    %v2242 = vsel %vm73, %v2237, 0
    %v2244 = vsel %vm73, %v2238, 0
    %v2246 = vsel %vm73, %v2236, 0
    %2248 = vmatpush.msra.mxu0 0.0
    %2249 = vmatpush.msra.mxu0 0.0
    %2250 = vmatpush.msra.mxu0 0.0
    %2251 = vmatpush.msra.mxu0 0.0
    %2252 = vmatpush.msra.mxu0 0.0
    %2253 = vmatpush.msra.mxu0 0.0
    %2254 = vmatpush.msra.mxu0 0.0
    %2255 = vmatpush.msra.mxu0 0.0
    %2256 = vmatpush.msra.mxu0 0.0
    %2257 = vmatpush.msra.mxu0 0.0
    %2258 = vmatpush.msra.mxu0 0.0
    %2259 = vmatpush.msra.mxu0 0.0
    %2260 = vmatpush.msra.mxu0 0.0
    %2261 = vmatpush.msra.mxu0 0.0
    %2262 = vmatpush.msra.mxu0 0.0
    %2263 = vmatpush.msra.mxu0 %v2242
    %2264 = vmatmul.f32.gmra.mxu0 %v2240
    %v2265 = vpop.f32.mrf.mxu0
    %v2266 = vadd.f32 0.0, %v2265
    %2267 = vdwg.mxu0
    %2268 = vmatpush.msra.mxu0 0.0
    %2269 = vmatpush.msra.mxu0 0.0
    %2270 = vmatpush.msra.mxu0 0.0
    %2271 = vmatpush.msra.mxu0 0.0
    %2272 = vmatpush.msra.mxu0 0.0
    %2273 = vmatpush.msra.mxu0 0.0
    %2274 = vmatpush.msra.mxu0 0.0
    %2275 = vmatpush.msra.mxu0 0.0
    %2276 = vmatpush.msra.mxu0 0.0
    %2277 = vmatpush.msra.mxu0 0.0
    %2278 = vmatpush.msra.mxu0 0.0
    %2279 = vmatpush.msra.mxu0 0.0
    %2280 = vmatpush.msra.mxu0 0.0
    %2281 = vmatpush.msra.mxu0 0.0
    %2282 = vmatpush.msra.mxu0 0.0
    %2283 = vmatpush.msra.mxu0 %v2244
    %2284 = vmatmul.f32.gmra.mxu0 %v2240
    %v2285 = vpop.f32.mrf.mxu0
    %v2286 = vadd.f32 0.0, %v2285
    %2287 = vdwg.mxu0
    %2288 = vmatpush.msra.mxu0 0.0
    %2289 = vmatpush.msra.mxu0 0.0
    %2290 = vmatpush.msra.mxu0 0.0
    %2291 = vmatpush.msra.mxu0 0.0
    %2292 = vmatpush.msra.mxu0 0.0
    %2293 = vmatpush.msra.mxu0 0.0
    %2294 = vmatpush.msra.mxu0 0.0
    %2295 = vmatpush.msra.mxu0 0.0
    %2296 = vmatpush.msra.mxu0 0.0
    %2297 = vmatpush.msra.mxu0 0.0
    %2298 = vmatpush.msra.mxu0 0.0
    %2299 = vmatpush.msra.mxu0 0.0
    %2300 = vmatpush.msra.mxu0 0.0
    %2301 = vmatpush.msra.mxu0 0.0
    %2302 = vmatpush.msra.mxu0 0.0
    %2303 = vmatpush.msra.mxu0 %v2246
    %2304 = vmatmul.f32.gmra.mxu0 %v2240
    %v2305 = vpop.f32.mrf.mxu0
    %v2306 = vadd.f32 0.0, %v2305
    %2307 = vdwg.mxu0
    %v2308 = vadd.f32 %v2221, %v2266
    %v2309 = vadd.f32 %v2222, %v2286
    %v2310 = vadd.f32 %v2223, %v2306
    %v2311 = vld [vmem:[%s571] sm:$0xff]
    %2312 = vst [vmem:[#allocation1] ss:$2 sm:$0xff] %v1799
    %s2313 = scalar_lea.vmem [#allocation1], 16
    %2314 = vst [vmem:[%s2313] ss:$2 sm:$0xff] %v1800
    %v2315 = vld.sshfl [vmem:[#allocation1] sm:$0xff pattern:$0x75316420]
    %v2316 = vld.sshfl [vmem:[#allocation1 + $0x8] sm:$0xff pattern:$0x75316420]
    %v2317 = vld.sshfl [vmem:[#allocation1 + $0x10] sm:$0xff pattern:$0x75316420]
    %2318 = vrot.lane.b32.xlu0 %v2315, 92
    %v2319 = vpop.permute.xlu0 %2318
    %2320 = vrot.lane.b32.xlu0 %v2316, 92
    %v2321 = vpop.permute.xlu0 %2320
    %2322 = vrot.lane.b32.xlu0 %v2317, 92
    %v2323 = vpop.permute.xlu0 %2322
    %v2324 = vsel %vm585, %v2319, %v2321
    %v2325 = vsel %vm585, %v2321, %v2323
    %v2327 = vsel %vm69, %v2311, 0
    %v2329 = vsel %vm73, %v2324, 0
    %v2331 = vsel %vm73, %v2325, 0
    %v2333 = vsel %vm73, %v2323, 0
    %2335 = vmatpush.msra.mxu0 0.0
    %2336 = vmatpush.msra.mxu0 0.0
    %2337 = vmatpush.msra.mxu0 0.0
    %2338 = vmatpush.msra.mxu0 0.0
    %2339 = vmatpush.msra.mxu0 0.0
    %2340 = vmatpush.msra.mxu0 0.0
    %2341 = vmatpush.msra.mxu0 0.0
    %2342 = vmatpush.msra.mxu0 0.0
    %2343 = vmatpush.msra.mxu0 0.0
    %2344 = vmatpush.msra.mxu0 0.0
    %2345 = vmatpush.msra.mxu0 0.0
    %2346 = vmatpush.msra.mxu0 0.0
    %2347 = vmatpush.msra.mxu0 0.0
    %2348 = vmatpush.msra.mxu0 0.0
    %2349 = vmatpush.msra.mxu0 0.0
    %2350 = vmatpush.msra.mxu0 %v2329
    %2351 = vmatmul.f32.gmra.mxu0 %v2327
    %v2352 = vpop.f32.mrf.mxu0
    %v2353 = vadd.f32 0.0, %v2352
    %2354 = vdwg.mxu0
    %2355 = vmatpush.msra.mxu0 0.0
    %2356 = vmatpush.msra.mxu0 0.0
    %2357 = vmatpush.msra.mxu0 0.0
    %2358 = vmatpush.msra.mxu0 0.0
    %2359 = vmatpush.msra.mxu0 0.0
    %2360 = vmatpush.msra.mxu0 0.0
    %2361 = vmatpush.msra.mxu0 0.0
    %2362 = vmatpush.msra.mxu0 0.0
    %2363 = vmatpush.msra.mxu0 0.0
    %2364 = vmatpush.msra.mxu0 0.0
    %2365 = vmatpush.msra.mxu0 0.0
    %2366 = vmatpush.msra.mxu0 0.0
    %2367 = vmatpush.msra.mxu0 0.0
    %2368 = vmatpush.msra.mxu0 0.0
    %2369 = vmatpush.msra.mxu0 0.0
    %2370 = vmatpush.msra.mxu0 %v2331
    %2371 = vmatmul.f32.gmra.mxu0 %v2327
    %v2372 = vpop.f32.mrf.mxu0
    %v2373 = vadd.f32 0.0, %v2372
    %2374 = vdwg.mxu0
    %2375 = vmatpush.msra.mxu0 0.0
    %2376 = vmatpush.msra.mxu0 0.0
    %2377 = vmatpush.msra.mxu0 0.0
    %2378 = vmatpush.msra.mxu0 0.0
    %2379 = vmatpush.msra.mxu0 0.0
    %2380 = vmatpush.msra.mxu0 0.0
    %2381 = vmatpush.msra.mxu0 0.0
    %2382 = vmatpush.msra.mxu0 0.0
    %2383 = vmatpush.msra.mxu0 0.0
    %2384 = vmatpush.msra.mxu0 0.0
    %2385 = vmatpush.msra.mxu0 0.0
    %2386 = vmatpush.msra.mxu0 0.0
    %2387 = vmatpush.msra.mxu0 0.0
    %2388 = vmatpush.msra.mxu0 0.0
    %2389 = vmatpush.msra.mxu0 0.0
    %2390 = vmatpush.msra.mxu0 %v2333
    %2391 = vmatmul.f32.gmra.mxu0 %v2327
    %v2392 = vpop.f32.mrf.mxu0
    %v2393 = vadd.f32 0.0, %v2392
    %2394 = vdwg.mxu0
    %v2395 = vadd.f32 %v2308, %v2353
    %v2396 = vadd.f32 %v2309, %v2373
    %v2397 = vadd.f32 %v2310, %v2393
    %v2398 = vld [vmem:[%s660] sm:$0xff]
    %2399 = vst [vmem:[#allocation1] ss:$2 sm:$0xff] %v1799
    %s2400 = scalar_lea.vmem [#allocation1], 16
    %2401 = vst [vmem:[%s2400] ss:$2 sm:$0xff] %v1800
    %v2402 = vld.sshfl [vmem:[#allocation1] sm:$0xff pattern:$0x75316420]
    %v2403 = vld.sshfl [vmem:[#allocation1 + $0x8] sm:$0xff pattern:$0x75316420]
    %v2404 = vld.sshfl [vmem:[#allocation1 + $0x10] sm:$0xff pattern:$0x75316420]
    %2405 = vrot.lane.b32.xlu0 %v2402, 91
    %v2406 = vpop.permute.xlu0 %2405
    %2407 = vrot.lane.b32.xlu0 %v2403, 91
    %v2408 = vpop.permute.xlu0 %2407
    %2409 = vrot.lane.b32.xlu0 %v2404, 91
    %v2410 = vpop.permute.xlu0 %2409
    %v2411 = vsel %vm674, %v2406, %v2408
    %v2412 = vsel %vm674, %v2408, %v2410
    %v2414 = vsel %vm69, %v2398, 0
    %v2416 = vsel %vm73, %v2411, 0
    %v2418 = vsel %vm73, %v2412, 0
    %v2420 = vsel %vm73, %v2410, 0
    %2422 = vmatpush.msra.mxu0 0.0
    %2423 = vmatpush.msra.mxu0 0.0
    %2424 = vmatpush.msra.mxu0 0.0
    %2425 = vmatpush.msra.mxu0 0.0
    %2426 = vmatpush.msra.mxu0 0.0
    %2427 = vmatpush.msra.mxu0 0.0
    %2428 = vmatpush.msra.mxu0 0.0
    %2429 = vmatpush.msra.mxu0 0.0
    %2430 = vmatpush.msra.mxu0 0.0
    %2431 = vmatpush.msra.mxu0 0.0
    %2432 = vmatpush.msra.mxu0 0.0
    %2433 = vmatpush.msra.mxu0 0.0
    %2434 = vmatpush.msra.mxu0 0.0
    %2435 = vmatpush.msra.mxu0 0.0
    %2436 = vmatpush.msra.mxu0 0.0
    %2437 = vmatpush.msra.mxu0 %v2416
    %2438 = vmatmul.f32.gmra.mxu0 %v2414
    %v2439 = vpop.f32.mrf.mxu0
    %v2440 = vadd.f32 0.0, %v2439
    %2441 = vdwg.mxu0
    %2442 = vmatpush.msra.mxu0 0.0
    %2443 = vmatpush.msra.mxu0 0.0
    %2444 = vmatpush.msra.mxu0 0.0
    %2445 = vmatpush.msra.mxu0 0.0
    %2446 = vmatpush.msra.mxu0 0.0
    %2447 = vmatpush.msra.mxu0 0.0
    %2448 = vmatpush.msra.mxu0 0.0
    %2449 = vmatpush.msra.mxu0 0.0
    %2450 = vmatpush.msra.mxu0 0.0
    %2451 = vmatpush.msra.mxu0 0.0
    %2452 = vmatpush.msra.mxu0 0.0
    %2453 = vmatpush.msra.mxu0 0.0
    %2454 = vmatpush.msra.mxu0 0.0
    %2455 = vmatpush.msra.mxu0 0.0
    %2456 = vmatpush.msra.mxu0 0.0
    %2457 = vmatpush.msra.mxu0 %v2418
    %2458 = vmatmul.f32.gmra.mxu0 %v2414
    %v2459 = vpop.f32.mrf.mxu0
    %v2460 = vadd.f32 0.0, %v2459
    %2461 = vdwg.mxu0
    %2462 = vmatpush.msra.mxu0 0.0
    %2463 = vmatpush.msra.mxu0 0.0
    %2464 = vmatpush.msra.mxu0 0.0
    %2465 = vmatpush.msra.mxu0 0.0
    %2466 = vmatpush.msra.mxu0 0.0
    %2467 = vmatpush.msra.mxu0 0.0
    %2468 = vmatpush.msra.mxu0 0.0
    %2469 = vmatpush.msra.mxu0 0.0
    %2470 = vmatpush.msra.mxu0 0.0
    %2471 = vmatpush.msra.mxu0 0.0
    %2472 = vmatpush.msra.mxu0 0.0
    %2473 = vmatpush.msra.mxu0 0.0
    %2474 = vmatpush.msra.mxu0 0.0
    %2475 = vmatpush.msra.mxu0 0.0
    %2476 = vmatpush.msra.mxu0 0.0
    %2477 = vmatpush.msra.mxu0 %v2420
    %2478 = vmatmul.f32.gmra.mxu0 %v2414
    %v2479 = vpop.f32.mrf.mxu0
    %v2480 = vadd.f32 0.0, %v2479
    %2481 = vdwg.mxu0
    %v2482 = vadd.f32 %v2395, %v2440
    %v2483 = vadd.f32 %v2396, %v2460
    %v2484 = vadd.f32 %v2397, %v2480
    %v2485 = vld [vmem:[%s749] sm:$0xff]
    %2486 = vst [vmem:[#allocation1] ss:$2 sm:$0xff] %v1799
    %s2487 = scalar_lea.vmem [#allocation1], 16
    %2488 = vst [vmem:[%s2487] ss:$2 sm:$0xff] %v1800
    %v2489 = vld.sshfl [vmem:[#allocation1] sm:$0xff pattern:$0x75316420]
    %v2490 = vld.sshfl [vmem:[#allocation1 + $0x8] sm:$0xff pattern:$0x75316420]
    %v2491 = vld.sshfl [vmem:[#allocation1 + $0x10] sm:$0xff pattern:$0x75316420]
    %2492 = vrot.lane.b32.xlu0 %v2489, 90
    %v2493 = vpop.permute.xlu0 %2492
    %2494 = vrot.lane.b32.xlu0 %v2490, 90
    %v2495 = vpop.permute.xlu0 %2494
    %2496 = vrot.lane.b32.xlu0 %v2491, 90
    %v2497 = vpop.permute.xlu0 %2496
    %v2498 = vsel %vm763, %v2493, %v2495
    %v2499 = vsel %vm763, %v2495, %v2497
    %v2501 = vsel %vm69, %v2485, 0
    %v2503 = vsel %vm73, %v2498, 0
    %v2505 = vsel %vm73, %v2499, 0
    %v2507 = vsel %vm73, %v2497, 0
    %2509 = vmatpush.msra.mxu0 0.0
    %2510 = vmatpush.msra.mxu0 0.0
    %2511 = vmatpush.msra.mxu0 0.0
    %2512 = vmatpush.msra.mxu0 0.0
    %2513 = vmatpush.msra.mxu0 0.0
    %2514 = vmatpush.msra.mxu0 0.0
    %2515 = vmatpush.msra.mxu0 0.0
    %2516 = vmatpush.msra.mxu0 0.0
    %2517 = vmatpush.msra.mxu0 0.0
    %2518 = vmatpush.msra.mxu0 0.0
    %2519 = vmatpush.msra.mxu0 0.0
    %2520 = vmatpush.msra.mxu0 0.0
    %2521 = vmatpush.msra.mxu0 0.0
    %2522 = vmatpush.msra.mxu0 0.0
    %2523 = vmatpush.msra.mxu0 0.0
    %2524 = vmatpush.msra.mxu0 %v2503
    %2525 = vmatmul.f32.gmra.mxu0 %v2501
    %v2526 = vpop.f32.mrf.mxu0
    %v2527 = vadd.f32 0.0, %v2526
    %2528 = vdwg.mxu0
    %2529 = vmatpush.msra.mxu0 0.0
    %2530 = vmatpush.msra.mxu0 0.0
    %2531 = vmatpush.msra.mxu0 0.0
    %2532 = vmatpush.msra.mxu0 0.0
    %2533 = vmatpush.msra.mxu0 0.0
    %2534 = vmatpush.msra.mxu0 0.0
    %2535 = vmatpush.msra.mxu0 0.0
    %2536 = vmatpush.msra.mxu0 0.0
    %2537 = vmatpush.msra.mxu0 0.0
    %2538 = vmatpush.msra.mxu0 0.0
    %2539 = vmatpush.msra.mxu0 0.0
    %2540 = vmatpush.msra.mxu0 0.0
    %2541 = vmatpush.msra.mxu0 0.0
    %2542 = vmatpush.msra.mxu0 0.0
    %2543 = vmatpush.msra.mxu0 0.0
    %2544 = vmatpush.msra.mxu0 %v2505
    %2545 = vmatmul.f32.gmra.mxu0 %v2501
    %v2546 = vpop.f32.mrf.mxu0
    %v2547 = vadd.f32 0.0, %v2546
    %2548 = vdwg.mxu0
    %2549 = vmatpush.msra.mxu0 0.0
    %2550 = vmatpush.msra.mxu0 0.0
    %2551 = vmatpush.msra.mxu0 0.0
    %2552 = vmatpush.msra.mxu0 0.0
    %2553 = vmatpush.msra.mxu0 0.0
    %2554 = vmatpush.msra.mxu0 0.0
    %2555 = vmatpush.msra.mxu0 0.0
    %2556 = vmatpush.msra.mxu0 0.0
    %2557 = vmatpush.msra.mxu0 0.0
    %2558 = vmatpush.msra.mxu0 0.0
    %2559 = vmatpush.msra.mxu0 0.0
    %2560 = vmatpush.msra.mxu0 0.0
    %2561 = vmatpush.msra.mxu0 0.0
    %2562 = vmatpush.msra.mxu0 0.0
    %2563 = vmatpush.msra.mxu0 0.0
    %2564 = vmatpush.msra.mxu0 %v2507
    %2565 = vmatmul.f32.gmra.mxu0 %v2501
    %v2566 = vpop.f32.mrf.mxu0
    %v2567 = vadd.f32 0.0, %v2566
    %2568 = vdwg.mxu0
    %v2569 = vadd.f32 %v2482, %v2527
    %v2570 = vadd.f32 %v2483, %v2547
    %v2571 = vadd.f32 %v2484, %v2567
    %v2572 = vadd.f32 %v2569, %v841
    %v2573 = vadd.f32 %v2570, %v841
    %v2574 = vadd.f32 %v2571, %v841
    %v2575 = vmax.f32 %v2572, 0.0
    %v2576 = vmax.f32 %v2573, 0.0
    %v2577 = vmax.f32 %v2574, 0.0
    %v2578 = vmul.f32 %v850, %v2575
    %v2579 = vmul.f32 %v851, %v2576
    %v2580 = vmul.f32 %v852, %v2577
    %2584 = vrot.lane.b32.xlu0 %v2578, 19
    %v2585 = vpop.permute.xlu0 %2584
    %2586 = vrot.lane.b32.xlu0 %v2579, 19
    %v2587 = vpop.permute.xlu0 %2586
    %2588 = vrot.lane.b32.xlu0 %v2580, 19
    %v2589 = vpop.permute.xlu0 %2588
    %v2590 = vsel %vm43, %v2585, %v2587
    %v2591 = vsel %vm43, %v2587, %v2589
    %2595 = vst.msk [vmem:[#allocation2] sm:$0xff] %vm873, %v2585
    %2596 = vst [vmem:[#allocation2 + $0x8] sm:$0xff] %v2590
    %2597 = vst.msk [vmem:[#allocation2 + $0x10] sm:$0xff] %vm876, %v2591
    %v2598 = vld [vmem:[#allocation2] sm:$0xff]
    %v2599 = vld [vmem:[#allocation2 + $0x8] sm:$0xff]
    %v2600 = vld [vmem:[#allocation2 + $0x10] sm:$0xff]
    %v2601 = vld [vmem:[%s3] sm:$0xff]
    %v2602 = vld [vmem:[%s3 + $0x8] sm:$0xff]
    %v2603 = vld [vmem:[%s883] sm:$0xff]
    %v2604 = vld [vmem:[%s883 + $0x8] sm:$0xff]
    %2608 = vrot.lane.b32.xlu0 %v2598, 127
    %v2609 = vpop.permute.xlu0 %2608
    %2610 = vrot.lane.b32.xlu0 %v2599, 127
    %v2611 = vpop.permute.xlu0 %2610
    %2612 = vrot.lane.b32.xlu0 %v2600, 127
    %v2613 = vpop.permute.xlu0 %2612
    %v2614 = vsel %vm66, %v2609, %v2611
    %v2615 = vsel %vm66, %v2611, %v2613
    %v2620 = vsel %vm900, %v2603, 0
    %v2623 = vsel %vm900, %v2604, 0
    %2625 = vmatpush.msra.mxu0 0.0
    %2626 = vmatpush.msra.mxu0 0.0
    %2627 = vmatpush.msra.mxu0 0.0
    %2628 = vmatpush.msra.mxu0 0.0
    %2629 = vmatpush.msra.mxu0 0.0
    %2630 = vmatpush.msra.mxu0 0.0
    %2631 = vmatpush.msra.mxu0 0.0
    %2632 = vmatpush.msra.mxu0 0.0
    %2633 = vmatpush.msra.mxu0 0.0
    %2634 = vmatpush.msra.mxu0 0.0
    %2635 = vmatpush.msra.mxu0 0.0
    %2636 = vmatpush.msra.mxu0 0.0
    %2637 = vmatpush.msra.mxu0 0.0
    %2638 = vmatpush.msra.mxu0 0.0
    %2639 = vmatpush.msra.mxu0 0.0
    %2640 = vmatpush.msra.mxu0 %v2614
    %2641 = vmatmul.f32.gmra.mxu0 %v2620
    %v2642 = vpop.f32.mrf.mxu0
    %v2643 = vadd.f32 0.0, %v2642
    %2644 = vmatmul.f32.gmra.mxu0 %v2623
    %v2645 = vpop.f32.mrf.mxu0
    %v2646 = vadd.f32 0.0, %v2645
    %2647 = vdwg.mxu0
    %2648 = vmatpush.msra.mxu0 0.0
    %2649 = vmatpush.msra.mxu0 0.0
    %2650 = vmatpush.msra.mxu0 0.0
    %2651 = vmatpush.msra.mxu0 0.0
    %2652 = vmatpush.msra.mxu0 0.0
    %2653 = vmatpush.msra.mxu0 0.0
    %2654 = vmatpush.msra.mxu0 0.0
    %2655 = vmatpush.msra.mxu0 0.0
    %2656 = vmatpush.msra.mxu0 0.0
    %2657 = vmatpush.msra.mxu0 0.0
    %2658 = vmatpush.msra.mxu0 0.0
    %2659 = vmatpush.msra.mxu0 0.0
    %2660 = vmatpush.msra.mxu0 0.0
    %2661 = vmatpush.msra.mxu0 0.0
    %2662 = vmatpush.msra.mxu0 0.0
    %2663 = vmatpush.msra.mxu0 %v2615
    %2664 = vmatmul.f32.gmra.mxu0 %v2620
    %v2665 = vpop.f32.mrf.mxu0
    %v2666 = vadd.f32 0.0, %v2665
    %2667 = vmatmul.f32.gmra.mxu0 %v2623
    %v2668 = vpop.f32.mrf.mxu0
    %v2669 = vadd.f32 0.0, %v2668
    %2670 = vdwg.mxu0
    %2671 = vmatpush.msra.mxu0 0.0
    %2672 = vmatpush.msra.mxu0 0.0
    %2673 = vmatpush.msra.mxu0 0.0
    %2674 = vmatpush.msra.mxu0 0.0
    %2675 = vmatpush.msra.mxu0 0.0
    %2676 = vmatpush.msra.mxu0 0.0
    %2677 = vmatpush.msra.mxu0 0.0
    %2678 = vmatpush.msra.mxu0 0.0
    %2679 = vmatpush.msra.mxu0 0.0
    %2680 = vmatpush.msra.mxu0 0.0
    %2681 = vmatpush.msra.mxu0 0.0
    %2682 = vmatpush.msra.mxu0 0.0
    %2683 = vmatpush.msra.mxu0 0.0
    %2684 = vmatpush.msra.mxu0 0.0
    %2685 = vmatpush.msra.mxu0 0.0
    %2686 = vmatpush.msra.mxu0 %v2613
    %2687 = vmatmul.f32.gmra.mxu0 %v2620
    %v2688 = vpop.f32.mrf.mxu0
    %v2689 = vadd.f32 0.0, %v2688
    %2690 = vmatmul.f32.gmra.mxu0 %v2623
    %v2691 = vpop.f32.mrf.mxu0
    %v2692 = vadd.f32 0.0, %v2691
    %2693 = vdwg.mxu0
    %v2695 = vsel %vm900, %v2601, 0
    %v2698 = vsel %vm900, %v2602, 0
    %2700 = vmatpush.msra.mxu0 0.0
    %2701 = vmatpush.msra.mxu0 0.0
    %2702 = vmatpush.msra.mxu0 0.0
    %2703 = vmatpush.msra.mxu0 0.0
    %2704 = vmatpush.msra.mxu0 0.0
    %2705 = vmatpush.msra.mxu0 0.0
    %2706 = vmatpush.msra.mxu0 0.0
    %2707 = vmatpush.msra.mxu0 0.0
    %2708 = vmatpush.msra.mxu0 0.0
    %2709 = vmatpush.msra.mxu0 0.0
    %2710 = vmatpush.msra.mxu0 0.0
    %2711 = vmatpush.msra.mxu0 0.0
    %2712 = vmatpush.msra.mxu0 0.0
    %2713 = vmatpush.msra.mxu0 0.0
    %2714 = vmatpush.msra.mxu0 0.0
    %2715 = vmatpush.msra.mxu0 %v2598
    %2716 = vmatmul.f32.gmra.mxu0 %v2695
    %v2717 = vpop.f32.mrf.mxu0
    %v2718 = vadd.f32 %v2643, %v2717
    %2719 = vmatmul.f32.gmra.mxu0 %v2698
    %v2720 = vpop.f32.mrf.mxu0
    %v2721 = vadd.f32 %v2646, %v2720
    %2722 = vdwg.mxu0
    %2723 = vmatpush.msra.mxu0 0.0
    %2724 = vmatpush.msra.mxu0 0.0
    %2725 = vmatpush.msra.mxu0 0.0
    %2726 = vmatpush.msra.mxu0 0.0
    %2727 = vmatpush.msra.mxu0 0.0
    %2728 = vmatpush.msra.mxu0 0.0
    %2729 = vmatpush.msra.mxu0 0.0
    %2730 = vmatpush.msra.mxu0 0.0
    %2731 = vmatpush.msra.mxu0 0.0
    %2732 = vmatpush.msra.mxu0 0.0
    %2733 = vmatpush.msra.mxu0 0.0
    %2734 = vmatpush.msra.mxu0 0.0
    %2735 = vmatpush.msra.mxu0 0.0
    %2736 = vmatpush.msra.mxu0 0.0
    %2737 = vmatpush.msra.mxu0 0.0
    %2738 = vmatpush.msra.mxu0 %v2599
    %2739 = vmatmul.f32.gmra.mxu0 %v2695
    %v2740 = vpop.f32.mrf.mxu0
    %v2741 = vadd.f32 %v2666, %v2740
    %2742 = vmatmul.f32.gmra.mxu0 %v2698
    %v2743 = vpop.f32.mrf.mxu0
    %v2744 = vadd.f32 %v2669, %v2743
    %2745 = vdwg.mxu0
    %2746 = vmatpush.msra.mxu0 0.0
    %2747 = vmatpush.msra.mxu0 0.0
    %2748 = vmatpush.msra.mxu0 0.0
    %2749 = vmatpush.msra.mxu0 0.0
    %2750 = vmatpush.msra.mxu0 0.0
    %2751 = vmatpush.msra.mxu0 0.0
    %2752 = vmatpush.msra.mxu0 0.0
    %2753 = vmatpush.msra.mxu0 0.0
    %2754 = vmatpush.msra.mxu0 0.0
    %2755 = vmatpush.msra.mxu0 0.0
    %2756 = vmatpush.msra.mxu0 0.0
    %2757 = vmatpush.msra.mxu0 0.0
    %2758 = vmatpush.msra.mxu0 0.0
    %2759 = vmatpush.msra.mxu0 0.0
    %2760 = vmatpush.msra.mxu0 0.0
    %2761 = vmatpush.msra.mxu0 %v2600
    %2762 = vmatmul.f32.gmra.mxu0 %v2695
    %v2763 = vpop.f32.mrf.mxu0
    %v2764 = vadd.f32 %v2689, %v2763
    %2765 = vmatmul.f32.gmra.mxu0 %v2698
    %v2766 = vpop.f32.mrf.mxu0
    %v2767 = vadd.f32 %v2692, %v2766
    %2768 = vdwg.mxu0
    %v2769 = vld [vmem:[%s1051] sm:$0xff]
    %v2770 = vld [vmem:[%s1051 + $0x8] sm:$0xff]
    %2771 = vrot.lane.b32.xlu0 %v2598, 126
    %v2772 = vpop.permute.xlu0 %2771
    %2773 = vrot.lane.b32.xlu0 %v2599, 126
    %v2774 = vpop.permute.xlu0 %2773
    %2775 = vrot.lane.b32.xlu0 %v2600, 126
    %v2776 = vpop.permute.xlu0 %2775
    %v2777 = vsel %vm229, %v2772, %v2774
    %v2778 = vsel %vm229, %v2774, %v2776
    %v2783 = vsel %vm900, %v2769, 0
    %v2786 = vsel %vm900, %v2770, 0
    %2788 = vmatpush.msra.mxu0 0.0
    %2789 = vmatpush.msra.mxu0 0.0
    %2790 = vmatpush.msra.mxu0 0.0
    %2791 = vmatpush.msra.mxu0 0.0
    %2792 = vmatpush.msra.mxu0 0.0
    %2793 = vmatpush.msra.mxu0 0.0
    %2794 = vmatpush.msra.mxu0 0.0
    %2795 = vmatpush.msra.mxu0 0.0
    %2796 = vmatpush.msra.mxu0 0.0
    %2797 = vmatpush.msra.mxu0 0.0
    %2798 = vmatpush.msra.mxu0 0.0
    %2799 = vmatpush.msra.mxu0 0.0
    %2800 = vmatpush.msra.mxu0 0.0
    %2801 = vmatpush.msra.mxu0 0.0
    %2802 = vmatpush.msra.mxu0 0.0
    %2803 = vmatpush.msra.mxu0 %v2777
    %2804 = vmatmul.f32.gmra.mxu0 %v2783
    %v2805 = vpop.f32.mrf.mxu0
    %v2806 = vadd.f32 0.0, %v2805
    %2807 = vmatmul.f32.gmra.mxu0 %v2786
    %v2808 = vpop.f32.mrf.mxu0
    %v2809 = vadd.f32 0.0, %v2808
    %2810 = vdwg.mxu0
    %2811 = vmatpush.msra.mxu0 0.0
    %2812 = vmatpush.msra.mxu0 0.0
    %2813 = vmatpush.msra.mxu0 0.0
    %2814 = vmatpush.msra.mxu0 0.0
    %2815 = vmatpush.msra.mxu0 0.0
    %2816 = vmatpush.msra.mxu0 0.0
    %2817 = vmatpush.msra.mxu0 0.0
    %2818 = vmatpush.msra.mxu0 0.0
    %2819 = vmatpush.msra.mxu0 0.0
    %2820 = vmatpush.msra.mxu0 0.0
    %2821 = vmatpush.msra.mxu0 0.0
    %2822 = vmatpush.msra.mxu0 0.0
    %2823 = vmatpush.msra.mxu0 0.0
    %2824 = vmatpush.msra.mxu0 0.0
    %2825 = vmatpush.msra.mxu0 0.0
    %2826 = vmatpush.msra.mxu0 %v2778
    %2827 = vmatmul.f32.gmra.mxu0 %v2783
    %v2828 = vpop.f32.mrf.mxu0
    %v2829 = vadd.f32 0.0, %v2828
    %2830 = vmatmul.f32.gmra.mxu0 %v2786
    %v2831 = vpop.f32.mrf.mxu0
    %v2832 = vadd.f32 0.0, %v2831
    %2833 = vdwg.mxu0
    %2834 = vmatpush.msra.mxu0 0.0
    %2835 = vmatpush.msra.mxu0 0.0
    %2836 = vmatpush.msra.mxu0 0.0
    %2837 = vmatpush.msra.mxu0 0.0
    %2838 = vmatpush.msra.mxu0 0.0
    %2839 = vmatpush.msra.mxu0 0.0
    %2840 = vmatpush.msra.mxu0 0.0
    %2841 = vmatpush.msra.mxu0 0.0
    %2842 = vmatpush.msra.mxu0 0.0
    %2843 = vmatpush.msra.mxu0 0.0
    %2844 = vmatpush.msra.mxu0 0.0
    %2845 = vmatpush.msra.mxu0 0.0
    %2846 = vmatpush.msra.mxu0 0.0
    %2847 = vmatpush.msra.mxu0 0.0
    %2848 = vmatpush.msra.mxu0 0.0
    %2849 = vmatpush.msra.mxu0 %v2776
    %2850 = vmatmul.f32.gmra.mxu0 %v2783
    %v2851 = vpop.f32.mrf.mxu0
    %v2852 = vadd.f32 0.0, %v2851
    %2853 = vmatmul.f32.gmra.mxu0 %v2786
    %v2854 = vpop.f32.mrf.mxu0
    %v2855 = vadd.f32 0.0, %v2854
    %2856 = vdwg.mxu0
    %v2857 = vadd.f32 %v2718, %v2806
    %v2858 = vadd.f32 %v2741, %v2829
    %v2859 = vadd.f32 %v2764, %v2852
    %v2860 = vadd.f32 %v2721, %v2809
    %v2861 = vadd.f32 %v2744, %v2832
    %v2862 = vadd.f32 %v2767, %v2855
    %v2863 = vld [vmem:[%s1146] sm:$0xff]
    %v2864 = vld [vmem:[%s1146 + $0x8] sm:$0xff]
    %2865 = vrot.lane.b32.xlu0 %v2598, 110
    %v2866 = vpop.permute.xlu0 %2865
    %2867 = vrot.lane.b32.xlu0 %v2599, 110
    %v2868 = vpop.permute.xlu0 %2867
    %2869 = vrot.lane.b32.xlu0 %v2600, 110
    %v2870 = vpop.permute.xlu0 %2869
    %v2871 = vsel %vm318, %v2866, %v2868
    %v2872 = vsel %vm318, %v2868, %v2870
    %v2877 = vsel %vm900, %v2863, 0
    %v2880 = vsel %vm900, %v2864, 0
    %2882 = vmatpush.msra.mxu0 0.0
    %2883 = vmatpush.msra.mxu0 0.0
    %2884 = vmatpush.msra.mxu0 0.0
    %2885 = vmatpush.msra.mxu0 0.0
    %2886 = vmatpush.msra.mxu0 0.0
    %2887 = vmatpush.msra.mxu0 0.0
    %2888 = vmatpush.msra.mxu0 0.0
    %2889 = vmatpush.msra.mxu0 0.0
    %2890 = vmatpush.msra.mxu0 0.0
    %2891 = vmatpush.msra.mxu0 0.0
    %2892 = vmatpush.msra.mxu0 0.0
    %2893 = vmatpush.msra.mxu0 0.0
    %2894 = vmatpush.msra.mxu0 0.0
    %2895 = vmatpush.msra.mxu0 0.0
    %2896 = vmatpush.msra.mxu0 0.0
    %2897 = vmatpush.msra.mxu0 %v2871
    %2898 = vmatmul.f32.gmra.mxu0 %v2877
    %v2899 = vpop.f32.mrf.mxu0
    %v2900 = vadd.f32 0.0, %v2899
    %2901 = vmatmul.f32.gmra.mxu0 %v2880
    %v2902 = vpop.f32.mrf.mxu0
    %v2903 = vadd.f32 0.0, %v2902
    %2904 = vdwg.mxu0
    %2905 = vmatpush.msra.mxu0 0.0
    %2906 = vmatpush.msra.mxu0 0.0
    %2907 = vmatpush.msra.mxu0 0.0
    %2908 = vmatpush.msra.mxu0 0.0
    %2909 = vmatpush.msra.mxu0 0.0
    %2910 = vmatpush.msra.mxu0 0.0
    %2911 = vmatpush.msra.mxu0 0.0
    %2912 = vmatpush.msra.mxu0 0.0
    %2913 = vmatpush.msra.mxu0 0.0
    %2914 = vmatpush.msra.mxu0 0.0
    %2915 = vmatpush.msra.mxu0 0.0
    %2916 = vmatpush.msra.mxu0 0.0
    %2917 = vmatpush.msra.mxu0 0.0
    %2918 = vmatpush.msra.mxu0 0.0
    %2919 = vmatpush.msra.mxu0 0.0
    %2920 = vmatpush.msra.mxu0 %v2872
    %2921 = vmatmul.f32.gmra.mxu0 %v2877
    %v2922 = vpop.f32.mrf.mxu0
    %v2923 = vadd.f32 0.0, %v2922
    %2924 = vmatmul.f32.gmra.mxu0 %v2880
    %v2925 = vpop.f32.mrf.mxu0
    %v2926 = vadd.f32 0.0, %v2925
    %2927 = vdwg.mxu0
    %2928 = vmatpush.msra.mxu0 0.0
    %2929 = vmatpush.msra.mxu0 0.0
    %2930 = vmatpush.msra.mxu0 0.0
    %2931 = vmatpush.msra.mxu0 0.0
    %2932 = vmatpush.msra.mxu0 0.0
    %2933 = vmatpush.msra.mxu0 0.0
    %2934 = vmatpush.msra.mxu0 0.0
    %2935 = vmatpush.msra.mxu0 0.0
    %2936 = vmatpush.msra.mxu0 0.0
    %2937 = vmatpush.msra.mxu0 0.0
    %2938 = vmatpush.msra.mxu0 0.0
    %2939 = vmatpush.msra.mxu0 0.0
    %2940 = vmatpush.msra.mxu0 0.0
    %2941 = vmatpush.msra.mxu0 0.0
    %2942 = vmatpush.msra.mxu0 0.0
    %2943 = vmatpush.msra.mxu0 %v2870
    %2944 = vmatmul.f32.gmra.mxu0 %v2877
    %v2945 = vpop.f32.mrf.mxu0
    %v2946 = vadd.f32 0.0, %v2945
    %2947 = vmatmul.f32.gmra.mxu0 %v2880
    %v2948 = vpop.f32.mrf.mxu0
    %v2949 = vadd.f32 0.0, %v2948
    %2950 = vdwg.mxu0
    %v2951 = vadd.f32 %v2857, %v2900
    %v2952 = vadd.f32 %v2858, %v2923
    %v2953 = vadd.f32 %v2859, %v2946
    %v2954 = vadd.f32 %v2860, %v2903
    %v2955 = vadd.f32 %v2861, %v2926
    %v2956 = vadd.f32 %v2862, %v2949
    %v2957 = vld [vmem:[%s1241] sm:$0xff]
    %v2958 = vld [vmem:[%s1241 + $0x8] sm:$0xff]
    %2959 = vrot.lane.b32.xlu0 %v2598, 109
    %v2960 = vpop.permute.xlu0 %2959
    %2961 = vrot.lane.b32.xlu0 %v2599, 109
    %v2962 = vpop.permute.xlu0 %2961
    %2963 = vrot.lane.b32.xlu0 %v2600, 109
    %v2964 = vpop.permute.xlu0 %2963
    %v2965 = vsel %vm407, %v2960, %v2962
    %v2966 = vsel %vm407, %v2962, %v2964
    %v2971 = vsel %vm900, %v2957, 0
    %v2974 = vsel %vm900, %v2958, 0
    %2976 = vmatpush.msra.mxu0 0.0
    %2977 = vmatpush.msra.mxu0 0.0
    %2978 = vmatpush.msra.mxu0 0.0
    %2979 = vmatpush.msra.mxu0 0.0
    %2980 = vmatpush.msra.mxu0 0.0
    %2981 = vmatpush.msra.mxu0 0.0
    %2982 = vmatpush.msra.mxu0 0.0
    %2983 = vmatpush.msra.mxu0 0.0
    %2984 = vmatpush.msra.mxu0 0.0
    %2985 = vmatpush.msra.mxu0 0.0
    %2986 = vmatpush.msra.mxu0 0.0
    %2987 = vmatpush.msra.mxu0 0.0
    %2988 = vmatpush.msra.mxu0 0.0
    %2989 = vmatpush.msra.mxu0 0.0
    %2990 = vmatpush.msra.mxu0 0.0
    %2991 = vmatpush.msra.mxu0 %v2965
    %2992 = vmatmul.f32.gmra.mxu0 %v2971
    %v2993 = vpop.f32.mrf.mxu0
    %v2994 = vadd.f32 0.0, %v2993
    %2995 = vmatmul.f32.gmra.mxu0 %v2974
    %v2996 = vpop.f32.mrf.mxu0
    %v2997 = vadd.f32 0.0, %v2996
    %2998 = vdwg.mxu0
    %2999 = vmatpush.msra.mxu0 0.0
    %3000 = vmatpush.msra.mxu0 0.0
    %3001 = vmatpush.msra.mxu0 0.0
    %3002 = vmatpush.msra.mxu0 0.0
    %3003 = vmatpush.msra.mxu0 0.0
    %3004 = vmatpush.msra.mxu0 0.0
    %3005 = vmatpush.msra.mxu0 0.0
    %3006 = vmatpush.msra.mxu0 0.0
    %3007 = vmatpush.msra.mxu0 0.0
    %3008 = vmatpush.msra.mxu0 0.0
    %3009 = vmatpush.msra.mxu0 0.0
    %3010 = vmatpush.msra.mxu0 0.0
    %3011 = vmatpush.msra.mxu0 0.0
    %3012 = vmatpush.msra.mxu0 0.0
    %3013 = vmatpush.msra.mxu0 0.0
    %3014 = vmatpush.msra.mxu0 %v2966
    %3015 = vmatmul.f32.gmra.mxu0 %v2971
    %v3016 = vpop.f32.mrf.mxu0
    %v3017 = vadd.f32 0.0, %v3016
    %3018 = vmatmul.f32.gmra.mxu0 %v2974
    %v3019 = vpop.f32.mrf.mxu0
    %v3020 = vadd.f32 0.0, %v3019
    %3021 = vdwg.mxu0
    %3022 = vmatpush.msra.mxu0 0.0
    %3023 = vmatpush.msra.mxu0 0.0
    %3024 = vmatpush.msra.mxu0 0.0
    %3025 = vmatpush.msra.mxu0 0.0
    %3026 = vmatpush.msra.mxu0 0.0
    %3027 = vmatpush.msra.mxu0 0.0
    %3028 = vmatpush.msra.mxu0 0.0
    %3029 = vmatpush.msra.mxu0 0.0
    %3030 = vmatpush.msra.mxu0 0.0
    %3031 = vmatpush.msra.mxu0 0.0
    %3032 = vmatpush.msra.mxu0 0.0
    %3033 = vmatpush.msra.mxu0 0.0
    %3034 = vmatpush.msra.mxu0 0.0
    %3035 = vmatpush.msra.mxu0 0.0
    %3036 = vmatpush.msra.mxu0 0.0
    %3037 = vmatpush.msra.mxu0 %v2964
    %3038 = vmatmul.f32.gmra.mxu0 %v2971
    %v3039 = vpop.f32.mrf.mxu0
    %v3040 = vadd.f32 0.0, %v3039
    %3041 = vmatmul.f32.gmra.mxu0 %v2974
    %v3042 = vpop.f32.mrf.mxu0
    %v3043 = vadd.f32 0.0, %v3042
    %3044 = vdwg.mxu0
    %v3045 = vadd.f32 %v2951, %v2994
    %v3046 = vadd.f32 %v2952, %v3017
    %v3047 = vadd.f32 %v2953, %v3040
    %v3048 = vadd.f32 %v2954, %v2997
    %v3049 = vadd.f32 %v2955, %v3020
    %v3050 = vadd.f32 %v2956, %v3043
    %v3051 = vld [vmem:[%s1336] sm:$0xff]
    %v3052 = vld [vmem:[%s1336 + $0x8] sm:$0xff]
    %3053 = vrot.lane.b32.xlu0 %v2598, 108
    %v3054 = vpop.permute.xlu0 %3053
    %3055 = vrot.lane.b32.xlu0 %v2599, 108
    %v3056 = vpop.permute.xlu0 %3055
    %3057 = vrot.lane.b32.xlu0 %v2600, 108
    %v3058 = vpop.permute.xlu0 %3057
    %v3059 = vsel %vm496, %v3054, %v3056
    %v3060 = vsel %vm496, %v3056, %v3058
    %v3065 = vsel %vm900, %v3051, 0
    %v3068 = vsel %vm900, %v3052, 0
    %3070 = vmatpush.msra.mxu0 0.0
    %3071 = vmatpush.msra.mxu0 0.0
    %3072 = vmatpush.msra.mxu0 0.0
    %3073 = vmatpush.msra.mxu0 0.0
    %3074 = vmatpush.msra.mxu0 0.0
    %3075 = vmatpush.msra.mxu0 0.0
    %3076 = vmatpush.msra.mxu0 0.0
    %3077 = vmatpush.msra.mxu0 0.0
    %3078 = vmatpush.msra.mxu0 0.0
    %3079 = vmatpush.msra.mxu0 0.0
    %3080 = vmatpush.msra.mxu0 0.0
    %3081 = vmatpush.msra.mxu0 0.0
    %3082 = vmatpush.msra.mxu0 0.0
    %3083 = vmatpush.msra.mxu0 0.0
    %3084 = vmatpush.msra.mxu0 0.0
    %3085 = vmatpush.msra.mxu0 %v3059
    %3086 = vmatmul.f32.gmra.mxu0 %v3065
    %v3087 = vpop.f32.mrf.mxu0
    %v3088 = vadd.f32 0.0, %v3087
    %3089 = vmatmul.f32.gmra.mxu0 %v3068
    %v3090 = vpop.f32.mrf.mxu0
    %v3091 = vadd.f32 0.0, %v3090
    %3092 = vdwg.mxu0
    %3093 = vmatpush.msra.mxu0 0.0
    %3094 = vmatpush.msra.mxu0 0.0
    %3095 = vmatpush.msra.mxu0 0.0
    %3096 = vmatpush.msra.mxu0 0.0
    %3097 = vmatpush.msra.mxu0 0.0
    %3098 = vmatpush.msra.mxu0 0.0
    %3099 = vmatpush.msra.mxu0 0.0
    %3100 = vmatpush.msra.mxu0 0.0
    %3101 = vmatpush.msra.mxu0 0.0
    %3102 = vmatpush.msra.mxu0 0.0
    %3103 = vmatpush.msra.mxu0 0.0
    %3104 = vmatpush.msra.mxu0 0.0
    %3105 = vmatpush.msra.mxu0 0.0
    %3106 = vmatpush.msra.mxu0 0.0
    %3107 = vmatpush.msra.mxu0 0.0
    %3108 = vmatpush.msra.mxu0 %v3060
    %3109 = vmatmul.f32.gmra.mxu0 %v3065
    %v3110 = vpop.f32.mrf.mxu0
    %v3111 = vadd.f32 0.0, %v3110
    %3112 = vmatmul.f32.gmra.mxu0 %v3068
    %v3113 = vpop.f32.mrf.mxu0
    %v3114 = vadd.f32 0.0, %v3113
    %3115 = vdwg.mxu0
    %3116 = vmatpush.msra.mxu0 0.0
    %3117 = vmatpush.msra.mxu0 0.0
    %3118 = vmatpush.msra.mxu0 0.0
    %3119 = vmatpush.msra.mxu0 0.0
    %3120 = vmatpush.msra.mxu0 0.0
    %3121 = vmatpush.msra.mxu0 0.0
    %3122 = vmatpush.msra.mxu0 0.0
    %3123 = vmatpush.msra.mxu0 0.0
    %3124 = vmatpush.msra.mxu0 0.0
    %3125 = vmatpush.msra.mxu0 0.0
    %3126 = vmatpush.msra.mxu0 0.0
    %3127 = vmatpush.msra.mxu0 0.0
    %3128 = vmatpush.msra.mxu0 0.0
    %3129 = vmatpush.msra.mxu0 0.0
    %3130 = vmatpush.msra.mxu0 0.0
    %3131 = vmatpush.msra.mxu0 %v3058
    %3132 = vmatmul.f32.gmra.mxu0 %v3065
    %v3133 = vpop.f32.mrf.mxu0
    %v3134 = vadd.f32 0.0, %v3133
    %3135 = vmatmul.f32.gmra.mxu0 %v3068
    %v3136 = vpop.f32.mrf.mxu0
    %v3137 = vadd.f32 0.0, %v3136
    %3138 = vdwg.mxu0
    %v3139 = vadd.f32 %v3045, %v3088
    %v3140 = vadd.f32 %v3046, %v3111
    %v3141 = vadd.f32 %v3047, %v3134
    %v3142 = vadd.f32 %v3048, %v3091
    %v3143 = vadd.f32 %v3049, %v3114
    %v3144 = vadd.f32 %v3050, %v3137
    %v3145 = vld [vmem:[%s1431] sm:$0xff]
    %v3146 = vld [vmem:[%s1431 + $0x8] sm:$0xff]
    %3147 = vrot.lane.b32.xlu0 %v2598, 92
    %v3148 = vpop.permute.xlu0 %3147
    %3149 = vrot.lane.b32.xlu0 %v2599, 92
    %v3150 = vpop.permute.xlu0 %3149
    %3151 = vrot.lane.b32.xlu0 %v2600, 92
    %v3152 = vpop.permute.xlu0 %3151
    %v3153 = vsel %vm585, %v3148, %v3150
    %v3154 = vsel %vm585, %v3150, %v3152
    %v3159 = vsel %vm900, %v3145, 0
    %v3162 = vsel %vm900, %v3146, 0
    %3164 = vmatpush.msra.mxu0 0.0
    %3165 = vmatpush.msra.mxu0 0.0
    %3166 = vmatpush.msra.mxu0 0.0
    %3167 = vmatpush.msra.mxu0 0.0
    %3168 = vmatpush.msra.mxu0 0.0
    %3169 = vmatpush.msra.mxu0 0.0
    %3170 = vmatpush.msra.mxu0 0.0
    %3171 = vmatpush.msra.mxu0 0.0
    %3172 = vmatpush.msra.mxu0 0.0
    %3173 = vmatpush.msra.mxu0 0.0
    %3174 = vmatpush.msra.mxu0 0.0
    %3175 = vmatpush.msra.mxu0 0.0
    %3176 = vmatpush.msra.mxu0 0.0
    %3177 = vmatpush.msra.mxu0 0.0
    %3178 = vmatpush.msra.mxu0 0.0
    %3179 = vmatpush.msra.mxu0 %v3153
    %3180 = vmatmul.f32.gmra.mxu0 %v3159
    %v3181 = vpop.f32.mrf.mxu0
    %v3182 = vadd.f32 0.0, %v3181
    %3183 = vmatmul.f32.gmra.mxu0 %v3162
    %v3184 = vpop.f32.mrf.mxu0
    %v3185 = vadd.f32 0.0, %v3184
    %3186 = vdwg.mxu0
    %3187 = vmatpush.msra.mxu0 0.0
    %3188 = vmatpush.msra.mxu0 0.0
    %3189 = vmatpush.msra.mxu0 0.0
    %3190 = vmatpush.msra.mxu0 0.0
    %3191 = vmatpush.msra.mxu0 0.0
    %3192 = vmatpush.msra.mxu0 0.0
    %3193 = vmatpush.msra.mxu0 0.0
    %3194 = vmatpush.msra.mxu0 0.0
    %3195 = vmatpush.msra.mxu0 0.0
    %3196 = vmatpush.msra.mxu0 0.0
    %3197 = vmatpush.msra.mxu0 0.0
    %3198 = vmatpush.msra.mxu0 0.0
    %3199 = vmatpush.msra.mxu0 0.0
    %3200 = vmatpush.msra.mxu0 0.0
    %3201 = vmatpush.msra.mxu0 0.0
    %3202 = vmatpush.msra.mxu0 %v3154
    %3203 = vmatmul.f32.gmra.mxu0 %v3159
    %v3204 = vpop.f32.mrf.mxu0
    %v3205 = vadd.f32 0.0, %v3204
    %3206 = vmatmul.f32.gmra.mxu0 %v3162
    %v3207 = vpop.f32.mrf.mxu0
    %v3208 = vadd.f32 0.0, %v3207
    %3209 = vdwg.mxu0
    %3210 = vmatpush.msra.mxu0 0.0
    %3211 = vmatpush.msra.mxu0 0.0
    %3212 = vmatpush.msra.mxu0 0.0
    %3213 = vmatpush.msra.mxu0 0.0
    %3214 = vmatpush.msra.mxu0 0.0
    %3215 = vmatpush.msra.mxu0 0.0
    %3216 = vmatpush.msra.mxu0 0.0
    %3217 = vmatpush.msra.mxu0 0.0
    %3218 = vmatpush.msra.mxu0 0.0
    %3219 = vmatpush.msra.mxu0 0.0
    %3220 = vmatpush.msra.mxu0 0.0
    %3221 = vmatpush.msra.mxu0 0.0
    %3222 = vmatpush.msra.mxu0 0.0
    %3223 = vmatpush.msra.mxu0 0.0
    %3224 = vmatpush.msra.mxu0 0.0
    %3225 = vmatpush.msra.mxu0 %v3152
    %3226 = vmatmul.f32.gmra.mxu0 %v3159
    %v3227 = vpop.f32.mrf.mxu0
    %v3228 = vadd.f32 0.0, %v3227
    %3229 = vmatmul.f32.gmra.mxu0 %v3162
    %v3230 = vpop.f32.mrf.mxu0
    %v3231 = vadd.f32 0.0, %v3230
    %3232 = vdwg.mxu0
    %v3233 = vadd.f32 %v3139, %v3182
    %v3234 = vadd.f32 %v3140, %v3205
    %v3235 = vadd.f32 %v3141, %v3228
    %v3236 = vadd.f32 %v3142, %v3185
    %v3237 = vadd.f32 %v3143, %v3208
    %v3238 = vadd.f32 %v3144, %v3231
    %v3239 = vld [vmem:[%s1526] sm:$0xff]
    %v3240 = vld [vmem:[%s1526 + $0x8] sm:$0xff]
    %3241 = vrot.lane.b32.xlu0 %v2598, 91
    %v3242 = vpop.permute.xlu0 %3241
    %3243 = vrot.lane.b32.xlu0 %v2599, 91
    %v3244 = vpop.permute.xlu0 %3243
    %3245 = vrot.lane.b32.xlu0 %v2600, 91
    %v3246 = vpop.permute.xlu0 %3245
    %v3247 = vsel %vm674, %v3242, %v3244
    %v3248 = vsel %vm674, %v3244, %v3246
    %v3253 = vsel %vm900, %v3239, 0
    %v3256 = vsel %vm900, %v3240, 0
    %3258 = vmatpush.msra.mxu0 0.0
    %3259 = vmatpush.msra.mxu0 0.0
    %3260 = vmatpush.msra.mxu0 0.0
    %3261 = vmatpush.msra.mxu0 0.0
    %3262 = vmatpush.msra.mxu0 0.0
    %3263 = vmatpush.msra.mxu0 0.0
    %3264 = vmatpush.msra.mxu0 0.0
    %3265 = vmatpush.msra.mxu0 0.0
    %3266 = vmatpush.msra.mxu0 0.0
    %3267 = vmatpush.msra.mxu0 0.0
    %3268 = vmatpush.msra.mxu0 0.0
    %3269 = vmatpush.msra.mxu0 0.0
    %3270 = vmatpush.msra.mxu0 0.0
    %3271 = vmatpush.msra.mxu0 0.0
    %3272 = vmatpush.msra.mxu0 0.0
    %3273 = vmatpush.msra.mxu0 %v3247
    %3274 = vmatmul.f32.gmra.mxu0 %v3253
    %v3275 = vpop.f32.mrf.mxu0
    %v3276 = vadd.f32 0.0, %v3275
    %3277 = vmatmul.f32.gmra.mxu0 %v3256
    %v3278 = vpop.f32.mrf.mxu0
    %v3279 = vadd.f32 0.0, %v3278
    %3280 = vdwg.mxu0
    %3281 = vmatpush.msra.mxu0 0.0
    %3282 = vmatpush.msra.mxu0 0.0
    %3283 = vmatpush.msra.mxu0 0.0
    %3284 = vmatpush.msra.mxu0 0.0
    %3285 = vmatpush.msra.mxu0 0.0
    %3286 = vmatpush.msra.mxu0 0.0
    %3287 = vmatpush.msra.mxu0 0.0
    %3288 = vmatpush.msra.mxu0 0.0
    %3289 = vmatpush.msra.mxu0 0.0
    %3290 = vmatpush.msra.mxu0 0.0
    %3291 = vmatpush.msra.mxu0 0.0
    %3292 = vmatpush.msra.mxu0 0.0
    %3293 = vmatpush.msra.mxu0 0.0
    %3294 = vmatpush.msra.mxu0 0.0
    %3295 = vmatpush.msra.mxu0 0.0
    %3296 = vmatpush.msra.mxu0 %v3248
    %3297 = vmatmul.f32.gmra.mxu0 %v3253
    %v3298 = vpop.f32.mrf.mxu0
    %v3299 = vadd.f32 0.0, %v3298
    %3300 = vmatmul.f32.gmra.mxu0 %v3256
    %v3301 = vpop.f32.mrf.mxu0
    %v3302 = vadd.f32 0.0, %v3301
    %3303 = vdwg.mxu0
    %3304 = vmatpush.msra.mxu0 0.0
    %3305 = vmatpush.msra.mxu0 0.0
    %3306 = vmatpush.msra.mxu0 0.0
    %3307 = vmatpush.msra.mxu0 0.0
    %3308 = vmatpush.msra.mxu0 0.0
    %3309 = vmatpush.msra.mxu0 0.0
    %3310 = vmatpush.msra.mxu0 0.0
    %3311 = vmatpush.msra.mxu0 0.0
    %3312 = vmatpush.msra.mxu0 0.0
    %3313 = vmatpush.msra.mxu0 0.0
    %3314 = vmatpush.msra.mxu0 0.0
    %3315 = vmatpush.msra.mxu0 0.0
    %3316 = vmatpush.msra.mxu0 0.0
    %3317 = vmatpush.msra.mxu0 0.0
    %3318 = vmatpush.msra.mxu0 0.0
    %3319 = vmatpush.msra.mxu0 %v3246
    %3320 = vmatmul.f32.gmra.mxu0 %v3253
    %v3321 = vpop.f32.mrf.mxu0
    %v3322 = vadd.f32 0.0, %v3321
    %3323 = vmatmul.f32.gmra.mxu0 %v3256
    %v3324 = vpop.f32.mrf.mxu0
    %v3325 = vadd.f32 0.0, %v3324
    %3326 = vdwg.mxu0
    %v3327 = vadd.f32 %v3233, %v3276
    %v3328 = vadd.f32 %v3234, %v3299
    %v3329 = vadd.f32 %v3235, %v3322
    %v3330 = vadd.f32 %v3236, %v3279
    %v3331 = vadd.f32 %v3237, %v3302
    %v3332 = vadd.f32 %v3238, %v3325
    %v3333 = vld [vmem:[%s1621] sm:$0xff]
    %v3334 = vld [vmem:[%s1621 + $0x8] sm:$0xff]
    %3335 = vrot.lane.b32.xlu0 %v2598, 90
    %v3336 = vpop.permute.xlu0 %3335
    %3337 = vrot.lane.b32.xlu0 %v2599, 90
    %v3338 = vpop.permute.xlu0 %3337
    %3339 = vrot.lane.b32.xlu0 %v2600, 90
    %v3340 = vpop.permute.xlu0 %3339
    %v3341 = vsel %vm763, %v3336, %v3338
    %v3342 = vsel %vm763, %v3338, %v3340
    %v3347 = vsel %vm900, %v3333, 0
    %v3350 = vsel %vm900, %v3334, 0
    %3352 = vmatpush.msra.mxu0 0.0
    %3353 = vmatpush.msra.mxu0 0.0
    %3354 = vmatpush.msra.mxu0 0.0
    %3355 = vmatpush.msra.mxu0 0.0
    %3356 = vmatpush.msra.mxu0 0.0
    %3357 = vmatpush.msra.mxu0 0.0
    %3358 = vmatpush.msra.mxu0 0.0
    %3359 = vmatpush.msra.mxu0 0.0
    %3360 = vmatpush.msra.mxu0 0.0
    %3361 = vmatpush.msra.mxu0 0.0
    %3362 = vmatpush.msra.mxu0 0.0
    %3363 = vmatpush.msra.mxu0 0.0
    %3364 = vmatpush.msra.mxu0 0.0
    %3365 = vmatpush.msra.mxu0 0.0
    %3366 = vmatpush.msra.mxu0 0.0
    %3367 = vmatpush.msra.mxu0 %v3341
    %3368 = vmatmul.f32.gmra.mxu0 %v3347
    %v3369 = vpop.f32.mrf.mxu0
    %v3370 = vadd.f32 0.0, %v3369
    %3371 = vmatmul.f32.gmra.mxu0 %v3350
    %v3372 = vpop.f32.mrf.mxu0
    %v3373 = vadd.f32 0.0, %v3372
    %3374 = vdwg.mxu0
    %3375 = vmatpush.msra.mxu0 0.0
    %3376 = vmatpush.msra.mxu0 0.0
    %3377 = vmatpush.msra.mxu0 0.0
    %3378 = vmatpush.msra.mxu0 0.0
    %3379 = vmatpush.msra.mxu0 0.0
    %3380 = vmatpush.msra.mxu0 0.0
    %3381 = vmatpush.msra.mxu0 0.0
    %3382 = vmatpush.msra.mxu0 0.0
    %3383 = vmatpush.msra.mxu0 0.0
    %3384 = vmatpush.msra.mxu0 0.0
    %3385 = vmatpush.msra.mxu0 0.0
    %3386 = vmatpush.msra.mxu0 0.0
    %3387 = vmatpush.msra.mxu0 0.0
    %3388 = vmatpush.msra.mxu0 0.0
    %3389 = vmatpush.msra.mxu0 0.0
    %3390 = vmatpush.msra.mxu0 %v3342
    %3391 = vmatmul.f32.gmra.mxu0 %v3347
    %v3392 = vpop.f32.mrf.mxu0
    %v3393 = vadd.f32 0.0, %v3392
    %3394 = vmatmul.f32.gmra.mxu0 %v3350
    %v3395 = vpop.f32.mrf.mxu0
    %v3396 = vadd.f32 0.0, %v3395
    %3397 = vdwg.mxu0
    %3398 = vmatpush.msra.mxu0 0.0
    %3399 = vmatpush.msra.mxu0 0.0
    %3400 = vmatpush.msra.mxu0 0.0
    %3401 = vmatpush.msra.mxu0 0.0
    %3402 = vmatpush.msra.mxu0 0.0
    %3403 = vmatpush.msra.mxu0 0.0
    %3404 = vmatpush.msra.mxu0 0.0
    %3405 = vmatpush.msra.mxu0 0.0
    %3406 = vmatpush.msra.mxu0 0.0
    %3407 = vmatpush.msra.mxu0 0.0
    %3408 = vmatpush.msra.mxu0 0.0
    %3409 = vmatpush.msra.mxu0 0.0
    %3410 = vmatpush.msra.mxu0 0.0
    %3411 = vmatpush.msra.mxu0 0.0
    %3412 = vmatpush.msra.mxu0 0.0
    %3413 = vmatpush.msra.mxu0 %v3340
    %3414 = vmatmul.f32.gmra.mxu0 %v3347
    %v3415 = vpop.f32.mrf.mxu0
    %v3416 = vadd.f32 0.0, %v3415
    %3417 = vmatmul.f32.gmra.mxu0 %v3350
    %v3418 = vpop.f32.mrf.mxu0
    %v3419 = vadd.f32 0.0, %v3418
    %3420 = vdwg.mxu0
    %v3421 = vadd.f32 %v3327, %v3370
    %v3422 = vadd.f32 %v3328, %v3393
    %v3423 = vadd.f32 %v3329, %v3416
    %v3424 = vadd.f32 %v3330, %v3373
    %v3425 = vadd.f32 %v3331, %v3396
    %v3426 = vadd.f32 %v3332, %v3419
    %v3427 = vadd.f32 %v3421, %v1719
    %v3428 = vadd.f32 %v3422, %v1719
    %v3429 = vadd.f32 %v3423, %v1719
    %v3430 = vadd.f32 %v3424, %v1724
    %v3431 = vadd.f32 %v3425, %v1724
    %v3432 = vadd.f32 %v3426, %v1724
    %v3433 = vmax.f32 %v3427, 0.0
    %v3434 = vmax.f32 %v3428, 0.0
    %v3435 = vmax.f32 %v3429, 0.0
    %v3436 = vmax.f32 %v3430, 0.0
    %v3437 = vmax.f32 %v3431, 0.0
    %v3438 = vmax.f32 %v3432, 0.0
    %v3439 = vmul.f32 %v3433, %v1739
    %v3440 = vmul.f32 %v3434, %v1740
    %v3441 = vmul.f32 %v3435, %v1741
    %v3442 = vmul.f32 %v3436, %v1739
    %v3443 = vmul.f32 %v3437, %v1740
    %v3444 = vmul.f32 %v3438, %v1741
    %v3445 = vadd.f32 %v3439, %v3440
    %v3446 = vsel %vm1752, %v3441, 0.0
    %v3447 = vadd.f32 %v3445, %v3446
    %3448 = vadd.xlane.f32.xlu0 %v3447
    %v3449 = vpop.xlane.xlu0 %3448
    %v3450 = vadd.f32 %v3442, %v3443
    %v3451 = vsel %vm1752, %v3444, 0.0
    %v3452 = vadd.f32 %v3450, %v3451
    %3453 = vadd.xlane.f32.xlu0 %v3452
    %v3454 = vpop.xlane.xlu0 %3453
    %v3455 = vmul.f32 %v3449, %v38
    %v3456 = vmul.f32 %v3449, %v39
    %v3457 = vmul.f32 %v3454, %v40
    %v3458 = vmul.f32 %v3454, %v41
    %v3459 = vadd.f32 %v3455, %v3457
    %v3460 = vrot.slane %v3459, 4
    %v3461 = vadd.f32 %v3459, %v3460
    %v3462 = vrot.slane %v3461, 2
    %v3463 = vadd.f32 %v3461, %v3462
    %v3464 = vrot.slane %v3463, 1
    %v3465 = vadd.f32 %v3463, %v3464
    %v3466 = vadd.f32 %v3456, %v3458
    %v3467 = vrot.slane %v3466, 4
    %v3468 = vadd.f32 %v3466, %v3467
    %v3469 = vrot.slane %v3468, 2
    %v3470 = vadd.f32 %v3468, %v3469
    %v3471 = vrot.slane %v3470, 1
    %v3472 = vadd.f32 %v3470, %v3471
    %v3473 = vadd.f32 %v3465, %v1781
    %v3474 = vadd.f32 %v3472, %v1782
    %v3477 = vrot.slane %v3474, 7
    %v3478 = vsel %vm1790, %v3473, %v3477
    %s3480 = scalar_lea.vmem [#allocation3], 1
    %3481 = vst.msk [vmem:[%s3480] ss:$2 sm:$0x3] %vm1796, %v3478
    // Predicated region
    $region38: #{state_encoder_forward.1} parent=1 // pred_check
      _
    $region39: #{state_encoder_forward.1} parent=1 // pred_check_branch
      %3483 = sbr.rel (0) target = $region41
    $region40: #{state_encoder_forward.1} parent=1 // pred_region
      %3485 = vsyncadd [#allocation4], 0
      %s3487 = sshll.u32 [#allocation3], 4
      %s3488 = int_to_ptr.vmem [resolvable:$true] %s3487
      %s3489 = sshll.u32 %s9, 4
      %s3490 = int_to_ptr.hbm [resolvable:$true] %s3489
      %3492 = dma.vmem_to_hbm [thread:$0]  %s3488, 64, %s3490, [#allocation4]
    $region41: #{state_encoder_forward.1} parent=1 // pred_fallthru
      _
    // Predicated region
    $region42: #{state_encoder_forward.1} parent=1 // pred_check
      _
    $region43: #{state_encoder_forward.1} parent=1 // pred_check_branch
      %3494 = sbr.rel (0) target = $region45
    $region44: #{state_encoder_forward.1} parent=1 // pred_region
      %3496 = dma.done [#allocation4], 64
    $region45: #{state_encoder_forward.1} parent=1 // pred_fallthru
      _
    %3497 = vsyncpa [#allocation4], 1

</llo_original>
